<compile_context>
chip_gen: v7x
topology: tpu7x:2x2x1
jax: 0.10.0
libtpu: 0.0.40
codegen_flags: <defaults>
</compile_context>

<pallas_src>
import functools

import jax
import jax.numpy as jnp
from jax.experimental import pallas as pl
from jax.experimental.pallas import tpu as pltpu


_TB_CAP = 8  # samples per grid step (per-sample inner loop is unrolled tb times)


def _round_up(x, m):
    return ((x + m - 1) // m) * m


def _vmem_limit_bytes():
    # Size the VMEM budget from the actual chip (v5e/v6e 128 MiB -> ~96 MiB,
    # v7x 64 MiB -> ~48 MiB); conservative fallback if the query is unavailable.
    try:
        cap = pltpu.get_tpu_info().vmem_capacity_bytes
    except Exception:
        cap = 64 * 1024 * 1024
    return max(32 * 1024 * 1024, min(int(cap * 3 // 4), 100 * 1024 * 1024))


# ----------------------------------------------------------------------------
# One-time parameter preparation (hoisted out of the per-call forward).
# ----------------------------------------------------------------------------
def prepare_params(params):
    bf16 = jnp.bfloat16
    Cv = params['img_w'].shape[1]
    Q = params['txt_w'].shape[1]
    G = params['att_wg'].shape[1]
    CH = params['cls_w1'].shape[1]
    A = params['cls_w2'].shape[1]
    A_pad = _round_up(A, 128)
    w1 = params['cls_w1']
    # classifier weight split assumes the reference concat order [att (glimpse-
    # major), q]; keep this assert so a reference change cannot silently break it.
    assert w1.shape[0] == G * Cv + Q, "cls_w1 must match concat([att, q])"
    return {
        'img_w':   params['img_w'].astype(bf16),                       # (C, Cv)
        'img_b':   params['img_b'].reshape(1, Cv),                     # (1, Cv)
        'emb':     params['emb'],                                      # (V, E)
        'txt_w':   params['txt_w'].astype(bf16),                       # (E, Q)
        'txt_b':   params['txt_b'].reshape(1, Q),                      # (1, Q)
        'att_wv':  params['att_wv'].astype(bf16),                      # (Cv, Hd)
        'att_wq':  params['att_wq'].astype(bf16),                      # (Q, Hd)
        'att_wgT': params['att_wg'].T.astype(bf16),                    # (G, Hd)
        'cls_w1v': w1[:G * Cv].reshape(G, Cv, CH).astype(bf16),        # (G,Cv,CH)
        'cls_w1q': w1[G * Cv:].astype(bf16),                           # (Q, CH)
        'cls_b1':  params['cls_b1'].reshape(1, CH),                    # (1, CH)
        'cls_w2':  jnp.pad(params['cls_w2'],
                           ((0, 0), (0, A_pad - A))).astype(bf16),     # (CH,A_pad)
        'cls_b2':  jnp.pad(params['cls_b2'],
                           (0, A_pad - A)).reshape(1, A_pad),          # (1, A_pad)
    }


# ----------------------------------------------------------------------------
# Fused kernel: text encoder -> per-sample (mask*conv*ReLU, Wv proj, glimpse
# attention, attended features) -> classifier.  One grid step = tb samples.
# ----------------------------------------------------------------------------
def _make_fused_kernel(tb, num_glimpses):
    G = num_glimpses

    def kernel(v_ref, m_ref, emb_ref,
               img_w_ref, img_b_ref, wv_ref,
               txt_w_ref, txt_b_ref, wq_ref, wgT_ref,
               w1v_ref, w1q_ref, b1_ref, w2_ref, b2_ref,
               logits_ref, maps_ref, att_scr):
        bf16, f32 = jnp.bfloat16, jnp.float32

        # ---- text encoder: mean-pool -> linear -> tanh (batched over tb) ----
        # TODO(synk): no padding mask on the sequence mean-pool (matches the
        # synthetic text encoder used by the reference).
        e = jnp.mean(emb_ref[...], axis=1)                              # (tb, E)
        q = jnp.tanh(jnp.dot(e.astype(bf16), txt_w_ref[...],
                             preferred_element_type=f32)
                     + txt_b_ref[...])                                  # (tb, Q)
        qproj = jnp.dot(q.astype(bf16), wq_ref[...],
                        preferred_element_type=f32)                     # (tb, Hd)

        wgT = wgT_ref[...]                                              # (G, Hd)

        # ---- per-sample image + attention; feat/proj never touch HBM -------
        for n in range(tb):
            x_n = (v_ref[n] * m_ref[n]).astype(bf16)                    # (C, P)
            # TODO(synk): at production C_in, check MLIR for a per-step XLU
            # transpose of x_n and switch to a channel-major formulation or a
            # K-reduction grid axis if one shows up.
            f_n = jnp.einsum('cp,cv->pv', x_n, img_w_ref[...],
                             preferred_element_type=f32)                # (P, Cv)
            f_n = jnp.maximum(f_n + img_b_ref[...], 0.0)                # ReLU f32
            f_nb = f_n.astype(bf16)
            p_n = jnp.dot(f_nb, wv_ref[...],
                          preferred_element_type=f32)                   # (P, Hd)
            j_n = jnp.tanh(p_n + qproj[n:n + 1, :]).astype(bf16)        # (P, Hd)
            # all glimpses in one MXU contraction -> lane-dense (G, P)
            al_n = jnp.einsum('gh,ph->gp', wgT, j_n,
                              preferred_element_type=f32)               # (G, P)
            mx = jnp.max(al_n, axis=-1, keepdims=True)
            ex = jnp.exp(al_n - mx)
            den = jnp.sum(ex, axis=-1, keepdims=True)
            maps_n = ex * pl.reciprocal(den, approx=True)               # (G, P)
            maps_ref[n] = maps_n                         # single dense store
            att_scr[n] = jnp.dot(maps_n.astype(bf16), f_nb,
                                 preferred_element_type=f32)            # (G, Cv)

        # ---- classifier on concat([att glimpse-major, q]) via split weights -
        att = att_scr[...]                                              # (tb,G,Cv)
        h = jnp.dot(q.astype(bf16), w1q_ref[...],
                    preferred_element_type=f32) + b1_ref[...]           # (tb, CH)
        for g in range(G):
            h = h + jnp.dot(att[:, g, :].astype(bf16), w1v_ref[g],
                            preferred_element_type=f32)
        h = jnp.maximum(h, 0.0)
        logits_ref[...] = jnp.dot(h.astype(bf16), w2_ref[...],
                                  preferred_element_type=f32) + b2_ref[...]

    return kernel


# ----------------------------------------------------------------------------
# Full SQuINT forward
# ----------------------------------------------------------------------------
def squint_forward(v, q_tokens, m, prep, *, n_answers,
                   single_buffer_weights=True):
    N, C, H, W = v.shape
    P = H * W
    Cm = m.shape[1]
    assert Cm in (1, C), "mask must have 1 or C_in channels"
    S = q_tokens.shape[1]
    E, Q = prep['txt_w'].shape
    Cv, Hd = prep['att_wv'].shape
    G = prep['att_wgT'].shape[0]
    CH = prep['cls_w1q'].shape[1]
    A_pad = prep['cls_w2'].shape[1]

    # Batch tiling: every block is either the full batch or 8-sublane aligned.
    if N <= _TB_CAP:
        tb, n_pad = N, N
    else:
        tb = _TB_CAP
        n_pad = _round_up(N, tb)
    # TODO(synk): at production scale a larger tb (with a fori_loop inner body)
    # would better fill the M dim of the text/classifier matmuls; the image and
    # attention matmuls already run with M = P per sample, so tb=8 is adequate.

    v3 = v.reshape(N, C, P)            # NCHW -> (N, C, P): free reshape only
    m3 = m.reshape(N, Cm, P)
    # TODO(synk): integer token-embedding gather stays in JAX glue (data-
    # dependent gather has no clean BlockSpec expression here).
    emb = prep['emb'][q_tokens]                                         # (N,S,E)
    if n_pad != N:
        pad = ((0, n_pad - N), (0, 0), (0, 0))
        v3, m3, emb = jnp.pad(v3, pad), jnp.pad(m3, pad), jnp.pad(emb, pad)

    def _wspec(shape):
        idx = (0,) * len(shape)
        if single_buffer_weights:
            # grid-invariant weights: no double-buffering (reclaims VMEM).
            return pl.BlockSpec(shape, lambda i: idx,
                                pipeline_mode=pl.Buffered(1))
        return pl.BlockSpec(shape, lambda i: idx)

    cparams = pltpu.CompilerParams(
        dimension_semantics=("parallel",),
        vmem_limit_bytes=_vmem_limit_bytes())

    logits_pad, maps_pad = pl.pallas_call(
        _make_fused_kernel(tb, G),
        out_shape=(jax.ShapeDtypeStruct((n_pad, A_pad), jnp.float32),
                   jax.ShapeDtypeStruct((n_pad, G, P), jnp.float32)),
        grid=(n_pad // tb,),
        in_specs=[
            pl.BlockSpec((tb, C, P), lambda i: (i, 0, 0)),     # image (NCHW)
            pl.BlockSpec((tb, Cm, P), lambda i: (i, 0, 0)),    # mask
            pl.BlockSpec((tb, S, E), lambda i: (i, 0, 0)),     # token embeddings
            _wspec((C, Cv)),                                   # img_w
            _wspec((1, Cv)),                                   # img_b
            _wspec((Cv, Hd)),                                  # att_wv
            _wspec((E, Q)),                                    # txt_w
            _wspec((1, Q)),                                    # txt_b
            _wspec((Q, Hd)),                                   # att_wq
            _wspec((G, Hd)),                                   # att_wg^T
            _wspec((G, Cv, CH)),                               # cls_w1 (visual)
            _wspec((Q, CH)),                                   # cls_w1 (question)
            _wspec((1, CH)),                                   # cls_b1
            _wspec((CH, A_pad)),                               # cls_w2 (padded)
            _wspec((1, A_pad)),                                # cls_b2 (padded)
        ],
        out_specs=(
            pl.BlockSpec((tb, A_pad), lambda i: (i, 0)),       # dense 2-D logits
            pl.BlockSpec((tb, G, P), lambda i: (i, 0, 0)),     # attention maps
        ),
        scratch_shapes=[pltpu.VMEM((tb, G, Cv), jnp.float32)],
        compiler_params=cparams,
    )(v3, m3, emb,
      prep['img_w'], prep['img_b'], prep['att_wv'],
      prep['txt_w'], prep['txt_b'], prep['att_wq'], prep['att_wgT'],
      prep['cls_w1v'], prep['cls_w1q'], prep['cls_b1'],
      prep['cls_w2'], prep['cls_b2'])

    logits = logits_pad[:N, :n_answers]
    maps = maps_pad[:N].reshape(N, G, H, W)
    return logits, maps


# ----------------------------------------------------------------------------
# Pure-JAX f32 reference (same synthetic SQuINT submodules) for validation.
# ----------------------------------------------------------------------------
def reference_forward(v, q_tokens, m, params):
    N, C, H, W = v.shape
    P = H * W
    G = params['att_wg'].shape[1]
    x = (v * m).reshape(N, C, P)
    feat = jnp.einsum('ncp,cd->npd', x, params['img_w']) + params['img_b']
    feat = jnp.maximum(feat, 0.0)                                       # (N,P,Cv)
    emb = params['emb'][q_tokens]
    q = jnp.tanh(jnp.mean(emb, axis=1) @ params['txt_w'] + params['txt_b'])
    joint = jnp.tanh(jnp.einsum('npd,dh->nph', feat, params['att_wv'])
                     + (q @ params['att_wq'])[:, None, :])
    logits_att = jnp.einsum('nph,hg->npg', joint, params['att_wg'])
    maps = jax.nn.softmax(logits_att, axis=1)                           # over P
    att = jnp.einsum('npg,npd->ngd', maps, feat)                        # (N,G,Cv)
    fused = jnp.concatenate([att.reshape(N, -1), q], axis=-1)
    h = jnp.maximum(fused @ params['cls_w1'] + params['cls_b1'], 0.0)
    out = h @ params['cls_w2'] + params['cls_b2']
    maps_out = jnp.transpose(maps, (0, 2, 1)).reshape(N, G, H, W)
    return out, maps_out


def make_params(key, c_in, c_v, emb_dim, q_dim, hid_att, glimpses,
                vocab, cls_hidden, n_answers):
    ks = jax.random.split(key, 10)
    s = lambda k, shape, scale=0.1: scale * jax.random.normal(k, shape, jnp.float32)
    return {
        'img_w': s(ks[0], (c_in, c_v)),
        'img_b': s(ks[1], (c_v,)),
        'emb':   s(ks[2], (vocab, emb_dim)),
        'txt_w': s(ks[3], (emb_dim, q_dim)),
        'txt_b': s(ks[4], (q_dim,)),
        'att_wv': s(ks[5], (c_v, hid_att)),
        'att_wq': s(ks[6], (q_dim, hid_att)),
        'att_wg': s(ks[7], (hid_att, glimpses)),
        'cls_w1': s(ks[8], (glimpses * c_v + q_dim, cls_hidden)),
        'cls_b1': jnp.zeros((cls_hidden,), jnp.float32),
        'cls_w2': s(ks[9], (cls_hidden, n_answers)),
        'cls_b2': jnp.zeros((n_answers,), jnp.float32),
    }


if __name__ == "__main__":
    key = jax.random.PRNGKey(0)
    k_v, k_m, k_q, k_p = jax.random.split(key, 4)

    # small config
    N, C_in, H, W = 2, 4, 16, 16
    C_v, Q_dim, EMB, HID_ATT, G = 32, 32, 16, 32, 2
    VOCAB, SEQ, CLS_HID, N_ANS = 20, 8, 64, 10

    v = jax.random.normal(k_v, (N, C_in, H, W), jnp.float32)          # NCHW
    m = (jax.random.uniform(k_m, (N, 1, H, W)) > 0.3).astype(jnp.float32)
    q_tokens = jax.random.randint(k_q, (N, SEQ), 0, VOCAB)

    params = make_params(k_p, C_in, C_v, EMB, Q_dim, HID_ATT, G,
                         VOCAB, CLS_HID, N_ANS)
    prep = prepare_params(params)      # one-time weight prep (hoisted)

    fwd = jax.jit(functools.partial(squint_forward, n_answers=N_ANS))
    try:
        logits, maps = fwd(v, q_tokens, m, prep)
        jax.block_until_ready(logits)
        jax.block_until_ready(maps)
    except Exception:
        # Fallback for runtimes without single-buffered (Buffered(1)) weight
        # BlockSpecs: identical kernel with default double-buffering.
        fwd = jax.jit(functools.partial(squint_forward, n_answers=N_ANS,
                                        single_buffer_weights=False))
        logits, maps = fwd(v, q_tokens, m, prep)
        jax.block_until_ready(logits)
        jax.block_until_ready(maps)

    assert logits.shape == (N, N_ANS)
    assert maps.shape == (N, G, H, W)
    # attention maps are a spatial softmax -> each glimpse sums to ~1
    sums = jnp.sum(maps.reshape(N, G, H * W), axis=-1)
    assert bool(jnp.all(jnp.abs(sums - 1.0) < 2e-2))
    # loose check against a pure-JAX f32 reference (kernel uses bf16 matmuls)
    ref_logits, ref_maps = reference_forward(v, q_tokens, m, params)
    assert bool(jnp.all(jnp.abs(maps - ref_maps) < 1e-2))
    assert bool(jnp.all(jnp.abs(logits - ref_logits) < 2e-2))

    print("KERNEL_OK")
</pallas_src>

<mosaic_0001>
module attributes {stable_mosaic.version = 11 : i64} {
  func.func @kernel(%arg0: i32, %arg1: memref<2x4x256xf32, #tpu.memory_space<vmem>>, %arg2: memref<2x1x256xf32, #tpu.memory_space<vmem>>, %arg3: memref<2x8x16xf32, #tpu.memory_space<vmem>>, %arg4: memref<4x32xbf16, #tpu.memory_space<vmem>>, %arg5: memref<1x32xf32, #tpu.memory_space<vmem>>, %arg6: memref<32x32xbf16, #tpu.memory_space<vmem>>, %arg7: memref<16x32xbf16, #tpu.memory_space<vmem>>, %arg8: memref<1x32xf32, #tpu.memory_space<vmem>>, %arg9: memref<32x32xbf16, #tpu.memory_space<vmem>>, %arg10: memref<2x32xbf16, #tpu.memory_space<vmem>>, %arg11: memref<2x32x64xbf16, #tpu.memory_space<vmem>>, %arg12: memref<32x64xbf16, #tpu.memory_space<vmem>>, %arg13: memref<1x64xf32, #tpu.memory_space<vmem>>, %arg14: memref<64x128xbf16, #tpu.memory_space<vmem>>, %arg15: memref<1x128xf32, #tpu.memory_space<vmem>>, %arg16: memref<2x128xf32, #tpu.memory_space<vmem>>, %arg17: memref<2x2x256xf32, #tpu.memory_space<vmem>>, %arg18: memref<2x2x32xf32, #tpu.memory_space<vmem>>) attributes {dimension_semantics = [#tpu.dimension_semantics<parallel>], iteration_bounds = array<i64: 1>, scalar_prefetch = 0 : i64, scratch_operands = 1 : i64, tpu.core_type = #tpu.core_type<tc>, window_params = [{transform_indices = @transform_0, window_bounds = array<i64: 2, 4, 256>}, {transform_indices = @transform_1, window_bounds = array<i64: 2, 1, 256>}, {transform_indices = @transform_2, window_bounds = array<i64: 2, 8, 16>}, {pipeline_mode = #tpu.pipeline_mode<synchronous>, transform_indices = @transform_3, window_bounds = array<i64: 4, 32>}, {pipeline_mode = #tpu.pipeline_mode<synchronous>, transform_indices = @transform_4, window_bounds = array<i64: 1, 32>}, {pipeline_mode = #tpu.pipeline_mode<synchronous>, transform_indices = @transform_5, window_bounds = array<i64: 32, 32>}, {pipeline_mode = #tpu.pipeline_mode<synchronous>, transform_indices = @transform_6, window_bounds = array<i64: 16, 32>}, {pipeline_mode = #tpu.pipeline_mode<synchronous>, transform_indices = @transform_7, window_bounds = array<i64: 1, 32>}, {pipeline_mode = #tpu.pipeline_mode<synchronous>, transform_indices = @transform_8, window_bounds = array<i64: 32, 32>}, {pipeline_mode = #tpu.pipeline_mode<synchronous>, transform_indices = @transform_9, window_bounds = array<i64: 2, 32>}, {pipeline_mode = #tpu.pipeline_mode<synchronous>, transform_indices = @transform_10, window_bounds = array<i64: 2, 32, 64>}, {pipeline_mode = #tpu.pipeline_mode<synchronous>, transform_indices = @transform_11, window_bounds = array<i64: 32, 64>}, {pipeline_mode = #tpu.pipeline_mode<synchronous>, transform_indices = @transform_12, window_bounds = array<i64: 1, 64>}, {pipeline_mode = #tpu.pipeline_mode<synchronous>, transform_indices = @transform_13, window_bounds = array<i64: 64, 128>}, {pipeline_mode = #tpu.pipeline_mode<synchronous>, transform_indices = @transform_14, window_bounds = array<i64: 1, 128>}, {transform_indices = @transform_15, window_bounds = array<i64: 2, 128>}, {transform_indices = @transform_16, window_bounds = array<i64: 2, 2, 256>}]} {
    %c0 = arith.constant 0 : index
    %c0_0 = arith.constant 0 : index
    %c0_1 = arith.constant 0 : index
    %0 = vector.load %arg3[%c0, %c0_0, %c0_1] : memref<2x8x16xf32, #tpu.memory_space<vmem>>, vector<2x8x16xf32>
    %cst = arith.constant dense<0.000000e+00> : vector<2x16xf32>
    %1 = vector.multi_reduction <add>, %0, %cst [1] : vector<2x8x16xf32> to vector<2x16xf32>
    %cst_2 = arith.constant 8.000000e+00 : f32
    %2 = vector.broadcast %cst_2 : f32 to vector<2x16xf32>
    %3 = arith.divf %1, %2 : vector<2x16xf32>
    %4 = arith.truncf %3 : vector<2x16xf32> to vector<2x16xbf16>
    %c0_3 = arith.constant 0 : index
    %c0_4 = arith.constant 0 : index
    %5 = vector.load %arg7[%c0_3, %c0_4] : memref<16x32xbf16, #tpu.memory_space<vmem>>, vector<16x32xbf16>
    %cst_5 = arith.constant dense<0.000000e+00> : vector<2x32xf32>
    %6 = tpu.matmul %4, %5, %cst_5 {dimension_numbers = #tpu.dot_dimension_numbers<[1], [0], [0], [1], [0, 0, 1, 1], [], []>} : vector<2x16xbf16>, vector<16x32xbf16>, vector<2x32xf32> -> vector<2x32xf32>
    %c0_6 = arith.constant 0 : index
    %c0_7 = arith.constant 0 : index
    %7 = vector.load %arg8[%c0_6, %c0_7] : memref<1x32xf32, #tpu.memory_space<vmem>>, vector<1x32xf32>
    %8 = vector.broadcast %7 : vector<1x32xf32> to vector<2x32xf32>
    %9 = arith.addf %6, %8 : vector<2x32xf32>
    %10 = math.tanh %9 : vector<2x32xf32>
    %11 = arith.truncf %10 : vector<2x32xf32> to vector<2x32xbf16>
    %c0_8 = arith.constant 0 : index
    %c0_9 = arith.constant 0 : index
    %12 = vector.load %arg9[%c0_8, %c0_9] : memref<32x32xbf16, #tpu.memory_space<vmem>>, vector<32x32xbf16>
    %cst_10 = arith.constant dense<0.000000e+00> : vector<2x32xf32>
    %13 = tpu.matmul %11, %12, %cst_10 {dimension_numbers = #tpu.dot_dimension_numbers<[1], [0], [0], [1], [0, 0, 1, 1], [], []>} : vector<2x32xbf16>, vector<32x32xbf16>, vector<2x32xf32> -> vector<2x32xf32>
    %c0_11 = arith.constant 0 : index
    %c0_12 = arith.constant 0 : index
    %14 = vector.load %arg10[%c0_11, %c0_12] : memref<2x32xbf16, #tpu.memory_space<vmem>>, vector<2x32xbf16>
    %c0_13 = arith.constant 0 : index
    %c0_14 = arith.constant 0 : index
    %c0_15 = arith.constant 0 : index
    %15 = vector.load %arg1[%c0_13, %c0_14, %c0_15] : memref<2x4x256xf32, #tpu.memory_space<vmem>>, vector<1x4x256xf32>
    %16 = vector.shape_cast %15 : vector<1x4x256xf32> to vector<4x256xf32>
    %c0_16 = arith.constant 0 : index
    %c0_17 = arith.constant 0 : index
    %c0_18 = arith.constant 0 : index
    %17 = vector.load %arg2[%c0_16, %c0_17, %c0_18] : memref<2x1x256xf32, #tpu.memory_space<vmem>>, vector<1x1x256xf32>
    %18 = vector.shape_cast %17 : vector<1x1x256xf32> to vector<1x256xf32>
    %19 = vector.broadcast %18 : vector<1x256xf32> to vector<4x256xf32>
    %20 = arith.mulf %16, %19 : vector<4x256xf32>
    %21 = arith.truncf %20 : vector<4x256xf32> to vector<4x256xbf16>
    %c0_19 = arith.constant 0 : index
    %c0_20 = arith.constant 0 : index
    %22 = vector.load %arg4[%c0_19, %c0_20] : memref<4x32xbf16, #tpu.memory_space<vmem>>, vector<4x32xbf16>
    "tpu.trace_start"() <{level = 10 : i32, message = "cp,cv->pv"}> : () -> ()
    %cst_21 = arith.constant dense<0.000000e+00> : vector<256x32xf32>
    %23 = tpu.matmul %21, %22, %cst_21 {dimension_numbers = #tpu.dot_dimension_numbers<[0], [0], [1], [1], [0, 1, 1, 1], [], []>} : vector<4x256xbf16>, vector<4x32xbf16>, vector<256x32xf32> -> vector<256x32xf32>
    "tpu.trace_stop"() : () -> ()
    %c0_22 = arith.constant 0 : index
    %c0_23 = arith.constant 0 : index
    %24 = vector.load %arg5[%c0_22, %c0_23] : memref<1x32xf32, #tpu.memory_space<vmem>>, vector<1x32xf32>
    %25 = vector.broadcast %24 : vector<1x32xf32> to vector<256x32xf32>
    %26 = arith.addf %23, %25 : vector<256x32xf32>
    %cst_24 = arith.constant 0.000000e+00 : f32
    %27 = vector.broadcast %cst_24 : f32 to vector<256x32xf32>
    %28 = arith.maximumf %26, %27 : vector<256x32xf32>
    %29 = arith.truncf %28 : vector<256x32xf32> to vector<256x32xbf16>
    %c0_25 = arith.constant 0 : index
    %c0_26 = arith.constant 0 : index
    %30 = vector.load %arg6[%c0_25, %c0_26] : memref<32x32xbf16, #tpu.memory_space<vmem>>, vector<32x32xbf16>
    %cst_27 = arith.constant dense<0.000000e+00> : vector<256x32xf32>
    %31 = tpu.matmul %29, %30, %cst_27 {dimension_numbers = #tpu.dot_dimension_numbers<[1], [0], [0], [1], [0, 0, 1, 1], [], []>} : vector<256x32xbf16>, vector<32x32xbf16>, vector<256x32xf32> -> vector<256x32xf32>
    %32 = vector.extract_strided_slice %13 {offsets = [0, 0], sizes = [1, 32], strides = [1, 1]} : vector<2x32xf32> to vector<1x32xf32>
    %33 = vector.broadcast %32 : vector<1x32xf32> to vector<256x32xf32>
    %34 = arith.addf %31, %33 : vector<256x32xf32>
    %35 = math.tanh %34 : vector<256x32xf32>
    %36 = arith.truncf %35 : vector<256x32xf32> to vector<256x32xbf16>
    "tpu.trace_start"() <{level = 10 : i32, message = "gh,ph->gp"}> : () -> ()
    %cst_28 = arith.constant dense<0.000000e+00> : vector<2x256xf32>
    %37 = tpu.matmul %14, %36, %cst_28 {dimension_numbers = #tpu.dot_dimension_numbers<[1], [1], [0], [0], [0, 0, 1, 0], [], []>} : vector<2x32xbf16>, vector<256x32xbf16>, vector<2x256xf32> -> vector<2x256xf32>
    "tpu.trace_stop"() : () -> ()
    %cst_29 = arith.constant dense<0xFF800000> : vector<2xf32>
    %38 = vector.multi_reduction <maximumf>, %37, %cst_29 [1] : vector<2x256xf32> to vector<2xf32>
    %39 = vector.shape_cast %38 : vector<2xf32> to vector<2x1xf32>
    %40 = vector.broadcast %39 : vector<2x1xf32> to vector<2x256xf32>
    %41 = arith.subf %37, %40 : vector<2x256xf32>
    %42 = math.exp %41 : vector<2x256xf32>
    %cst_30 = arith.constant dense<0.000000e+00> : vector<2xf32>
    %43 = vector.multi_reduction <add>, %42, %cst_30 [1] : vector<2x256xf32> to vector<2xf32>
    %44 = vector.shape_cast %43 : vector<2xf32> to vector<2x1xf32>
    %45 = tpu.reciprocal %44 {approx = true} : vector<2x1xf32> -> vector<2x1xf32>
    %46 = vector.broadcast %45 : vector<2x1xf32> to vector<2x256xf32>
    %47 = arith.mulf %42, %46 : vector<2x256xf32>
    %c0_31 = arith.constant 0 : index
    %c0_32 = arith.constant 0 : index
    %c0_33 = arith.constant 0 : index
    %48 = vector.load %arg17[%c0_31, %c0_32, %c0_33] : memref<2x2x256xf32, #tpu.memory_space<vmem>>, vector<1x2x256xf32>
    %49 = vector.shape_cast %48 : vector<1x2x256xf32> to vector<2x256xf32>
    %50 = vector.shape_cast %47 : vector<2x256xf32> to vector<1x2x256xf32>
    tpu.vector_store %arg17[%c0_31, %c0_32, %c0_33], %50 {strides = array<i32>} : memref<2x2x256xf32, #tpu.memory_space<vmem>>, vector<1x2x256xf32>,
    %51 = arith.truncf %47 : vector<2x256xf32> to vector<2x256xbf16>
    %cst_34 = arith.constant dense<0.000000e+00> : vector<2x32xf32>
    %52 = tpu.matmul %51, %29, %cst_34 {dimension_numbers = #tpu.dot_dimension_numbers<[1], [0], [0], [1], [0, 0, 1, 1], [], []>} : vector<2x256xbf16>, vector<256x32xbf16>, vector<2x32xf32> -> vector<2x32xf32>
    %c0_35 = arith.constant 0 : index
    %c0_36 = arith.constant 0 : index
    %c0_37 = arith.constant 0 : index
    %53 = vector.load %arg18[%c0_35, %c0_36, %c0_37] : memref<2x2x32xf32, #tpu.memory_space<vmem>>, vector<1x2x32xf32>
    %54 = vector.shape_cast %53 : vector<1x2x32xf32> to vector<2x32xf32>
    %55 = vector.shape_cast %52 : vector<2x32xf32> to vector<1x2x32xf32>
    tpu.vector_store %arg18[%c0_35, %c0_36, %c0_37], %55 {strides = array<i32>} : memref<2x2x32xf32, #tpu.memory_space<vmem>>, vector<1x2x32xf32>,
    %c1 = arith.constant 1 : index
    %c0_38 = arith.constant 0 : index
    %c0_39 = arith.constant 0 : index
    %56 = vector.load %arg1[%c1, %c0_38, %c0_39] : memref<2x4x256xf32, #tpu.memory_space<vmem>>, vector<1x4x256xf32>
    %57 = vector.shape_cast %56 : vector<1x4x256xf32> to vector<4x256xf32>
    %c1_40 = arith.constant 1 : index
    %c0_41 = arith.constant 0 : index
    %c0_42 = arith.constant 0 : index
    %58 = vector.load %arg2[%c1_40, %c0_41, %c0_42] : memref<2x1x256xf32, #tpu.memory_space<vmem>>, vector<1x1x256xf32>
    %59 = vector.shape_cast %58 : vector<1x1x256xf32> to vector<1x256xf32>
    %60 = vector.broadcast %59 : vector<1x256xf32> to vector<4x256xf32>
    %61 = arith.mulf %57, %60 : vector<4x256xf32>
    %62 = arith.truncf %61 : vector<4x256xf32> to vector<4x256xbf16>
    %c0_43 = arith.constant 0 : index
    %c0_44 = arith.constant 0 : index
    %63 = vector.load %arg4[%c0_43, %c0_44] : memref<4x32xbf16, #tpu.memory_space<vmem>>, vector<4x32xbf16>
    "tpu.trace_start"() <{level = 10 : i32, message = "cp,cv->pv"}> : () -> ()
    %cst_45 = arith.constant dense<0.000000e+00> : vector<256x32xf32>
    %64 = tpu.matmul %62, %63, %cst_45 {dimension_numbers = #tpu.dot_dimension_numbers<[0], [0], [1], [1], [0, 1, 1, 1], [], []>} : vector<4x256xbf16>, vector<4x32xbf16>, vector<256x32xf32> -> vector<256x32xf32>
    "tpu.trace_stop"() : () -> ()
    %c0_46 = arith.constant 0 : index
    %c0_47 = arith.constant 0 : index
    %65 = vector.load %arg5[%c0_46, %c0_47] : memref<1x32xf32, #tpu.memory_space<vmem>>, vector<1x32xf32>
    %66 = vector.broadcast %65 : vector<1x32xf32> to vector<256x32xf32>
    %67 = arith.addf %64, %66 : vector<256x32xf32>
    %cst_48 = arith.constant 0.000000e+00 : f32
    %68 = vector.broadcast %cst_48 : f32 to vector<256x32xf32>
    %69 = arith.maximumf %67, %68 : vector<256x32xf32>
    %70 = arith.truncf %69 : vector<256x32xf32> to vector<256x32xbf16>
    %c0_49 = arith.constant 0 : index
    %c0_50 = arith.constant 0 : index
    %71 = vector.load %arg6[%c0_49, %c0_50] : memref<32x32xbf16, #tpu.memory_space<vmem>>, vector<32x32xbf16>
    %cst_51 = arith.constant dense<0.000000e+00> : vector<256x32xf32>
    %72 = tpu.matmul %70, %71, %cst_51 {dimension_numbers = #tpu.dot_dimension_numbers<[1], [0], [0], [1], [0, 0, 1, 1], [], []>} : vector<256x32xbf16>, vector<32x32xbf16>, vector<256x32xf32> -> vector<256x32xf32>
    %73 = vector.extract_strided_slice %13 {offsets = [1, 0], sizes = [1, 32], strides = [1, 1]} : vector<2x32xf32> to vector<1x32xf32>
    %74 = vector.broadcast %73 : vector<1x32xf32> to vector<256x32xf32>
    %75 = arith.addf %72, %74 : vector<256x32xf32>
    %76 = math.tanh %75 : vector<256x32xf32>
    %77 = arith.truncf %76 : vector<256x32xf32> to vector<256x32xbf16>
    "tpu.trace_start"() <{level = 10 : i32, message = "gh,ph->gp"}> : () -> ()
    %cst_52 = arith.constant dense<0.000000e+00> : vector<2x256xf32>
    %78 = tpu.matmul %14, %77, %cst_52 {dimension_numbers = #tpu.dot_dimension_numbers<[1], [1], [0], [0], [0, 0, 1, 0], [], []>} : vector<2x32xbf16>, vector<256x32xbf16>, vector<2x256xf32> -> vector<2x256xf32>
    "tpu.trace_stop"() : () -> ()
    %cst_53 = arith.constant dense<0xFF800000> : vector<2xf32>
    %79 = vector.multi_reduction <maximumf>, %78, %cst_53 [1] : vector<2x256xf32> to vector<2xf32>
    %80 = vector.shape_cast %79 : vector<2xf32> to vector<2x1xf32>
    %81 = vector.broadcast %80 : vector<2x1xf32> to vector<2x256xf32>
    %82 = arith.subf %78, %81 : vector<2x256xf32>
    %83 = math.exp %82 : vector<2x256xf32>
    %cst_54 = arith.constant dense<0.000000e+00> : vector<2xf32>
    %84 = vector.multi_reduction <add>, %83, %cst_54 [1] : vector<2x256xf32> to vector<2xf32>
    %85 = vector.shape_cast %84 : vector<2xf32> to vector<2x1xf32>
    %86 = tpu.reciprocal %85 {approx = true} : vector<2x1xf32> -> vector<2x1xf32>
    %87 = vector.broadcast %86 : vector<2x1xf32> to vector<2x256xf32>
    %88 = arith.mulf %83, %87 : vector<2x256xf32>
    %c1_55 = arith.constant 1 : index
    %c0_56 = arith.constant 0 : index
    %c0_57 = arith.constant 0 : index
    %89 = vector.load %arg17[%c1_55, %c0_56, %c0_57] : memref<2x2x256xf32, #tpu.memory_space<vmem>>, vector<1x2x256xf32>
    %90 = vector.shape_cast %89 : vector<1x2x256xf32> to vector<2x256xf32>
    %91 = vector.shape_cast %88 : vector<2x256xf32> to vector<1x2x256xf32>
    tpu.vector_store %arg17[%c1_55, %c0_56, %c0_57], %91 {strides = array<i32>} : memref<2x2x256xf32, #tpu.memory_space<vmem>>, vector<1x2x256xf32>,
    %92 = arith.truncf %88 : vector<2x256xf32> to vector<2x256xbf16>
    %cst_58 = arith.constant dense<0.000000e+00> : vector<2x32xf32>
    %93 = tpu.matmul %92, %70, %cst_58 {dimension_numbers = #tpu.dot_dimension_numbers<[1], [0], [0], [1], [0, 0, 1, 1], [], []>} : vector<2x256xbf16>, vector<256x32xbf16>, vector<2x32xf32> -> vector<2x32xf32>
    %c1_59 = arith.constant 1 : index
    %c0_60 = arith.constant 0 : index
    %c0_61 = arith.constant 0 : index
    %94 = vector.load %arg18[%c1_59, %c0_60, %c0_61] : memref<2x2x32xf32, #tpu.memory_space<vmem>>, vector<1x2x32xf32>
    %95 = vector.shape_cast %94 : vector<1x2x32xf32> to vector<2x32xf32>
    %96 = vector.shape_cast %93 : vector<2x32xf32> to vector<1x2x32xf32>
    tpu.vector_store %arg18[%c1_59, %c0_60, %c0_61], %96 {strides = array<i32>} : memref<2x2x32xf32, #tpu.memory_space<vmem>>, vector<1x2x32xf32>,
    %c0_62 = arith.constant 0 : index
    %c0_63 = arith.constant 0 : index
    %c0_64 = arith.constant 0 : index
    %97 = vector.load %arg18[%c0_62, %c0_63, %c0_64] : memref<2x2x32xf32, #tpu.memory_space<vmem>>, vector<2x2x32xf32>
    %98 = arith.truncf %10 : vector<2x32xf32> to vector<2x32xbf16>
    %c0_65 = arith.constant 0 : index
    %c0_66 = arith.constant 0 : index
    %99 = vector.load %arg12[%c0_65, %c0_66] : memref<32x64xbf16, #tpu.memory_space<vmem>>, vector<32x64xbf16>
    %cst_67 = arith.constant dense<0.000000e+00> : vector<2x64xf32>
    %100 = tpu.matmul %98, %99, %cst_67 {dimension_numbers = #tpu.dot_dimension_numbers<[1], [0], [0], [1], [0, 0, 1, 1], [], []>} : vector<2x32xbf16>, vector<32x64xbf16>, vector<2x64xf32> -> vector<2x64xf32>
    %c0_68 = arith.constant 0 : index
    %c0_69 = arith.constant 0 : index
    %101 = vector.load %arg13[%c0_68, %c0_69] : memref<1x64xf32, #tpu.memory_space<vmem>>, vector<1x64xf32>
    %102 = vector.broadcast %101 : vector<1x64xf32> to vector<2x64xf32>
    %103 = arith.addf %100, %102 : vector<2x64xf32>
    %104 = vector.extract_strided_slice %97 {offsets = [0, 0, 0], sizes = [2, 1, 32], strides = [1, 1, 1]} : vector<2x2x32xf32> to vector<2x1x32xf32>
    %105 = vector.shape_cast %104 : vector<2x1x32xf32> to vector<2x32xf32>
    %106 = arith.truncf %105 : vector<2x32xf32> to vector<2x32xbf16>
    %c0_70 = arith.constant 0 : index
    %c0_71 = arith.constant 0 : index
    %c0_72 = arith.constant 0 : index
    %107 = vector.load %arg11[%c0_70, %c0_71, %c0_72] : memref<2x32x64xbf16, #tpu.memory_space<vmem>>, vector<1x32x64xbf16>
    %108 = vector.shape_cast %107 : vector<1x32x64xbf16> to vector<32x64xbf16>
    %cst_73 = arith.constant dense<0.000000e+00> : vector<2x64xf32>
    %109 = tpu.matmul %106, %108, %cst_73 {dimension_numbers = #tpu.dot_dimension_numbers<[1], [0], [0], [1], [0, 0, 1, 1], [], []>} : vector<2x32xbf16>, vector<32x64xbf16>, vector<2x64xf32> -> vector<2x64xf32>
    %110 = arith.addf %103, %109 : vector<2x64xf32>
    %111 = vector.extract_strided_slice %97 {offsets = [0, 1, 0], sizes = [2, 1, 32], strides = [1, 1, 1]} : vector<2x2x32xf32> to vector<2x1x32xf32>
    %112 = vector.shape_cast %111 : vector<2x1x32xf32> to vector<2x32xf32>
    %113 = arith.truncf %112 : vector<2x32xf32> to vector<2x32xbf16>
    %c1_74 = arith.constant 1 : index
    %c0_75 = arith.constant 0 : index
    %c0_76 = arith.constant 0 : index
    %114 = vector.load %arg11[%c1_74, %c0_75, %c0_76] : memref<2x32x64xbf16, #tpu.memory_space<vmem>>, vector<1x32x64xbf16>
    %115 = vector.shape_cast %114 : vector<1x32x64xbf16> to vector<32x64xbf16>
    %cst_77 = arith.constant dense<0.000000e+00> : vector<2x64xf32>
    %116 = tpu.matmul %113, %115, %cst_77 {dimension_numbers = #tpu.dot_dimension_numbers<[1], [0], [0], [1], [0, 0, 1, 1], [], []>} : vector<2x32xbf16>, vector<32x64xbf16>, vector<2x64xf32> -> vector<2x64xf32>
    %117 = arith.addf %110, %116 : vector<2x64xf32>
    %cst_78 = arith.constant 0.000000e+00 : f32
    %118 = vector.broadcast %cst_78 : f32 to vector<2x64xf32>
    %119 = arith.maximumf %117, %118 : vector<2x64xf32>
    %120 = arith.truncf %119 : vector<2x64xf32> to vector<2x64xbf16>
    %c0_79 = arith.constant 0 : index
    %c0_80 = arith.constant 0 : index
    %121 = vector.load %arg14[%c0_79, %c0_80] : memref<64x128xbf16, #tpu.memory_space<vmem>>, vector<64x128xbf16>
    %cst_81 = arith.constant dense<0.000000e+00> : vector<2x128xf32>
    %122 = tpu.matmul %120, %121, %cst_81 {dimension_numbers = #tpu.dot_dimension_numbers<[1], [0], [0], [1], [0, 0, 1, 1], [], []>} : vector<2x64xbf16>, vector<64x128xbf16>, vector<2x128xf32> -> vector<2x128xf32>
    %c0_82 = arith.constant 0 : index
    %c0_83 = arith.constant 0 : index
    %123 = vector.load %arg15[%c0_82, %c0_83] : memref<1x128xf32, #tpu.memory_space<vmem>>, vector<1x128xf32>
    %124 = vector.broadcast %123 : vector<1x128xf32> to vector<2x128xf32>
    %125 = arith.addf %122, %124 : vector<2x128xf32>
    %c0_84 = arith.constant 0 : index
    %c0_85 = arith.constant 0 : index
    %126 = vector.load %arg16[%c0_84, %c0_85] : memref<2x128xf32, #tpu.memory_space<vmem>>, vector<2x128xf32>
    tpu.vector_store %arg16[%c0_84, %c0_85], %125 {strides = array<i32>} : memref<2x128xf32, #tpu.memory_space<vmem>>, vector<2x128xf32>,
    return
  }
  func.func @transform_0(%arg0: i32) -> (i32, i32, i32) {
    %c0_i32 = arith.constant 0 : i32
    %c0_i32_0 = arith.constant 0 : i32
    %c0_i32_1 = arith.constant 0 : i32
    return %arg0, %c0_i32, %c0_i32_0 : i32, i32, i32
  }
  func.func @transform_1(%arg0: i32) -> (i32, i32, i32) {
    %c0_i32 = arith.constant 0 : i32
    %c0_i32_0 = arith.constant 0 : i32
    %c0_i32_1 = arith.constant 0 : i32
    return %arg0, %c0_i32, %c0_i32_0 : i32, i32, i32
  }
  func.func @transform_2(%arg0: i32) -> (i32, i32, i32) {
    %c0_i32 = arith.constant 0 : i32
    %c0_i32_0 = arith.constant 0 : i32
    %c0_i32_1 = arith.constant 0 : i32
    return %arg0, %c0_i32, %c0_i32_0 : i32, i32, i32
  }
  func.func @transform_3(%arg0: i32) -> (i32, i32) {
    %c0_i32 = arith.constant 0 : i32
    %c0_i32_0 = arith.constant 0 : i32
    %c0_i32_1 = arith.constant 0 : i32
    return %c0_i32, %c0_i32_0 : i32, i32
  }
  func.func @transform_4(%arg0: i32) -> (i32, i32) {
    %c0_i32 = arith.constant 0 : i32
    %c0_i32_0 = arith.constant 0 : i32
    %c0_i32_1 = arith.constant 0 : i32
    return %c0_i32, %c0_i32_0 : i32, i32
  }
  func.func @transform_5(%arg0: i32) -> (i32, i32) {
    %c0_i32 = arith.constant 0 : i32
    %c0_i32_0 = arith.constant 0 : i32
    %c0_i32_1 = arith.constant 0 : i32
    return %c0_i32, %c0_i32_0 : i32, i32
  }
  func.func @transform_6(%arg0: i32) -> (i32, i32) {
    %c0_i32 = arith.constant 0 : i32
    %c0_i32_0 = arith.constant 0 : i32
    %c0_i32_1 = arith.constant 0 : i32
    return %c0_i32, %c0_i32_0 : i32, i32
  }
  func.func @transform_7(%arg0: i32) -> (i32, i32) {
    %c0_i32 = arith.constant 0 : i32
    %c0_i32_0 = arith.constant 0 : i32
    %c0_i32_1 = arith.constant 0 : i32
    return %c0_i32, %c0_i32_0 : i32, i32
  }
  func.func @transform_8(%arg0: i32) -> (i32, i32) {
    %c0_i32 = arith.constant 0 : i32
    %c0_i32_0 = arith.constant 0 : i32
    %c0_i32_1 = arith.constant 0 : i32
    return %c0_i32, %c0_i32_0 : i32, i32
  }
  func.func @transform_9(%arg0: i32) -> (i32, i32) {
    %c0_i32 = arith.constant 0 : i32
    %c0_i32_0 = arith.constant 0 : i32
    %c0_i32_1 = arith.constant 0 : i32
    return %c0_i32, %c0_i32_0 : i32, i32
  }
  func.func @transform_10(%arg0: i32) -> (i32, i32, i32) {
    %c0_i32 = arith.constant 0 : i32
    %c0_i32_0 = arith.constant 0 : i32
    %c0_i32_1 = arith.constant 0 : i32
    %c0_i32_2 = arith.constant 0 : i32
    return %c0_i32, %c0_i32_0, %c0_i32_1 : i32, i32, i32
  }
  func.func @transform_11(%arg0: i32) -> (i32, i32) {
    %c0_i32 = arith.constant 0 : i32
    %c0_i32_0 = arith.constant 0 : i32
    %c0_i32_1 = arith.constant 0 : i32
    return %c0_i32, %c0_i32_0 : i32, i32
  }
  func.func @transform_12(%arg0: i32) -> (i32, i32) {
    %c0_i32 = arith.constant 0 : i32
    %c0_i32_0 = arith.constant 0 : i32
    %c0_i32_1 = arith.constant 0 : i32
    return %c0_i32, %c0_i32_0 : i32, i32
  }
  func.func @transform_13(%arg0: i32) -> (i32, i32) {
    %c0_i32 = arith.constant 0 : i32
    %c0_i32_0 = arith.constant 0 : i32
    %c0_i32_1 = arith.constant 0 : i32
    return %c0_i32, %c0_i32_0 : i32, i32
  }
  func.func @transform_14(%arg0: i32) -> (i32, i32) {
    %c0_i32 = arith.constant 0 : i32
    %c0_i32_0 = arith.constant 0 : i32
    %c0_i32_1 = arith.constant 0 : i32
    return %c0_i32, %c0_i32_0 : i32, i32
  }
  func.func @transform_15(%arg0: i32) -> (i32, i32) {
    %c0_i32 = arith.constant 0 : i32
    %c0_i32_0 = arith.constant 0 : i32
    return %arg0, %c0_i32 : i32, i32
  }
  func.func @transform_16(%arg0: i32) -> (i32, i32, i32) {
    %c0_i32 = arith.constant 0 : i32
    %c0_i32_0 = arith.constant 0 : i32
    %c0_i32_1 = arith.constant 0 : i32
    return %arg0, %c0_i32, %c0_i32_0 : i32, i32, i32
  }
}

module attributes {stable_mosaic.version = 11 : i64} {
  func.func @kernel(%arg0: i32, %arg1: memref<2x4x256xf32, #tpu.memory_space<vmem>>, %arg2: memref<2x1x256xf32, #tpu.memory_space<vmem>>, %arg3: memref<2x8x16xf32, #tpu.memory_space<vmem>>, %arg4: memref<4x32xbf16, #tpu.memory_space<vmem>>, %arg5: memref<1x32xf32, #tpu.memory_space<vmem>>, %arg6: memref<32x32xbf16, #tpu.memory_space<vmem>>, %arg7: memref<16x32xbf16, #tpu.memory_space<vmem>>, %arg8: memref<1x32xf32, #tpu.memory_space<vmem>>, %arg9: memref<32x32xbf16, #tpu.memory_space<vmem>>, %arg10: memref<2x32xbf16, #tpu.memory_space<vmem>>, %arg11: memref<2x32x64xbf16, #tpu.memory_space<vmem>>, %arg12: memref<32x64xbf16, #tpu.memory_space<vmem>>, %arg13: memref<1x64xf32, #tpu.memory_space<vmem>>, %arg14: memref<64x128xbf16, #tpu.memory_space<vmem>>, %arg15: memref<1x128xf32, #tpu.memory_space<vmem>>, %arg16: memref<2x128xf32, #tpu.memory_space<vmem>>, %arg17: memref<2x2x256xf32, #tpu.memory_space<vmem>>, %arg18: memref<2x2x32xf32, #tpu.memory_space<vmem>>) attributes {dimension_semantics = [#tpu.dimension_semantics<parallel>], iteration_bounds = array<i64: 1>, scalar_prefetch = 0 : i64, scratch_operands = 1 : i64, tpu.core_type = #tpu.core_type<tc>, window_params = [{transform_indices = @transform_0, window_bounds = array<i64: 2, 4, 256>}, {transform_indices = @transform_1, window_bounds = array<i64: 2, 1, 256>}, {transform_indices = @transform_2, window_bounds = array<i64: 2, 8, 16>}, {pipeline_mode = #tpu.pipeline_mode<synchronous>, transform_indices = @transform_3, window_bounds = array<i64: 4, 32>}, {pipeline_mode = #tpu.pipeline_mode<synchronous>, transform_indices = @transform_4, window_bounds = array<i64: 1, 32>}, {pipeline_mode = #tpu.pipeline_mode<synchronous>, transform_indices = @transform_5, window_bounds = array<i64: 32, 32>}, {pipeline_mode = #tpu.pipeline_mode<synchronous>, transform_indices = @transform_6, window_bounds = array<i64: 16, 32>}, {pipeline_mode = #tpu.pipeline_mode<synchronous>, transform_indices = @transform_7, window_bounds = array<i64: 1, 32>}, {pipeline_mode = #tpu.pipeline_mode<synchronous>, transform_indices = @transform_8, window_bounds = array<i64: 32, 32>}, {pipeline_mode = #tpu.pipeline_mode<synchronous>, transform_indices = @transform_9, window_bounds = array<i64: 2, 32>}, {pipeline_mode = #tpu.pipeline_mode<synchronous>, transform_indices = @transform_10, window_bounds = array<i64: 2, 32, 64>}, {pipeline_mode = #tpu.pipeline_mode<synchronous>, transform_indices = @transform_11, window_bounds = array<i64: 32, 64>}, {pipeline_mode = #tpu.pipeline_mode<synchronous>, transform_indices = @transform_12, window_bounds = array<i64: 1, 64>}, {pipeline_mode = #tpu.pipeline_mode<synchronous>, transform_indices = @transform_13, window_bounds = array<i64: 64, 128>}, {pipeline_mode = #tpu.pipeline_mode<synchronous>, transform_indices = @transform_14, window_bounds = array<i64: 1, 128>}, {transform_indices = @transform_15, window_bounds = array<i64: 2, 128>}, {transform_indices = @transform_16, window_bounds = array<i64: 2, 2, 256>}]} {
    %c0 = arith.constant 0 : index
    %c0_0 = arith.constant 0 : index
    %c0_1 = arith.constant 0 : index
    %0 = vector.load %arg3[%c0, %c0_0, %c0_1] : memref<2x8x16xf32, #tpu.memory_space<vmem>>, vector<2x8x16xf32>
    %cst = arith.constant dense<0.000000e+00> : vector<2x16xf32>
    %1 = vector.multi_reduction <add>, %0, %cst [1] : vector<2x8x16xf32> to vector<2x16xf32>
    %cst_2 = arith.constant 8.000000e+00 : f32
    %2 = vector.broadcast %cst_2 : f32 to vector<2x16xf32>
    %3 = arith.divf %1, %2 : vector<2x16xf32>
    %4 = arith.truncf %3 : vector<2x16xf32> to vector<2x16xbf16>
    %c0_3 = arith.constant 0 : index
    %c0_4 = arith.constant 0 : index
    %5 = vector.load %arg7[%c0_3, %c0_4] : memref<16x32xbf16, #tpu.memory_space<vmem>>, vector<16x32xbf16>
    %cst_5 = arith.constant dense<0.000000e+00> : vector<2x32xf32>
    %6 = tpu.matmul %4, %5, %cst_5 {dimension_numbers = #tpu.dot_dimension_numbers<[1], [0], [0], [1], [0, 0, 1, 1], [], []>} : vector<2x16xbf16>, vector<16x32xbf16>, vector<2x32xf32> -> vector<2x32xf32>
    %c0_6 = arith.constant 0 : index
    %c0_7 = arith.constant 0 : index
    %7 = vector.load %arg8[%c0_6, %c0_7] : memref<1x32xf32, #tpu.memory_space<vmem>>, vector<1x32xf32>
    %8 = vector.broadcast %7 : vector<1x32xf32> to vector<2x32xf32>
    %9 = arith.addf %6, %8 : vector<2x32xf32>
    %10 = math.tanh %9 : vector<2x32xf32>
    %11 = arith.truncf %10 : vector<2x32xf32> to vector<2x32xbf16>
    %c0_8 = arith.constant 0 : index
    %c0_9 = arith.constant 0 : index
    %12 = vector.load %arg9[%c0_8, %c0_9] : memref<32x32xbf16, #tpu.memory_space<vmem>>, vector<32x32xbf16>
    %cst_10 = arith.constant dense<0.000000e+00> : vector<2x32xf32>
    %13 = tpu.matmul %11, %12, %cst_10 {dimension_numbers = #tpu.dot_dimension_numbers<[1], [0], [0], [1], [0, 0, 1, 1], [], []>} : vector<2x32xbf16>, vector<32x32xbf16>, vector<2x32xf32> -> vector<2x32xf32>
    %c0_11 = arith.constant 0 : index
    %c0_12 = arith.constant 0 : index
    %14 = vector.load %arg10[%c0_11, %c0_12] : memref<2x32xbf16, #tpu.memory_space<vmem>>, vector<2x32xbf16>
    %c0_13 = arith.constant 0 : index
    %c0_14 = arith.constant 0 : index
    %c0_15 = arith.constant 0 : index
    %15 = vector.load %arg1[%c0_13, %c0_14, %c0_15] : memref<2x4x256xf32, #tpu.memory_space<vmem>>, vector<1x4x256xf32>
    %16 = vector.shape_cast %15 : vector<1x4x256xf32> to vector<4x256xf32>
    %c0_16 = arith.constant 0 : index
    %c0_17 = arith.constant 0 : index
    %c0_18 = arith.constant 0 : index
    %17 = vector.load %arg2[%c0_16, %c0_17, %c0_18] : memref<2x1x256xf32, #tpu.memory_space<vmem>>, vector<1x1x256xf32>
    %18 = vector.shape_cast %17 : vector<1x1x256xf32> to vector<1x256xf32>
    %19 = vector.broadcast %18 : vector<1x256xf32> to vector<4x256xf32>
    %20 = arith.mulf %16, %19 : vector<4x256xf32>
    %21 = arith.truncf %20 : vector<4x256xf32> to vector<4x256xbf16>
    %c0_19 = arith.constant 0 : index
    %c0_20 = arith.constant 0 : index
    %22 = vector.load %arg4[%c0_19, %c0_20] : memref<4x32xbf16, #tpu.memory_space<vmem>>, vector<4x32xbf16>
    "tpu.trace_start"() <{level = 10 : i32, message = "cp,cv->pv"}> : () -> ()
    %cst_21 = arith.constant dense<0.000000e+00> : vector<256x32xf32>
    %23 = tpu.matmul %21, %22, %cst_21 {dimension_numbers = #tpu.dot_dimension_numbers<[0], [0], [1], [1], [0, 1, 1, 1], [], []>} : vector<4x256xbf16>, vector<4x32xbf16>, vector<256x32xf32> -> vector<256x32xf32>
    "tpu.trace_stop"() : () -> ()
    %c0_22 = arith.constant 0 : index
    %c0_23 = arith.constant 0 : index
    %24 = vector.load %arg5[%c0_22, %c0_23] : memref<1x32xf32, #tpu.memory_space<vmem>>, vector<1x32xf32>
    %25 = vector.broadcast %24 : vector<1x32xf32> to vector<256x32xf32>
    %26 = arith.addf %23, %25 : vector<256x32xf32>
    %cst_24 = arith.constant 0.000000e+00 : f32
    %27 = vector.broadcast %cst_24 : f32 to vector<256x32xf32>
    %28 = arith.maximumf %26, %27 : vector<256x32xf32>
    %29 = arith.truncf %28 : vector<256x32xf32> to vector<256x32xbf16>
    %c0_25 = arith.constant 0 : index
    %c0_26 = arith.constant 0 : index
    %30 = vector.load %arg6[%c0_25, %c0_26] : memref<32x32xbf16, #tpu.memory_space<vmem>>, vector<32x32xbf16>
    %cst_27 = arith.constant dense<0.000000e+00> : vector<256x32xf32>
    %31 = tpu.matmul %29, %30, %cst_27 {dimension_numbers = #tpu.dot_dimension_numbers<[1], [0], [0], [1], [0, 0, 1, 1], [], []>} : vector<256x32xbf16>, vector<32x32xbf16>, vector<256x32xf32> -> vector<256x32xf32>
    %32 = vector.extract_strided_slice %13 {offsets = [0, 0], sizes = [1, 32], strides = [1, 1]} : vector<2x32xf32> to vector<1x32xf32>
    %33 = vector.broadcast %32 : vector<1x32xf32> to vector<256x32xf32>
    %34 = arith.addf %31, %33 : vector<256x32xf32>
    %35 = math.tanh %34 : vector<256x32xf32>
    %36 = arith.truncf %35 : vector<256x32xf32> to vector<256x32xbf16>
    "tpu.trace_start"() <{level = 10 : i32, message = "gh,ph->gp"}> : () -> ()
    %cst_28 = arith.constant dense<0.000000e+00> : vector<2x256xf32>
    %37 = tpu.matmul %14, %36, %cst_28 {dimension_numbers = #tpu.dot_dimension_numbers<[1], [1], [0], [0], [0, 0, 1, 0], [], []>} : vector<2x32xbf16>, vector<256x32xbf16>, vector<2x256xf32> -> vector<2x256xf32>
    "tpu.trace_stop"() : () -> ()
    %cst_29 = arith.constant dense<0xFF800000> : vector<2xf32>
    %38 = vector.multi_reduction <maximumf>, %37, %cst_29 [1] : vector<2x256xf32> to vector<2xf32>
    %39 = vector.shape_cast %38 : vector<2xf32> to vector<2x1xf32>
    %40 = vector.broadcast %39 : vector<2x1xf32> to vector<2x256xf32>
    %41 = arith.subf %37, %40 : vector<2x256xf32>
    %42 = math.exp %41 : vector<2x256xf32>
    %cst_30 = arith.constant dense<0.000000e+00> : vector<2xf32>
    %43 = vector.multi_reduction <add>, %42, %cst_30 [1] : vector<2x256xf32> to vector<2xf32>
    %44 = vector.shape_cast %43 : vector<2xf32> to vector<2x1xf32>
    %45 = tpu.reciprocal %44 {approx = true} : vector<2x1xf32> -> vector<2x1xf32>
    %46 = vector.broadcast %45 : vector<2x1xf32> to vector<2x256xf32>
    %47 = arith.mulf %42, %46 : vector<2x256xf32>
    %c0_31 = arith.constant 0 : index
    %c0_32 = arith.constant 0 : index
    %c0_33 = arith.constant 0 : index
    %48 = vector.load %arg17[%c0_31, %c0_32, %c0_33] : memref<2x2x256xf32, #tpu.memory_space<vmem>>, vector<1x2x256xf32>
    %49 = vector.shape_cast %48 : vector<1x2x256xf32> to vector<2x256xf32>
    %50 = vector.shape_cast %47 : vector<2x256xf32> to vector<1x2x256xf32>
    tpu.vector_store %arg17[%c0_31, %c0_32, %c0_33], %50 {strides = array<i32>} : memref<2x2x256xf32, #tpu.memory_space<vmem>>, vector<1x2x256xf32>,
    %51 = arith.truncf %47 : vector<2x256xf32> to vector<2x256xbf16>
    %cst_34 = arith.constant dense<0.000000e+00> : vector<2x32xf32>
    %52 = tpu.matmul %51, %29, %cst_34 {dimension_numbers = #tpu.dot_dimension_numbers<[1], [0], [0], [1], [0, 0, 1, 1], [], []>} : vector<2x256xbf16>, vector<256x32xbf16>, vector<2x32xf32> -> vector<2x32xf32>
    %c0_35 = arith.constant 0 : index
    %c0_36 = arith.constant 0 : index
    %c0_37 = arith.constant 0 : index
    %53 = vector.load %arg18[%c0_35, %c0_36, %c0_37] : memref<2x2x32xf32, #tpu.memory_space<vmem>>, vector<1x2x32xf32>
    %54 = vector.shape_cast %53 : vector<1x2x32xf32> to vector<2x32xf32>
    %55 = vector.shape_cast %52 : vector<2x32xf32> to vector<1x2x32xf32>
    tpu.vector_store %arg18[%c0_35, %c0_36, %c0_37], %55 {strides = array<i32>} : memref<2x2x32xf32, #tpu.memory_space<vmem>>, vector<1x2x32xf32>,
    %c1 = arith.constant 1 : index
    %c0_38 = arith.constant 0 : index
    %c0_39 = arith.constant 0 : index
    %56 = vector.load %arg1[%c1, %c0_38, %c0_39] : memref<2x4x256xf32, #tpu.memory_space<vmem>>, vector<1x4x256xf32>
    %57 = vector.shape_cast %56 : vector<1x4x256xf32> to vector<4x256xf32>
    %c1_40 = arith.constant 1 : index
    %c0_41 = arith.constant 0 : index
    %c0_42 = arith.constant 0 : index
    %58 = vector.load %arg2[%c1_40, %c0_41, %c0_42] : memref<2x1x256xf32, #tpu.memory_space<vmem>>, vector<1x1x256xf32>
    %59 = vector.shape_cast %58 : vector<1x1x256xf32> to vector<1x256xf32>
    %60 = vector.broadcast %59 : vector<1x256xf32> to vector<4x256xf32>
    %61 = arith.mulf %57, %60 : vector<4x256xf32>
    %62 = arith.truncf %61 : vector<4x256xf32> to vector<4x256xbf16>
    %c0_43 = arith.constant 0 : index
    %c0_44 = arith.constant 0 : index
    %63 = vector.load %arg4[%c0_43, %c0_44] : memref<4x32xbf16, #tpu.memory_space<vmem>>, vector<4x32xbf16>
    "tpu.trace_start"() <{level = 10 : i32, message = "cp,cv->pv"}> : () -> ()
    %cst_45 = arith.constant dense<0.000000e+00> : vector<256x32xf32>
    %64 = tpu.matmul %62, %63, %cst_45 {dimension_numbers = #tpu.dot_dimension_numbers<[0], [0], [1], [1], [0, 1, 1, 1], [], []>} : vector<4x256xbf16>, vector<4x32xbf16>, vector<256x32xf32> -> vector<256x32xf32>
    "tpu.trace_stop"() : () -> ()
    %c0_46 = arith.constant 0 : index
    %c0_47 = arith.constant 0 : index
    %65 = vector.load %arg5[%c0_46, %c0_47] : memref<1x32xf32, #tpu.memory_space<vmem>>, vector<1x32xf32>
    %66 = vector.broadcast %65 : vector<1x32xf32> to vector<256x32xf32>
    %67 = arith.addf %64, %66 : vector<256x32xf32>
    %cst_48 = arith.constant 0.000000e+00 : f32
    %68 = vector.broadcast %cst_48 : f32 to vector<256x32xf32>
    %69 = arith.maximumf %67, %68 : vector<256x32xf32>
    %70 = arith.truncf %69 : vector<256x32xf32> to vector<256x32xbf16>
    %c0_49 = arith.constant 0 : index
    %c0_50 = arith.constant 0 : index
    %71 = vector.load %arg6[%c0_49, %c0_50] : memref<32x32xbf16, #tpu.memory_space<vmem>>, vector<32x32xbf16>
    %cst_51 = arith.constant dense<0.000000e+00> : vector<256x32xf32>
    %72 = tpu.matmul %70, %71, %cst_51 {dimension_numbers = #tpu.dot_dimension_numbers<[1], [0], [0], [1], [0, 0, 1, 1], [], []>} : vector<256x32xbf16>, vector<32x32xbf16>, vector<256x32xf32> -> vector<256x32xf32>
    %73 = vector.extract_strided_slice %13 {offsets = [1, 0], sizes = [1, 32], strides = [1, 1]} : vector<2x32xf32> to vector<1x32xf32>
    %74 = vector.broadcast %73 : vector<1x32xf32> to vector<256x32xf32>
    %75 = arith.addf %72, %74 : vector<256x32xf32>
    %76 = math.tanh %75 : vector<256x32xf32>
    %77 = arith.truncf %76 : vector<256x32xf32> to vector<256x32xbf16>
    "tpu.trace_start"() <{level = 10 : i32, message = "gh,ph->gp"}> : () -> ()
    %cst_52 = arith.constant dense<0.000000e+00> : vector<2x256xf32>
    %78 = tpu.matmul %14, %77, %cst_52 {dimension_numbers = #tpu.dot_dimension_numbers<[1], [1], [0], [0], [0, 0, 1, 0], [], []>} : vector<2x32xbf16>, vector<256x32xbf16>, vector<2x256xf32> -> vector<2x256xf32>
    "tpu.trace_stop"() : () -> ()
    %cst_53 = arith.constant dense<0xFF800000> : vector<2xf32>
    %79 = vector.multi_reduction <maximumf>, %78, %cst_53 [1] : vector<2x256xf32> to vector<2xf32>
    %80 = vector.shape_cast %79 : vector<2xf32> to vector<2x1xf32>
    %81 = vector.broadcast %80 : vector<2x1xf32> to vector<2x256xf32>
    %82 = arith.subf %78, %81 : vector<2x256xf32>
    %83 = math.exp %82 : vector<2x256xf32>
    %cst_54 = arith.constant dense<0.000000e+00> : vector<2xf32>
    %84 = vector.multi_reduction <add>, %83, %cst_54 [1] : vector<2x256xf32> to vector<2xf32>
    %85 = vector.shape_cast %84 : vector<2xf32> to vector<2x1xf32>
    %86 = tpu.reciprocal %85 {approx = true} : vector<2x1xf32> -> vector<2x1xf32>
    %87 = vector.broadcast %86 : vector<2x1xf32> to vector<2x256xf32>
    %88 = arith.mulf %83, %87 : vector<2x256xf32>
    %c1_55 = arith.constant 1 : index
    %c0_56 = arith.constant 0 : index
    %c0_57 = arith.constant 0 : index
    %89 = vector.load %arg17[%c1_55, %c0_56, %c0_57] : memref<2x2x256xf32, #tpu.memory_space<vmem>>, vector<1x2x256xf32>
    %90 = vector.shape_cast %89 : vector<1x2x256xf32> to vector<2x256xf32>
    %91 = vector.shape_cast %88 : vector<2x256xf32> to vector<1x2x256xf32>
    tpu.vector_store %arg17[%c1_55, %c0_56, %c0_57], %91 {strides = array<i32>} : memref<2x2x256xf32, #tpu.memory_space<vmem>>, vector<1x2x256xf32>,
    %92 = arith.truncf %88 : vector<2x256xf32> to vector<2x256xbf16>
    %cst_58 = arith.constant dense<0.000000e+00> : vector<2x32xf32>
    %93 = tpu.matmul %92, %70, %cst_58 {dimension_numbers = #tpu.dot_dimension_numbers<[1], [0], [0], [1], [0, 0, 1, 1], [], []>} : vector<2x256xbf16>, vector<256x32xbf16>, vector<2x32xf32> -> vector<2x32xf32>
    %c1_59 = arith.constant 1 : index
    %c0_60 = arith.constant 0 : index
    %c0_61 = arith.constant 0 : index
    %94 = vector.load %arg18[%c1_59, %c0_60, %c0_61] : memref<2x2x32xf32, #tpu.memory_space<vmem>>, vector<1x2x32xf32>
    %95 = vector.shape_cast %94 : vector<1x2x32xf32> to vector<2x32xf32>
    %96 = vector.shape_cast %93 : vector<2x32xf32> to vector<1x2x32xf32>
    tpu.vector_store %arg18[%c1_59, %c0_60, %c0_61], %96 {strides = array<i32>} : memref<2x2x32xf32, #tpu.memory_space<vmem>>, vector<1x2x32xf32>,
    %c0_62 = arith.constant 0 : index
    %c0_63 = arith.constant 0 : index
    %c0_64 = arith.constant 0 : index
    %97 = vector.load %arg18[%c0_62, %c0_63, %c0_64] : memref<2x2x32xf32, #tpu.memory_space<vmem>>, vector<2x2x32xf32>
    %98 = arith.truncf %10 : vector<2x32xf32> to vector<2x32xbf16>
    %c0_65 = arith.constant 0 : index
    %c0_66 = arith.constant 0 : index
    %99 = vector.load %arg12[%c0_65, %c0_66] : memref<32x64xbf16, #tpu.memory_space<vmem>>, vector<32x64xbf16>
    %cst_67 = arith.constant dense<0.000000e+00> : vector<2x64xf32>
    %100 = tpu.matmul %98, %99, %cst_67 {dimension_numbers = #tpu.dot_dimension_numbers<[1], [0], [0], [1], [0, 0, 1, 1], [], []>} : vector<2x32xbf16>, vector<32x64xbf16>, vector<2x64xf32> -> vector<2x64xf32>
    %c0_68 = arith.constant 0 : index
    %c0_69 = arith.constant 0 : index
    %101 = vector.load %arg13[%c0_68, %c0_69] : memref<1x64xf32, #tpu.memory_space<vmem>>, vector<1x64xf32>
    %102 = vector.broadcast %101 : vector<1x64xf32> to vector<2x64xf32>
    %103 = arith.addf %100, %102 : vector<2x64xf32>
    %104 = vector.extract_strided_slice %97 {offsets = [0, 0, 0], sizes = [2, 1, 32], strides = [1, 1, 1]} : vector<2x2x32xf32> to vector<2x1x32xf32>
    %105 = vector.shape_cast %104 : vector<2x1x32xf32> to vector<2x32xf32>
    %106 = arith.truncf %105 : vector<2x32xf32> to vector<2x32xbf16>
    %c0_70 = arith.constant 0 : index
    %c0_71 = arith.constant 0 : index
    %c0_72 = arith.constant 0 : index
    %107 = vector.load %arg11[%c0_70, %c0_71, %c0_72] : memref<2x32x64xbf16, #tpu.memory_space<vmem>>, vector<1x32x64xbf16>
    %108 = vector.shape_cast %107 : vector<1x32x64xbf16> to vector<32x64xbf16>
    %cst_73 = arith.constant dense<0.000000e+00> : vector<2x64xf32>
    %109 = tpu.matmul %106, %108, %cst_73 {dimension_numbers = #tpu.dot_dimension_numbers<[1], [0], [0], [1], [0, 0, 1, 1], [], []>} : vector<2x32xbf16>, vector<32x64xbf16>, vector<2x64xf32> -> vector<2x64xf32>
    %110 = arith.addf %103, %109 : vector<2x64xf32>
    %111 = vector.extract_strided_slice %97 {offsets = [0, 1, 0], sizes = [2, 1, 32], strides = [1, 1, 1]} : vector<2x2x32xf32> to vector<2x1x32xf32>
    %112 = vector.shape_cast %111 : vector<2x1x32xf32> to vector<2x32xf32>
    %113 = arith.truncf %112 : vector<2x32xf32> to vector<2x32xbf16>
    %c1_74 = arith.constant 1 : index
    %c0_75 = arith.constant 0 : index
    %c0_76 = arith.constant 0 : index
    %114 = vector.load %arg11[%c1_74, %c0_75, %c0_76] : memref<2x32x64xbf16, #tpu.memory_space<vmem>>, vector<1x32x64xbf16>
    %115 = vector.shape_cast %114 : vector<1x32x64xbf16> to vector<32x64xbf16>
    %cst_77 = arith.constant dense<0.000000e+00> : vector<2x64xf32>
    %116 = tpu.matmul %113, %115, %cst_77 {dimension_numbers = #tpu.dot_dimension_numbers<[1], [0], [0], [1], [0, 0, 1, 1], [], []>} : vector<2x32xbf16>, vector<32x64xbf16>, vector<2x64xf32> -> vector<2x64xf32>
    %117 = arith.addf %110, %116 : vector<2x64xf32>
    %cst_78 = arith.constant 0.000000e+00 : f32
    %118 = vector.broadcast %cst_78 : f32 to vector<2x64xf32>
    %119 = arith.maximumf %117, %118 : vector<2x64xf32>
    %120 = arith.truncf %119 : vector<2x64xf32> to vector<2x64xbf16>
    %c0_79 = arith.constant 0 : index
    %c0_80 = arith.constant 0 : index
    %121 = vector.load %arg14[%c0_79, %c0_80] : memref<64x128xbf16, #tpu.memory_space<vmem>>, vector<64x128xbf16>
    %cst_81 = arith.constant dense<0.000000e+00> : vector<2x128xf32>
    %122 = tpu.matmul %120, %121, %cst_81 {dimension_numbers = #tpu.dot_dimension_numbers<[1], [0], [0], [1], [0, 0, 1, 1], [], []>} : vector<2x64xbf16>, vector<64x128xbf16>, vector<2x128xf32> -> vector<2x128xf32>
    %c0_82 = arith.constant 0 : index
    %c0_83 = arith.constant 0 : index
    %123 = vector.load %arg15[%c0_82, %c0_83] : memref<1x128xf32, #tpu.memory_space<vmem>>, vector<1x128xf32>
    %124 = vector.broadcast %123 : vector<1x128xf32> to vector<2x128xf32>
    %125 = arith.addf %122, %124 : vector<2x128xf32>
    %c0_84 = arith.constant 0 : index
    %c0_85 = arith.constant 0 : index
    %126 = vector.load %arg16[%c0_84, %c0_85] : memref<2x128xf32, #tpu.memory_space<vmem>>, vector<2x128xf32>
    tpu.vector_store %arg16[%c0_84, %c0_85], %125 {strides = array<i32>} : memref<2x128xf32, #tpu.memory_space<vmem>>, vector<2x128xf32>,
    return
  }
  func.func @transform_0(%arg0: i32) -> (i32, i32, i32) {
    %c0_i32 = arith.constant 0 : i32
    %c0_i32_0 = arith.constant 0 : i32
    %c0_i32_1 = arith.constant 0 : i32
    return %arg0, %c0_i32, %c0_i32_0 : i32, i32, i32
  }
  func.func @transform_1(%arg0: i32) -> (i32, i32, i32) {
    %c0_i32 = arith.constant 0 : i32
    %c0_i32_0 = arith.constant 0 : i32
    %c0_i32_1 = arith.constant 0 : i32
    return %arg0, %c0_i32, %c0_i32_0 : i32, i32, i32
  }
  func.func @transform_2(%arg0: i32) -> (i32, i32, i32) {
    %c0_i32 = arith.constant 0 : i32
    %c0_i32_0 = arith.constant 0 : i32
    %c0_i32_1 = arith.constant 0 : i32
    return %arg0, %c0_i32, %c0_i32_0 : i32, i32, i32
  }
  func.func @transform_3(%arg0: i32) -> (i32, i32) {
    %c0_i32 = arith.constant 0 : i32
    %c0_i32_0 = arith.constant 0 : i32
    %c0_i32_1 = arith.constant 0 : i32
    return %c0_i32, %c0_i32_0 : i32, i32
  }
  func.func @transform_4(%arg0: i32) -> (i32, i32) {
    %c0_i32 = arith.constant 0 : i32
    %c0_i32_0 = arith.constant 0 : i32
    %c0_i32_1 = arith.constant 0 : i32
    return %c0_i32, %c0_i32_0 : i32, i32
  }
  func.func @transform_5(%arg0: i32) -> (i32, i32) {
    %c0_i32 = arith.constant 0 : i32
    %c0_i32_0 = arith.constant 0 : i32
    %c0_i32_1 = arith.constant 0 : i32
    return %c0_i32, %c0_i32_0 : i32, i32
  }
  func.func @transform_6(%arg0: i32) -> (i32, i32) {
    %c0_i32 = arith.constant 0 : i32
    %c0_i32_0 = arith.constant 0 : i32
    %c0_i32_1 = arith.constant 0 : i32
    return %c0_i32, %c0_i32_0 : i32, i32
  }
  func.func @transform_7(%arg0: i32) -> (i32, i32) {
    %c0_i32 = arith.constant 0 : i32
    %c0_i32_0 = arith.constant 0 : i32
    %c0_i32_1 = arith.constant 0 : i32
    return %c0_i32, %c0_i32_0 : i32, i32
  }
  func.func @transform_8(%arg0: i32) -> (i32, i32) {
    %c0_i32 = arith.constant 0 : i32
    %c0_i32_0 = arith.constant 0 : i32
    %c0_i32_1 = arith.constant 0 : i32
    return %c0_i32, %c0_i32_0 : i32, i32
  }
  func.func @transform_9(%arg0: i32) -> (i32, i32) {
    %c0_i32 = arith.constant 0 : i32
    %c0_i32_0 = arith.constant 0 : i32
    %c0_i32_1 = arith.constant 0 : i32
    return %c0_i32, %c0_i32_0 : i32, i32
  }
  func.func @transform_10(%arg0: i32) -> (i32, i32, i32) {
    %c0_i32 = arith.constant 0 : i32
    %c0_i32_0 = arith.constant 0 : i32
    %c0_i32_1 = arith.constant 0 : i32
    %c0_i32_2 = arith.constant 0 : i32
    return %c0_i32, %c0_i32_0, %c0_i32_1 : i32, i32, i32
  }
  func.func @transform_11(%arg0: i32) -> (i32, i32) {
    %c0_i32 = arith.constant 0 : i32
    %c0_i32_0 = arith.constant 0 : i32
    %c0_i32_1 = arith.constant 0 : i32
    return %c0_i32, %c0_i32_0 : i32, i32
  }
  func.func @transform_12(%arg0: i32) -> (i32, i32) {
    %c0_i32 = arith.constant 0 : i32
    %c0_i32_0 = arith.constant 0 : i32
    %c0_i32_1 = arith.constant 0 : i32
    return %c0_i32, %c0_i32_0 : i32, i32
  }
  func.func @transform_13(%arg0: i32) -> (i32, i32) {
    %c0_i32 = arith.constant 0 : i32
    %c0_i32_0 = arith.constant 0 : i32
    %c0_i32_1 = arith.constant 0 : i32
    return %c0_i32, %c0_i32_0 : i32, i32
  }
  func.func @transform_14(%arg0: i32) -> (i32, i32) {
    %c0_i32 = arith.constant 0 : i32
    %c0_i32_0 = arith.constant 0 : i32
    %c0_i32_1 = arith.constant 0 : i32
    return %c0_i32, %c0_i32_0 : i32, i32
  }
  func.func @transform_15(%arg0: i32) -> (i32, i32) {
    %c0_i32 = arith.constant 0 : i32
    %c0_i32_0 = arith.constant 0 : i32
    return %arg0, %c0_i32 : i32, i32
  }
  func.func @transform_16(%arg0: i32) -> (i32, i32, i32) {
    %c0_i32 = arith.constant 0 : i32
    %c0_i32_0 = arith.constant 0 : i32
    %c0_i32_1 = arith.constant 0 : i32
    return %arg0, %c0_i32, %c0_i32_0 : i32, i32, i32
  }
}

</mosaic_0001>

<llo_original>
// kernel: squint_forward.1
$region0: #{squint_forward.1}
  #allocation0 [shape = 'u32[]', space=smem, size = 0x4, offset = 0x4, fixed_abs, tag = 'smem constant byte address 0x4 - core index']
  #allocation1 [shape = 'u32[144,128]{1,0:T(1,128)}', space=vmem, size = 0x12000, scoped, tag = 'internal scratch']
  #allocation2 [shape = 'f32[2,2,32]{2,1,0:T(2,128)}', space=vmem, size = 0x800, scoped, tag = 'scratch operand']
  %s0 = inlined_call_operand.vmem [shape: f32[2,4,256], index: 0, kind: input, shape index: {}]
  %s1 = inlined_call_operand.vmem [shape: f32[2,1,256], index: 1, kind: input, shape index: {}]
  %s2 = inlined_call_operand.vmem [shape: f32[2,8,16], index: 2, kind: input, shape index: {}]
  %s3 = inlined_call_operand.vmem [shape: bf16[4,32], index: 3, kind: input, shape index: {}]
  %s4 = inlined_call_operand.vmem [shape: f32[1,32], index: 4, kind: input, shape index: {}]
  %s5 = inlined_call_operand.vmem [shape: bf16[32,32], index: 5, kind: input, shape index: {}]
  %s6 = inlined_call_operand.vmem [shape: bf16[16,32], index: 6, kind: input, shape index: {}]
  %s7 = inlined_call_operand.vmem [shape: f32[1,32], index: 7, kind: input, shape index: {}]
  %s8 = inlined_call_operand.vmem [shape: bf16[32,32], index: 8, kind: input, shape index: {}]
  %s9 = inlined_call_operand.vmem [shape: bf16[2,32], index: 9, kind: input, shape index: {}]
  %s10 = inlined_call_operand.vmem [shape: bf16[2,32,64], index: 10, kind: input, shape index: {}]
  %s11 = inlined_call_operand.vmem [shape: bf16[32,64], index: 11, kind: input, shape index: {}]
  %s12 = inlined_call_operand.vmem [shape: f32[1,64], index: 12, kind: input, shape index: {}]
  %s13 = inlined_call_operand.vmem [shape: bf16[64,128], index: 13, kind: input, shape index: {}]
  %s14 = inlined_call_operand.vmem [shape: f32[1,128], index: 14, kind: input, shape index: {}]
  %s15 = inlined_call_operand.hbm [shape: f32[2,128], index: 15, kind: output, shape index: {0}]
  %s16 = inlined_call_operand.vmem [shape: f32[2,2,256], index: 16, kind: output, shape index: {1}]
  %17 = xla_tuple %s15, %s16
  %s18 = sld [smem:[#allocation0]]
  $region78: #{squint_forward.1} parent=0
    _
  %s20 = ssub.s32 1, %s18
  %s21 = scalar_select 0, %s20, %s18
  $region1: #{squint_forward.1} parent=0
    #allocation3 [shape = 'u8[1024]{0}', space=vmem, size = 0x400, scoped, tag = 'output window, operand 0, single buffered']
    #allocation4 [shape = 's32[1]{0}', space=sflag, size = 0x4, scoped, tag = 'scoped memory for squint_forward.1']
    %22 = vsyncpa [#allocation4], 0
    // Predicated region
    $region2: #{squint_forward.1} parent=1 // pred_check
      _
    $region3: #{squint_forward.1} parent=1 // pred_check_branch
      %24 = sbr.rel (0) target = $region5
    $region4: #{squint_forward.1} parent=1 // pred_region
      _
    $region5: #{squint_forward.1} parent=1 // pred_fallthru
      _
    // Predicated region
    $region6: #{squint_forward.1} parent=1 // pred_check
      _
    $region7: #{squint_forward.1} parent=1 // pred_check_branch
      %26 = sbr.rel (0) target = $region9
    $region8: #{squint_forward.1} parent=1 // pred_region
      _
    $region9: #{squint_forward.1} parent=1 // pred_fallthru
      _
    // Predicated region
    $region10: #{squint_forward.1} parent=1 // pred_check
      _
    $region11: #{squint_forward.1} parent=1 // pred_check_branch
      %28 = sbr.rel (0) target = $region13
    $region12: #{squint_forward.1} parent=1 // pred_region
      _
    $region13: #{squint_forward.1} parent=1 // pred_fallthru
      _
    // Predicated region
    $region14: #{squint_forward.1} parent=1 // pred_check
      _
    $region15: #{squint_forward.1} parent=1 // pred_check_branch
      %30 = sbr.rel (0) target = $region17
    $region16: #{squint_forward.1} parent=1 // pred_region
      _
    $region17: #{squint_forward.1} parent=1 // pred_fallthru
      _
    // Predicated region
    $region18: #{squint_forward.1} parent=1 // pred_check
      _
    $region19: #{squint_forward.1} parent=1 // pred_check_branch
      %32 = sbr.rel (0) target = $region21
    $region20: #{squint_forward.1} parent=1 // pred_region
      _
    $region21: #{squint_forward.1} parent=1 // pred_fallthru
      _
    // Predicated region
    $region22: #{squint_forward.1} parent=1 // pred_check
      _
    $region23: #{squint_forward.1} parent=1 // pred_check_branch
      %34 = sbr.rel (0) target = $region25
    $region24: #{squint_forward.1} parent=1 // pred_region
      _
    $region25: #{squint_forward.1} parent=1 // pred_fallthru
      _
    // Predicated region
    $region26: #{squint_forward.1} parent=1 // pred_check
      _
    $region27: #{squint_forward.1} parent=1 // pred_check_branch
      %36 = sbr.rel (0) target = $region29
    $region28: #{squint_forward.1} parent=1 // pred_region
      _
    $region29: #{squint_forward.1} parent=1 // pred_fallthru
      _
    // Predicated region
    $region30: #{squint_forward.1} parent=1 // pred_check
      _
    $region31: #{squint_forward.1} parent=1 // pred_check_branch
      %38 = sbr.rel (0) target = $region33
    $region32: #{squint_forward.1} parent=1 // pred_region
      _
    $region33: #{squint_forward.1} parent=1 // pred_fallthru
      _
    // Predicated region
    $region34: #{squint_forward.1} parent=1 // pred_check
      _
    $region35: #{squint_forward.1} parent=1 // pred_check_branch
      %40 = sbr.rel (0) target = $region37
    $region36: #{squint_forward.1} parent=1 // pred_region
      _
    $region37: #{squint_forward.1} parent=1 // pred_fallthru
      _
    // Predicated region
    $region38: #{squint_forward.1} parent=1 // pred_check
      _
    $region39: #{squint_forward.1} parent=1 // pred_check_branch
      %42 = sbr.rel (0) target = $region41
    $region40: #{squint_forward.1} parent=1 // pred_region
      _
    $region41: #{squint_forward.1} parent=1 // pred_fallthru
      _
    // Predicated region
    $region42: #{squint_forward.1} parent=1 // pred_check
      _
    $region43: #{squint_forward.1} parent=1 // pred_check_branch
      %44 = sbr.rel (0) target = $region45
    $region44: #{squint_forward.1} parent=1 // pred_region
      _
    $region45: #{squint_forward.1} parent=1 // pred_fallthru
      _
    // Predicated region
    $region46: #{squint_forward.1} parent=1 // pred_check
      _
    $region47: #{squint_forward.1} parent=1 // pred_check_branch
      %46 = sbr.rel (0) target = $region49
    $region48: #{squint_forward.1} parent=1 // pred_region
      _
    $region49: #{squint_forward.1} parent=1 // pred_fallthru
      _
    // Predicated region
    $region50: #{squint_forward.1} parent=1 // pred_check
      _
    $region51: #{squint_forward.1} parent=1 // pred_check_branch
      %48 = sbr.rel (0) target = $region53
    $region52: #{squint_forward.1} parent=1 // pred_region
      _
    $region53: #{squint_forward.1} parent=1 // pred_fallthru
      _
    // Predicated region
    $region54: #{squint_forward.1} parent=1 // pred_check
      _
    $region55: #{squint_forward.1} parent=1 // pred_check_branch
      %50 = sbr.rel (0) target = $region57
    $region56: #{squint_forward.1} parent=1 // pred_region
      _
    $region57: #{squint_forward.1} parent=1 // pred_fallthru
      _
    // Predicated region
    $region58: #{squint_forward.1} parent=1 // pred_check
      _
    $region59: #{squint_forward.1} parent=1 // pred_check_branch
      %52 = sbr.rel (0) target = $region61
    $region60: #{squint_forward.1} parent=1 // pred_region
      _
    $region61: #{squint_forward.1} parent=1 // pred_fallthru
      _
    %v54 = vld [vmem:[%s2] sm:$0xff]
    %v55 = vld [vmem:[%s2 + $0x8] sm:$0xff]
    %vm56 = vcmask 130048
    %v57 = vsel %vm56, %v54, 0.0
    %v58 = vrot.slane %v57, 4
    %v59 = vadd.f32 %v57, %v58
    %v60 = vrot.slane %v59, 2
    %v61 = vadd.f32 %v59, %v60
    %v62 = vrot.slane %v61, 1
    %v63 = vadd.f32 %v61, %v62
    %v64 = vsel %vm56, %v55, 0.0
    %v65 = vrot.slane %v64, 4
    %v66 = vadd.f32 %v64, %v65
    %v67 = vrot.slane %v66, 2
    %v68 = vadd.f32 %v66, %v67
    %v69 = vrot.slane %v68, 1
    %v70 = vadd.f32 %v68, %v69
    %v71 = vrcp.pop 8.0
    %v72 = vmul.f32 %v63, %v71
    %v73 = vmul.f32 %v70, %v71
    %v74 = vpack.c.bf16 %v72, %v72
    %v75 = vpack.c.bf16 %v73, %v73
    %v76 = vld [vmem:[%s6] sm:$0xf]
    %v77 = vld [vmem:[%s6 + $0x4] sm:$0xf]
    %v78 = vld [vmem:[%s7] sm:$0x1]
    %v80 = vlaneseq
    %v81 = vshrl.u32 %v80, 7
    %v82 = vsub.s32 0, %v81
    %v83 = vrot.slane %v78, %v82
    %v87 = vunpack.c.l.b16 %v74
    %v88 = vunpack.c.l.b16 %v75
    %vm89 = vcmask 1041409
    %v90 = vsel %vm89, %v88, %v87
    %v91 = vpack.c.b16 %v90, %v90
    %v94 = vunpack.c.l.b16 %v76
    %v95 = vunpack.c.l.b16 %v77
    %v96 = vpack.c.b16 %v95, %v94
    %v99 = vsel %vm56, %v91, 0
    %101 = vmatprep.subr.bf16.mxu0 0
    %102 = vmatpush1.bf16.msra.mxu0 %v96
    %103 = vmatprep.subr.bf16.mxu0 0
    %104 = vmatpush1.bf16.msra.mxu0 0
    %105 = vmatprep.subr.bf16.mxu0 0
    %106 = vmatpush1.bf16.msra.mxu0 0
    %107 = vmatprep.subr.bf16.mxu0 0
    %108 = vmatpush1.bf16.msra.mxu0 0
    %109 = vmatprep.subr.bf16.mxu0 0
    %110 = vmatpush1.bf16.msra.mxu0 0
    %111 = vmatprep.subr.bf16.mxu0 0
    %112 = vmatpush1.bf16.msra.mxu0 0
    %113 = vmatprep.subr.bf16.mxu0 0
    %114 = vmatpush1.bf16.msra.mxu0 0
    %115 = vmatprep.subr.bf16.mxu0 0
    %116 = vmatpush1.bf16.msra.mxu0 0
    %117 = vmatprep.subr.bf16.mxu0 0
    %118 = vmatpush1.bf16.msra.mxu0 0
    %119 = vmatprep.subr.bf16.mxu0 0
    %120 = vmatpush1.bf16.msra.mxu0 0
    %121 = vmatprep.subr.bf16.mxu0 0
    %122 = vmatpush1.bf16.msra.mxu0 0
    %123 = vmatprep.subr.bf16.mxu0 0
    %124 = vmatpush1.bf16.msra.mxu0 0
    %125 = vmatprep.subr.bf16.mxu0 0
    %126 = vmatpush1.bf16.msra.mxu0 0
    %127 = vmatprep.subr.bf16.mxu0 0
    %128 = vmatpush1.bf16.msra.mxu0 0
    %129 = vmatprep.subr.bf16.mxu0 0
    %130 = vmatpush1.bf16.msra.mxu0 0
    %131 = vmatprep.subr.bf16.mxu0 0
    %132 = vmatpush1.bf16.msra.mxu0 0
    %133 = vmatprep.mubr.bf16.mxu0 0
    %134 = vmatmul.mubr.bf16.gmra.mrb[0].mxu0 %v99
    %v135 = vpop.f32.mrb[0].mxu0
    %v136 = vadd.f32 %v83, %v135
    %v137 = vpop.f32.mrb[0].mxu0
    %v138 = vpop.f32.mrb[0].mxu0
    %v139 = vpop.f32.mrb[0].mxu0
    %140 = vdwg.mxu0
    %v141 = vtanh.pop %v136
    %v142 = vpack.c.bf16 %v141, %v141
    %v143 = vld [vmem:[%s8] sm:$0xf]
    %v144 = vld [vmem:[%s8 + $0x4] sm:$0xf]
    %v145 = vld [vmem:[%s8 + $0x8] sm:$0xf]
    %v146 = vld [vmem:[%s8 + $0xc] sm:$0xf]
    %v151 = vunpack.c.l.b16 %v143
    %v152 = vunpack.c.l.b16 %v144
    %v153 = vunpack.c.l.b16 %v145
    %v154 = vunpack.c.l.b16 %v146
    %v155 = vpack.c.b16 %v152, %v151
    %v156 = vpack.c.b16 %v154, %v153
    %vm159 = vcmask 261120
    %v161 = vsel %vm159, %v142, 0
    %163 = vmatprep.subr.bf16.mxu0 0
    %164 = vmatpush1.bf16.msra.mxu0 %v155
    %165 = vmatprep.subr.bf16.mxu0 0
    %166 = vmatpush1.bf16.msra.mxu0 %v156
    %167 = vmatprep.subr.bf16.mxu0 0
    %168 = vmatpush1.bf16.msra.mxu0 0
    %169 = vmatprep.subr.bf16.mxu0 0
    %170 = vmatpush1.bf16.msra.mxu0 0
    %171 = vmatprep.subr.bf16.mxu0 0
    %172 = vmatpush1.bf16.msra.mxu0 0
    %173 = vmatprep.subr.bf16.mxu0 0
    %174 = vmatpush1.bf16.msra.mxu0 0
    %175 = vmatprep.subr.bf16.mxu0 0
    %176 = vmatpush1.bf16.msra.mxu0 0
    %177 = vmatprep.subr.bf16.mxu0 0
    %178 = vmatpush1.bf16.msra.mxu0 0
    %179 = vmatprep.subr.bf16.mxu0 0
    %180 = vmatpush1.bf16.msra.mxu0 0
    %181 = vmatprep.subr.bf16.mxu0 0
    %182 = vmatpush1.bf16.msra.mxu0 0
    %183 = vmatprep.subr.bf16.mxu0 0
    %184 = vmatpush1.bf16.msra.mxu0 0
    %185 = vmatprep.subr.bf16.mxu0 0
    %186 = vmatpush1.bf16.msra.mxu0 0
    %187 = vmatprep.subr.bf16.mxu0 0
    %188 = vmatpush1.bf16.msra.mxu0 0
    %189 = vmatprep.subr.bf16.mxu0 0
    %190 = vmatpush1.bf16.msra.mxu0 0
    %191 = vmatprep.subr.bf16.mxu0 0
    %192 = vmatpush1.bf16.msra.mxu0 0
    %193 = vmatprep.subr.bf16.mxu0 0
    %194 = vmatpush1.bf16.msra.mxu0 0
    %195 = vmatprep.mubr.bf16.mxu0 0
    %196 = vmatmul.mubr.bf16.gmra.mrb[0].mxu0 %v161
    %v197 = vpop.f32.mrb[0].mxu0
    %v198 = vadd.f32 0.0, %v197
    %v199 = vpop.f32.mrb[0].mxu0
    %v200 = vpop.f32.mrb[0].mxu0
    %v201 = vpop.f32.mrb[0].mxu0
    %202 = vdwg.mxu0
    %v203 = vld [vmem:[%s9] sm:$0x1]
    %v204 = vld [vmem:[%s0] sm:$0xff]
    %v205 = vld [vmem:[%s1] sm:$0x3]
    %v207 = vlaneseq
    %v208 = vshrl.u32 %v207, 7
    %v209 = vsub.s32 0, %v208
    %v210 = vrot.slane %v205, %v209
    %v211 = vlaneseq
    %v212 = vshrl.u32 %v211, 7
    %v213 = vsub.s32 1, %v212
    %v214 = vrot.slane %v205, %v213
    %v215 = vcombine.low %v210, %v214
    %v217 = vmul.f32 %v204, %v215
    %v219 = vcombine.high %v217, %v217
    %v221 = vpack.c.bf16 %v217, %v217
    %v222 = vpack.c.bf16 %v219, %v219
    %v223 = vld [vmem:[%s3] sm:$0x3]
    %v224 = vld [vmem:[%s4] sm:$0x1]
    %v226 = vlaneseq
    %v227 = vshrl.u32 %v226, 7
    %v228 = vsub.s32 0, %v227
    %v229 = vrot.slane %v224, %v228
    %231 = vxpose.xlu0.c.b16.start [1/8] %v221, 128
    %232 = vxpose.xlu0.c.b16.cont [2/8] 0, 128
    %233 = vxpose.xlu0.c.b16.cont [3/8] 0, 128
    %234 = vxpose.xlu0.c.b16.cont [4/8] 0, 128
    %235 = vxpose.xlu0.c.b16.cont [5/8] 0, 128
    %236 = vxpose.xlu0.c.b16.cont [6/8] 0, 128
    %237 = vxpose.xlu0.c.b16.cont [7/8] 0, 128
    %238 = vxpose.xlu0.c.b16.end [8/8] 0, 128
    %v239 = vpop.trf.xlu0
    %v240 = vpop.trf.xlu0
    %v241 = vpop.trf.xlu0
    %v242 = vpop.trf.xlu0
    %v243 = vpop.trf.xlu0
    %v244 = vpop.trf.xlu0
    %v245 = vpop.trf.xlu0
    %v246 = vpop.trf.xlu0
    %247 = vxpose.xlu0.c.b16.start [1/8] %v222, 128
    %248 = vxpose.xlu0.c.b16.cont [2/8] 0, 128
    %249 = vxpose.xlu0.c.b16.cont [3/8] 0, 128
    %250 = vxpose.xlu0.c.b16.cont [4/8] 0, 128
    %251 = vxpose.xlu0.c.b16.cont [5/8] 0, 128
    %252 = vxpose.xlu0.c.b16.cont [6/8] 0, 128
    %253 = vxpose.xlu0.c.b16.cont [7/8] 0, 128
    %254 = vxpose.xlu0.c.b16.end [8/8] 0, 128
    %v255 = vpop.trf.xlu0
    %v256 = vpop.trf.xlu0
    %v257 = vpop.trf.xlu0
    %v258 = vpop.trf.xlu0
    %v259 = vpop.trf.xlu0
    %v260 = vpop.trf.xlu0
    %v261 = vpop.trf.xlu0
    %v262 = vpop.trf.xlu0
    %vm263 = vcmask 31744
    %v265 = vsel %vm263, %v239, 0
    %v268 = vsel %vm263, %v240, 0
    %v271 = vsel %vm263, %v241, 0
    %v274 = vsel %vm263, %v242, 0
    %v277 = vsel %vm263, %v243, 0
    %v280 = vsel %vm263, %v244, 0
    %v283 = vsel %vm263, %v245, 0
    %v286 = vsel %vm263, %v246, 0
    %v289 = vsel %vm263, %v255, 0
    %v292 = vsel %vm263, %v256, 0
    %v295 = vsel %vm263, %v257, 0
    %v298 = vsel %vm263, %v258, 0
    %v301 = vsel %vm263, %v259, 0
    %v304 = vsel %vm263, %v260, 0
    %v307 = vsel %vm263, %v261, 0
    %v310 = vsel %vm263, %v262, 0
    %vm312 = vcmask 1041408
    %v314 = vsel %vm312, %v223, 0
    %316 = vmatprep.subr.bf16.mxu0 0
    %317 = vmatpush1.bf16.msra.mxu0 %v314
    %318 = vmatprep.subr.bf16.mxu0 0
    %319 = vmatpush1.bf16.msra.mxu0 0
    %320 = vmatprep.subr.bf16.mxu0 0
    %321 = vmatpush1.bf16.msra.mxu0 0
    %322 = vmatprep.subr.bf16.mxu0 0
    %323 = vmatpush1.bf16.msra.mxu0 0
    %324 = vmatprep.subr.bf16.mxu0 0
    %325 = vmatpush1.bf16.msra.mxu0 0
    %326 = vmatprep.subr.bf16.mxu0 0
    %327 = vmatpush1.bf16.msra.mxu0 0
    %328 = vmatprep.subr.bf16.mxu0 0
    %329 = vmatpush1.bf16.msra.mxu0 0
    %330 = vmatprep.subr.bf16.mxu0 0
    %331 = vmatpush1.bf16.msra.mxu0 0
    %332 = vmatprep.subr.bf16.mxu0 0
    %333 = vmatpush1.bf16.msra.mxu0 0
    %334 = vmatprep.subr.bf16.mxu0 0
    %335 = vmatpush1.bf16.msra.mxu0 0
    %336 = vmatprep.subr.bf16.mxu0 0
    %337 = vmatpush1.bf16.msra.mxu0 0
    %338 = vmatprep.subr.bf16.mxu0 0
    %339 = vmatpush1.bf16.msra.mxu0 0
    %340 = vmatprep.subr.bf16.mxu0 0
    %341 = vmatpush1.bf16.msra.mxu0 0
    %342 = vmatprep.subr.bf16.mxu0 0
    %343 = vmatpush1.bf16.msra.mxu0 0
    %344 = vmatprep.subr.bf16.mxu0 0
    %345 = vmatpush1.bf16.msra.mxu0 0
    %346 = vmatprep.subr.bf16.mxu0 0
    %347 = vmatpush1.bf16.msra.mxu0 0
    %348 = vmatprep.mubr.bf16.mxu0 0
    %349 = vmatmul.mubr.bf16.gmra.mrb[0].mxu0 %v265
    %v350 = vpop.f32.mrb[0].mxu0
    %v351 = vadd.f32 %v229, %v350
    %v352 = vpop.f32.mrb[0].mxu0
    %v353 = vpop.f32.mrb[0].mxu0
    %v354 = vadd.f32 %v229, %v353
    %v355 = vpop.f32.mrb[0].mxu0
    %356 = vmatprep.mubr.bf16.mxu0 0
    %357 = vmatmul.mubr.bf16.gmra.mrb[0].mxu0 %v268
    %v358 = vpop.f32.mrb[0].mxu0
    %v359 = vadd.f32 %v229, %v358
    %v360 = vpop.f32.mrb[0].mxu0
    %v361 = vpop.f32.mrb[0].mxu0
    %v362 = vadd.f32 %v229, %v361
    %v363 = vpop.f32.mrb[0].mxu0
    %364 = vmatprep.mubr.bf16.mxu0 0
    %365 = vmatmul.mubr.bf16.gmra.mrb[0].mxu0 %v271
    %v366 = vpop.f32.mrb[0].mxu0
    %v367 = vadd.f32 %v229, %v366
    %v368 = vpop.f32.mrb[0].mxu0
    %v369 = vpop.f32.mrb[0].mxu0
    %v370 = vadd.f32 %v229, %v369
    %v371 = vpop.f32.mrb[0].mxu0
    %372 = vmatprep.mubr.bf16.mxu0 0
    %373 = vmatmul.mubr.bf16.gmra.mrb[0].mxu0 %v274
    %v374 = vpop.f32.mrb[0].mxu0
    %v375 = vadd.f32 %v229, %v374
    %v376 = vpop.f32.mrb[0].mxu0
    %v377 = vpop.f32.mrb[0].mxu0
    %v378 = vadd.f32 %v229, %v377
    %v379 = vpop.f32.mrb[0].mxu0
    %380 = vmatprep.mubr.bf16.mxu0 0
    %381 = vmatmul.mubr.bf16.gmra.mrb[0].mxu0 %v277
    %v382 = vpop.f32.mrb[0].mxu0
    %v383 = vadd.f32 %v229, %v382
    %v384 = vpop.f32.mrb[0].mxu0
    %v385 = vpop.f32.mrb[0].mxu0
    %v386 = vadd.f32 %v229, %v385
    %v387 = vpop.f32.mrb[0].mxu0
    %388 = vmatprep.mubr.bf16.mxu0 0
    %389 = vmatmul.mubr.bf16.gmra.mrb[0].mxu0 %v280
    %v390 = vpop.f32.mrb[0].mxu0
    %v391 = vadd.f32 %v229, %v390
    %v392 = vpop.f32.mrb[0].mxu0
    %v393 = vpop.f32.mrb[0].mxu0
    %v394 = vadd.f32 %v229, %v393
    %v395 = vpop.f32.mrb[0].mxu0
    %396 = vmatprep.mubr.bf16.mxu0 0
    %397 = vmatmul.mubr.bf16.gmra.mrb[0].mxu0 %v283
    %v398 = vpop.f32.mrb[0].mxu0
    %v399 = vadd.f32 %v229, %v398
    %v400 = vpop.f32.mrb[0].mxu0
    %v401 = vpop.f32.mrb[0].mxu0
    %v402 = vadd.f32 %v229, %v401
    %v403 = vpop.f32.mrb[0].mxu0
    %404 = vmatprep.mubr.bf16.mxu0 0
    %405 = vmatmul.mubr.bf16.gmra.mrb[0].mxu0 %v286
    %v406 = vpop.f32.mrb[0].mxu0
    %v407 = vadd.f32 %v229, %v406
    %v408 = vpop.f32.mrb[0].mxu0
    %v409 = vpop.f32.mrb[0].mxu0
    %v410 = vadd.f32 %v229, %v409
    %v411 = vpop.f32.mrb[0].mxu0
    %412 = vmatprep.mubr.bf16.mxu0 0
    %413 = vmatmul.mubr.bf16.gmra.mrb[0].mxu0 %v289
    %v414 = vpop.f32.mrb[0].mxu0
    %v415 = vadd.f32 %v229, %v414
    %v416 = vpop.f32.mrb[0].mxu0
    %v417 = vpop.f32.mrb[0].mxu0
    %v418 = vadd.f32 %v229, %v417
    %v419 = vpop.f32.mrb[0].mxu0
    %420 = vmatprep.mubr.bf16.mxu0 0
    %421 = vmatmul.mubr.bf16.gmra.mrb[0].mxu0 %v292
    %v422 = vpop.f32.mrb[0].mxu0
    %v423 = vadd.f32 %v229, %v422
    %v424 = vpop.f32.mrb[0].mxu0
    %v425 = vpop.f32.mrb[0].mxu0
    %v426 = vadd.f32 %v229, %v425
    %v427 = vpop.f32.mrb[0].mxu0
    %428 = vmatprep.mubr.bf16.mxu0 0
    %429 = vmatmul.mubr.bf16.gmra.mrb[0].mxu0 %v295
    %v430 = vpop.f32.mrb[0].mxu0
    %v431 = vadd.f32 %v229, %v430
    %v432 = vpop.f32.mrb[0].mxu0
    %v433 = vpop.f32.mrb[0].mxu0
    %v434 = vadd.f32 %v229, %v433
    %v435 = vpop.f32.mrb[0].mxu0
    %436 = vmatprep.mubr.bf16.mxu0 0
    %437 = vmatmul.mubr.bf16.gmra.mrb[0].mxu0 %v298
    %v438 = vpop.f32.mrb[0].mxu0
    %v439 = vadd.f32 %v229, %v438
    %v440 = vpop.f32.mrb[0].mxu0
    %v441 = vpop.f32.mrb[0].mxu0
    %v442 = vadd.f32 %v229, %v441
    %v443 = vpop.f32.mrb[0].mxu0
    %444 = vmatprep.mubr.bf16.mxu0 0
    %445 = vmatmul.mubr.bf16.gmra.mrb[0].mxu0 %v301
    %v446 = vpop.f32.mrb[0].mxu0
    %v447 = vadd.f32 %v229, %v446
    %v448 = vpop.f32.mrb[0].mxu0
    %v449 = vpop.f32.mrb[0].mxu0
    %v450 = vadd.f32 %v229, %v449
    %v451 = vpop.f32.mrb[0].mxu0
    %452 = vmatprep.mubr.bf16.mxu0 0
    %453 = vmatmul.mubr.bf16.gmra.mrb[0].mxu0 %v304
    %v454 = vpop.f32.mrb[0].mxu0
    %v455 = vadd.f32 %v229, %v454
    %v456 = vpop.f32.mrb[0].mxu0
    %v457 = vpop.f32.mrb[0].mxu0
    %v458 = vadd.f32 %v229, %v457
    %v459 = vpop.f32.mrb[0].mxu0
    %460 = vmatprep.mubr.bf16.mxu0 0
    %461 = vmatmul.mubr.bf16.gmra.mrb[0].mxu0 %v307
    %v462 = vpop.f32.mrb[0].mxu0
    %v463 = vadd.f32 %v229, %v462
    %v464 = vpop.f32.mrb[0].mxu0
    %v465 = vpop.f32.mrb[0].mxu0
    %v466 = vadd.f32 %v229, %v465
    %v467 = vpop.f32.mrb[0].mxu0
    %468 = vmatprep.mubr.bf16.mxu0 0
    %469 = vmatmul.mubr.bf16.gmra.mrb[0].mxu0 %v310
    %v470 = vpop.f32.mrb[0].mxu0
    %v471 = vadd.f32 %v229, %v470
    %v472 = vpop.f32.mrb[0].mxu0
    %v473 = vpop.f32.mrb[0].mxu0
    %v474 = vadd.f32 %v229, %v473
    %v475 = vpop.f32.mrb[0].mxu0
    %476 = vdwg.mxu0
    %v477 = vmax.f32 %v351, 0.0
    %v478 = vmax.f32 %v354, 0.0
    %v479 = vmax.f32 %v359, 0.0
    %v480 = vmax.f32 %v362, 0.0
    %v481 = vmax.f32 %v367, 0.0
    %v482 = vmax.f32 %v370, 0.0
    %v483 = vmax.f32 %v375, 0.0
    %v484 = vmax.f32 %v378, 0.0
    %v485 = vmax.f32 %v383, 0.0
    %v486 = vmax.f32 %v386, 0.0
    %v487 = vmax.f32 %v391, 0.0
    %v488 = vmax.f32 %v394, 0.0
    %v489 = vmax.f32 %v399, 0.0
    %v490 = vmax.f32 %v402, 0.0
    %v491 = vmax.f32 %v407, 0.0
    %v492 = vmax.f32 %v410, 0.0
    %v493 = vmax.f32 %v415, 0.0
    %v494 = vmax.f32 %v418, 0.0
    %v495 = vmax.f32 %v423, 0.0
    %v496 = vmax.f32 %v426, 0.0
    %v497 = vmax.f32 %v431, 0.0
    %v498 = vmax.f32 %v434, 0.0
    %v499 = vmax.f32 %v439, 0.0
    %v500 = vmax.f32 %v442, 0.0
    %v501 = vmax.f32 %v447, 0.0
    %v502 = vmax.f32 %v450, 0.0
    %v503 = vmax.f32 %v455, 0.0
    %v504 = vmax.f32 %v458, 0.0
    %v505 = vmax.f32 %v463, 0.0
    %v506 = vmax.f32 %v466, 0.0
    %v507 = vmax.f32 %v471, 0.0
    %v508 = vmax.f32 %v474, 0.0
    %v509 = vpack.c.bf16 %v478, %v477
    %v510 = vpack.c.bf16 %v480, %v479
    %v511 = vpack.c.bf16 %v482, %v481
    %v512 = vpack.c.bf16 %v484, %v483
    %v513 = vpack.c.bf16 %v486, %v485
    %v514 = vpack.c.bf16 %v488, %v487
    %v515 = vpack.c.bf16 %v490, %v489
    %v516 = vpack.c.bf16 %v492, %v491
    %v517 = vpack.c.bf16 %v494, %v493
    %v518 = vpack.c.bf16 %v496, %v495
    %v519 = vpack.c.bf16 %v498, %v497
    %v520 = vpack.c.bf16 %v500, %v499
    %v521 = vpack.c.bf16 %v502, %v501
    %v522 = vpack.c.bf16 %v504, %v503
    %v523 = vpack.c.bf16 %v506, %v505
    %v524 = vpack.c.bf16 %v508, %v507
    %v525 = vld [vmem:[%s5] sm:$0xf]
    %v526 = vld [vmem:[%s5 + $0x4] sm:$0xf]
    %v527 = vld [vmem:[%s5 + $0x8] sm:$0xf]
    %v528 = vld [vmem:[%s5 + $0xc] sm:$0xf]
    %v529 = vlaneseq
    %v530 = vshrl.u32 %v529, 7
    %v531 = vsub.s32 0, %v530
    %v532 = vrot.slane %v198, %v531
    %v537 = vunpack.c.l.b16 %v525
    %v538 = vunpack.c.l.b16 %v526
    %v539 = vunpack.c.l.b16 %v527
    %v540 = vunpack.c.l.b16 %v528
    %v541 = vpack.c.b16 %v538, %v537
    %v542 = vpack.c.b16 %v540, %v539
    %v546 = vsel %vm159, %v509, 0
    %v549 = vsel %vm159, %v510, 0
    %v552 = vsel %vm159, %v511, 0
    %v555 = vsel %vm159, %v512, 0
    %v558 = vsel %vm159, %v513, 0
    %v561 = vsel %vm159, %v514, 0
    %v564 = vsel %vm159, %v515, 0
    %v567 = vsel %vm159, %v516, 0
    %v570 = vsel %vm159, %v517, 0
    %v573 = vsel %vm159, %v518, 0
    %v576 = vsel %vm159, %v519, 0
    %v579 = vsel %vm159, %v520, 0
    %v582 = vsel %vm159, %v521, 0
    %v585 = vsel %vm159, %v522, 0
    %v588 = vsel %vm159, %v523, 0
    %v591 = vsel %vm159, %v524, 0
    %593 = vmatprep.subr.bf16.mxu0 0
    %594 = vmatpush1.bf16.msra.mxu0 %v541
    %595 = vmatprep.subr.bf16.mxu0 0
    %596 = vmatpush1.bf16.msra.mxu0 %v542
    %597 = vmatprep.subr.bf16.mxu0 0
    %598 = vmatpush1.bf16.msra.mxu0 0
    %599 = vmatprep.subr.bf16.mxu0 0
    %600 = vmatpush1.bf16.msra.mxu0 0
    %601 = vmatprep.subr.bf16.mxu0 0
    %602 = vmatpush1.bf16.msra.mxu0 0
    %603 = vmatprep.subr.bf16.mxu0 0
    %604 = vmatpush1.bf16.msra.mxu0 0
    %605 = vmatprep.subr.bf16.mxu0 0
    %606 = vmatpush1.bf16.msra.mxu0 0
    %607 = vmatprep.subr.bf16.mxu0 0
    %608 = vmatpush1.bf16.msra.mxu0 0
    %609 = vmatprep.subr.bf16.mxu0 0
    %610 = vmatpush1.bf16.msra.mxu0 0
    %611 = vmatprep.subr.bf16.mxu0 0
    %612 = vmatpush1.bf16.msra.mxu0 0
    %613 = vmatprep.subr.bf16.mxu0 0
    %614 = vmatpush1.bf16.msra.mxu0 0
    %615 = vmatprep.subr.bf16.mxu0 0
    %616 = vmatpush1.bf16.msra.mxu0 0
    %617 = vmatprep.subr.bf16.mxu0 0
    %618 = vmatpush1.bf16.msra.mxu0 0
    %619 = vmatprep.subr.bf16.mxu0 0
    %620 = vmatpush1.bf16.msra.mxu0 0
    %621 = vmatprep.subr.bf16.mxu0 0
    %622 = vmatpush1.bf16.msra.mxu0 0
    %623 = vmatprep.subr.bf16.mxu0 0
    %624 = vmatpush1.bf16.msra.mxu0 0
    %625 = vmatprep.mubr.bf16.mxu0 0
    %626 = vmatmul.mubr.bf16.gmra.mrb[0].mxu0 %v546
    %v627 = vpop.f32.mrb[0].mxu0
    %v628 = vadd.f32 %v532, %v627
    %v629 = vpop.f32.mrb[0].mxu0
    %v630 = vpop.f32.mrb[0].mxu0
    %v631 = vadd.f32 %v532, %v630
    %v632 = vpop.f32.mrb[0].mxu0
    %633 = vmatprep.mubr.bf16.mxu0 0
    %634 = vmatmul.mubr.bf16.gmra.mrb[0].mxu0 %v549
    %v635 = vpop.f32.mrb[0].mxu0
    %v636 = vadd.f32 %v532, %v635
    %v637 = vpop.f32.mrb[0].mxu0
    %v638 = vpop.f32.mrb[0].mxu0
    %v639 = vadd.f32 %v532, %v638
    %v640 = vpop.f32.mrb[0].mxu0
    %641 = vmatprep.mubr.bf16.mxu0 0
    %642 = vmatmul.mubr.bf16.gmra.mrb[0].mxu0 %v552
    %v643 = vpop.f32.mrb[0].mxu0
    %v644 = vadd.f32 %v532, %v643
    %v645 = vpop.f32.mrb[0].mxu0
    %v646 = vpop.f32.mrb[0].mxu0
    %v647 = vadd.f32 %v532, %v646
    %v648 = vpop.f32.mrb[0].mxu0
    %649 = vmatprep.mubr.bf16.mxu0 0
    %650 = vmatmul.mubr.bf16.gmra.mrb[0].mxu0 %v555
    %v651 = vpop.f32.mrb[0].mxu0
    %v652 = vadd.f32 %v532, %v651
    %v653 = vpop.f32.mrb[0].mxu0
    %v654 = vpop.f32.mrb[0].mxu0
    %v655 = vadd.f32 %v532, %v654
    %v656 = vpop.f32.mrb[0].mxu0
    %657 = vmatprep.mubr.bf16.mxu0 0
    %658 = vmatmul.mubr.bf16.gmra.mrb[0].mxu0 %v558
    %v659 = vpop.f32.mrb[0].mxu0
    %v660 = vadd.f32 %v532, %v659
    %v661 = vpop.f32.mrb[0].mxu0
    %v662 = vpop.f32.mrb[0].mxu0
    %v663 = vadd.f32 %v532, %v662
    %v664 = vpop.f32.mrb[0].mxu0
    %665 = vmatprep.mubr.bf16.mxu0 0
    %666 = vmatmul.mubr.bf16.gmra.mrb[0].mxu0 %v561
    %v667 = vpop.f32.mrb[0].mxu0
    %v668 = vadd.f32 %v532, %v667
    %v669 = vpop.f32.mrb[0].mxu0
    %v670 = vpop.f32.mrb[0].mxu0
    %v671 = vadd.f32 %v532, %v670
    %v672 = vpop.f32.mrb[0].mxu0
    %673 = vmatprep.mubr.bf16.mxu0 0
    %674 = vmatmul.mubr.bf16.gmra.mrb[0].mxu0 %v564
    %v675 = vpop.f32.mrb[0].mxu0
    %v676 = vadd.f32 %v532, %v675
    %v677 = vpop.f32.mrb[0].mxu0
    %v678 = vpop.f32.mrb[0].mxu0
    %v679 = vadd.f32 %v532, %v678
    %v680 = vpop.f32.mrb[0].mxu0
    %681 = vmatprep.mubr.bf16.mxu0 0
    %682 = vmatmul.mubr.bf16.gmra.mrb[0].mxu0 %v567
    %v683 = vpop.f32.mrb[0].mxu0
    %v684 = vadd.f32 %v532, %v683
    %v685 = vpop.f32.mrb[0].mxu0
    %v686 = vpop.f32.mrb[0].mxu0
    %v687 = vadd.f32 %v532, %v686
    %v688 = vpop.f32.mrb[0].mxu0
    %689 = vmatprep.mubr.bf16.mxu0 0
    %690 = vmatmul.mubr.bf16.gmra.mrb[0].mxu0 %v570
    %v691 = vpop.f32.mrb[0].mxu0
    %v692 = vadd.f32 %v532, %v691
    %v693 = vpop.f32.mrb[0].mxu0
    %v694 = vpop.f32.mrb[0].mxu0
    %v695 = vadd.f32 %v532, %v694
    %v696 = vpop.f32.mrb[0].mxu0
    %697 = vmatprep.mubr.bf16.mxu0 0
    %698 = vmatmul.mubr.bf16.gmra.mrb[0].mxu0 %v573
    %v699 = vpop.f32.mrb[0].mxu0
    %v700 = vadd.f32 %v532, %v699
    %v701 = vpop.f32.mrb[0].mxu0
    %v702 = vpop.f32.mrb[0].mxu0
    %v703 = vadd.f32 %v532, %v702
    %v704 = vpop.f32.mrb[0].mxu0
    %705 = vmatprep.mubr.bf16.mxu0 0
    %706 = vmatmul.mubr.bf16.gmra.mrb[0].mxu0 %v576
    %v707 = vpop.f32.mrb[0].mxu0
    %v708 = vadd.f32 %v532, %v707
    %v709 = vpop.f32.mrb[0].mxu0
    %v710 = vpop.f32.mrb[0].mxu0
    %v711 = vadd.f32 %v532, %v710
    %v712 = vpop.f32.mrb[0].mxu0
    %713 = vmatprep.mubr.bf16.mxu0 0
    %714 = vmatmul.mubr.bf16.gmra.mrb[0].mxu0 %v579
    %v715 = vpop.f32.mrb[0].mxu0
    %v716 = vadd.f32 %v532, %v715
    %v717 = vpop.f32.mrb[0].mxu0
    %v718 = vpop.f32.mrb[0].mxu0
    %v719 = vadd.f32 %v532, %v718
    %v720 = vpop.f32.mrb[0].mxu0
    %721 = vmatprep.mubr.bf16.mxu0 0
    %722 = vmatmul.mubr.bf16.gmra.mrb[0].mxu0 %v582
    %v723 = vpop.f32.mrb[0].mxu0
    %v724 = vadd.f32 %v532, %v723
    %v725 = vpop.f32.mrb[0].mxu0
    %v726 = vpop.f32.mrb[0].mxu0
    %v727 = vadd.f32 %v532, %v726
    %v728 = vpop.f32.mrb[0].mxu0
    %729 = vmatprep.mubr.bf16.mxu0 0
    %730 = vmatmul.mubr.bf16.gmra.mrb[0].mxu0 %v585
    %v731 = vpop.f32.mrb[0].mxu0
    %v732 = vadd.f32 %v532, %v731
    %v733 = vpop.f32.mrb[0].mxu0
    %v734 = vpop.f32.mrb[0].mxu0
    %v735 = vadd.f32 %v532, %v734
    %v736 = vpop.f32.mrb[0].mxu0
    %737 = vmatprep.mubr.bf16.mxu0 0
    %738 = vmatmul.mubr.bf16.gmra.mrb[0].mxu0 %v588
    %v739 = vpop.f32.mrb[0].mxu0
    %v740 = vadd.f32 %v532, %v739
    %v741 = vpop.f32.mrb[0].mxu0
    %v742 = vpop.f32.mrb[0].mxu0
    %v743 = vadd.f32 %v532, %v742
    %v744 = vpop.f32.mrb[0].mxu0
    %745 = vmatprep.mubr.bf16.mxu0 0
    %746 = vmatmul.mubr.bf16.gmra.mrb[0].mxu0 %v591
    %v747 = vpop.f32.mrb[0].mxu0
    %v748 = vadd.f32 %v532, %v747
    %v749 = vpop.f32.mrb[0].mxu0
    %v750 = vpop.f32.mrb[0].mxu0
    %v751 = vadd.f32 %v532, %v750
    %v752 = vpop.f32.mrb[0].mxu0
    %753 = vdwg.mxu0
    %v754 = vtanh.pop %v628
    %v755 = vtanh.pop %v631
    %v756 = vtanh.pop %v636
    %v757 = vtanh.pop %v639
    %v758 = vtanh.pop %v644
    %v759 = vtanh.pop %v647
    %v760 = vtanh.pop %v652
    %v761 = vtanh.pop %v655
    %v762 = vtanh.pop %v660
    %v763 = vtanh.pop %v663
    %v764 = vtanh.pop %v668
    %v765 = vtanh.pop %v671
    %v766 = vtanh.pop %v676
    %v767 = vtanh.pop %v679
    %v768 = vtanh.pop %v684
    %v769 = vtanh.pop %v687
    %v770 = vtanh.pop %v692
    %v771 = vtanh.pop %v695
    %v772 = vtanh.pop %v700
    %v773 = vtanh.pop %v703
    %v774 = vtanh.pop %v708
    %v775 = vtanh.pop %v711
    %v776 = vtanh.pop %v716
    %v777 = vtanh.pop %v719
    %v778 = vtanh.pop %v724
    %v779 = vtanh.pop %v727
    %v780 = vtanh.pop %v732
    %v781 = vtanh.pop %v735
    %v782 = vtanh.pop %v740
    %v783 = vtanh.pop %v743
    %v784 = vtanh.pop %v748
    %v785 = vtanh.pop %v751
    %v786 = vpack.c.bf16 %v755, %v754
    %v787 = vpack.c.bf16 %v757, %v756
    %v788 = vpack.c.bf16 %v759, %v758
    %v789 = vpack.c.bf16 %v761, %v760
    %v790 = vpack.c.bf16 %v763, %v762
    %v791 = vpack.c.bf16 %v765, %v764
    %v792 = vpack.c.bf16 %v767, %v766
    %v793 = vpack.c.bf16 %v769, %v768
    %v794 = vpack.c.bf16 %v771, %v770
    %v795 = vpack.c.bf16 %v773, %v772
    %v796 = vpack.c.bf16 %v775, %v774
    %v797 = vpack.c.bf16 %v777, %v776
    %v798 = vpack.c.bf16 %v779, %v778
    %v799 = vpack.c.bf16 %v781, %v780
    %v800 = vpack.c.bf16 %v783, %v782
    %v801 = vpack.c.bf16 %v785, %v784
    %v803 = vsel %vm159, %v203, 0
    %v806 = vsel %vm159, %v786, 0
    %v809 = vsel %vm159, %v787, 0
    %v812 = vsel %vm159, %v788, 0
    %v815 = vsel %vm159, %v789, 0
    %v818 = vsel %vm159, %v790, 0
    %v821 = vsel %vm159, %v791, 0
    %v824 = vsel %vm159, %v792, 0
    %v827 = vsel %vm159, %v793, 0
    %v830 = vsel %vm159, %v794, 0
    %v833 = vsel %vm159, %v795, 0
    %v836 = vsel %vm159, %v796, 0
    %v839 = vsel %vm159, %v797, 0
    %v842 = vsel %vm159, %v798, 0
    %v845 = vsel %vm159, %v799, 0
    %v848 = vsel %vm159, %v800, 0
    %v851 = vsel %vm159, %v801, 0
    %853 = vmatprep.subr.bf16.mxu0 0
    %854 = vmatpush1.bf16.xpose.msra.mxu0 %v806
    %855 = vmatprep.subr.bf16.mxu0 0
    %856 = vmatpush1.bf16.xpose.msra.mxu0 %v809
    %857 = vmatprep.subr.bf16.mxu0 0
    %858 = vmatpush1.bf16.xpose.msra.mxu0 %v812
    %859 = vmatprep.subr.bf16.mxu0 0
    %860 = vmatpush1.bf16.xpose.msra.mxu0 %v815
    %861 = vmatprep.subr.bf16.mxu0 0
    %862 = vmatpush1.bf16.xpose.msra.mxu0 %v818
    %863 = vmatprep.subr.bf16.mxu0 0
    %864 = vmatpush1.bf16.xpose.msra.mxu0 %v821
    %865 = vmatprep.subr.bf16.mxu0 0
    %866 = vmatpush1.bf16.xpose.msra.mxu0 %v824
    %867 = vmatprep.subr.bf16.mxu0 0
    %868 = vmatpush1.bf16.xpose.msra.mxu0 %v827
    %869 = vmatprep.subr.bf16.mxu0 0
    %870 = vmatpush1.bf16.xpose.msra.mxu0 %v830
    %871 = vmatprep.subr.bf16.mxu0 0
    %872 = vmatpush1.bf16.xpose.msra.mxu0 %v833
    %873 = vmatprep.subr.bf16.mxu0 0
    %874 = vmatpush1.bf16.xpose.msra.mxu0 %v836
    %875 = vmatprep.subr.bf16.mxu0 0
    %876 = vmatpush1.bf16.xpose.msra.mxu0 %v839
    %877 = vmatprep.subr.bf16.mxu0 0
    %878 = vmatpush1.bf16.xpose.msra.mxu0 %v842
    %879 = vmatprep.subr.bf16.mxu0 0
    %880 = vmatpush1.bf16.xpose.msra.mxu0 %v845
    %881 = vmatprep.subr.bf16.mxu0 0
    %882 = vmatpush1.bf16.xpose.msra.mxu0 %v848
    %883 = vmatprep.subr.bf16.mxu0 0
    %884 = vmatpush1.bf16.xpose.msra.mxu0 %v851
    %885 = vmatprep.mubr.bf16.mxu0 0
    %886 = vmatmul.mubr.bf16.gmra.mrb[0].mxu0 %v803
    %v887 = vpop.f32.mrb[0].mxu0
    %v888 = vadd.f32 0.0, %v887
    %v889 = vpop.f32.mrb[0].mxu0
    %v890 = vadd.f32 0.0, %v889
    %v891 = vpop.f32.mrb[0].mxu0
    %v892 = vpop.f32.mrb[0].mxu0
    %893 = vdwg.mxu0
    %v894 = vsel %vm312, %v888, -inf
    %v895 = vsel %vm312, %v890, -inf
    %v896 = vmax.f32 %v894, %v895
    %897 = vmax.xlane.f32.xlu0 %v896
    %v898 = vpop.xlane.xlu0 %897
    %v899 = vsub.f32 %v888, %v898
    %v900 = vsub.f32 %v890, %v898
    %v901 = vmul.f32 %v899, 1.442695
    %v902 = vpow.pop %v901
    %v903 = vmul.f32 %v900, 1.442695
    %v904 = vpow.pop %v903
    %v905 = vsel %vm312, %v902, 0.0
    %v906 = vsel %vm312, %v904, 0.0
    %v907 = vadd.f32 %v905, %v906
    %908 = vadd.xlane.f32.xlu0 %v907
    %v909 = vpop.xlane.xlu0 %908
    %v910 = vrcp.pop %v909
    %v911 = vmul.f32 %v902, %v910
    %v912 = vmul.f32 %v904, %v910
    %v915 = vcombine.low %v911, %v912
    %v917 = vunpack.c.l.s4 1983009808
    %v918 = vunpack.c.0.s8 %v917
    %v919 = vlaneseq
    %v920 = vshrl.u32 %v919, 7
    %v921 = vsub.s32 %v918, %v920
    %v922 = vrot.slane %v915, %v921
    %924 = vst [vmem:[%s16] sm:$0xf] %v922
    %v925 = vpack.c.bf16 %v911, %v911
    %v926 = vpack.c.bf16 %v912, %v912
    %927 = vmatprep.subr.bf16.mxu0 0
    %928 = vmatpush1.bf16.msra.mxu0 %v509
    %929 = vmatprep.subr.bf16.mxu0 0
    %930 = vmatpush1.bf16.msra.mxu0 %v510
    %931 = vmatprep.subr.bf16.mxu0 0
    %932 = vmatpush1.bf16.msra.mxu0 %v511
    %933 = vmatprep.subr.bf16.mxu0 0
    %934 = vmatpush1.bf16.msra.mxu0 %v512
    %935 = vmatprep.subr.bf16.mxu0 0
    %936 = vmatpush1.bf16.msra.mxu0 %v513
    %937 = vmatprep.subr.bf16.mxu0 0
    %938 = vmatpush1.bf16.msra.mxu0 %v514
    %939 = vmatprep.subr.bf16.mxu0 0
    %940 = vmatpush1.bf16.msra.mxu0 %v515
    %941 = vmatprep.subr.bf16.mxu0 0
    %942 = vmatpush1.bf16.msra.mxu0 %v516
    %943 = vmatprep.subr.bf16.mxu0 0
    %944 = vmatpush1.bf16.msra.mxu0 %v517
    %945 = vmatprep.subr.bf16.mxu0 0
    %946 = vmatpush1.bf16.msra.mxu0 %v518
    %947 = vmatprep.subr.bf16.mxu0 0
    %948 = vmatpush1.bf16.msra.mxu0 %v519
    %949 = vmatprep.subr.bf16.mxu0 0
    %950 = vmatpush1.bf16.msra.mxu0 %v520
    %951 = vmatprep.subr.bf16.mxu0 0
    %952 = vmatpush1.bf16.msra.mxu0 %v521
    %953 = vmatprep.subr.bf16.mxu0 0
    %954 = vmatpush1.bf16.msra.mxu0 %v522
    %955 = vmatprep.subr.bf16.mxu0 0
    %956 = vmatpush1.bf16.msra.mxu0 %v523
    %957 = vmatprep.subr.bf16.mxu0 0
    %958 = vmatpush1.bf16.msra.mxu0 %v524
    %959 = vmatprep.mubr.bf16.mxu0 %v926
    %960 = vmatmul.mubr.bf16.gmra.mrb[0].mxu0 %v925
    %v961 = vpop.f32.mrb[0].mxu0
    %v962 = vadd.f32 0.0, %v961
    %v963 = vpop.f32.mrb[0].mxu0
    %v964 = vpop.f32.mrb[0].mxu0
    %v965 = vpop.f32.mrb[0].mxu0
    %966 = vdwg.mxu0
    %vm967 = vcmask 254976
    %968 = vst.msk [vmem:[#allocation2] sm:$0x3] %vm967, %v962
    %s969 = scalar_lea.vmem %s0, 8
    %v970 = vld [vmem:[%s969] sm:$0xff]
    %s971 = scalar_lea.vmem %s1, 2
    %v972 = vld [vmem:[%s971] sm:$0x3]
    %v974 = vlaneseq
    %v975 = vshrl.u32 %v974, 7
    %v976 = vsub.s32 0, %v975
    %v977 = vrot.slane %v972, %v976
    %v978 = vlaneseq
    %v979 = vshrl.u32 %v978, 7
    %v980 = vsub.s32 1, %v979
    %v981 = vrot.slane %v972, %v980
    %v982 = vcombine.low %v977, %v981
    %v984 = vmul.f32 %v970, %v982
    %v986 = vcombine.high %v984, %v984
    %v988 = vpack.c.bf16 %v984, %v984
    %v989 = vpack.c.bf16 %v986, %v986
    %v990 = vld [vmem:[%s3] sm:$0x3]
    %v991 = vld [vmem:[%s4] sm:$0x1]
    %v993 = vlaneseq
    %v994 = vshrl.u32 %v993, 7
    %v995 = vsub.s32 0, %v994
    %v996 = vrot.slane %v991, %v995
    %998 = vxpose.xlu0.c.b16.start [1/8] %v988, 128
    %999 = vxpose.xlu0.c.b16.cont [2/8] 0, 128
    %1000 = vxpose.xlu0.c.b16.cont [3/8] 0, 128
    %1001 = vxpose.xlu0.c.b16.cont [4/8] 0, 128
    %1002 = vxpose.xlu0.c.b16.cont [5/8] 0, 128
    %1003 = vxpose.xlu0.c.b16.cont [6/8] 0, 128
    %1004 = vxpose.xlu0.c.b16.cont [7/8] 0, 128
    %1005 = vxpose.xlu0.c.b16.end [8/8] 0, 128
    %v1006 = vpop.trf.xlu0
    %v1007 = vpop.trf.xlu0
    %v1008 = vpop.trf.xlu0
    %v1009 = vpop.trf.xlu0
    %v1010 = vpop.trf.xlu0
    %v1011 = vpop.trf.xlu0
    %v1012 = vpop.trf.xlu0
    %v1013 = vpop.trf.xlu0
    %1014 = vxpose.xlu0.c.b16.start [1/8] %v989, 128
    %1015 = vxpose.xlu0.c.b16.cont [2/8] 0, 128
    %1016 = vxpose.xlu0.c.b16.cont [3/8] 0, 128
    %1017 = vxpose.xlu0.c.b16.cont [4/8] 0, 128
    %1018 = vxpose.xlu0.c.b16.cont [5/8] 0, 128
    %1019 = vxpose.xlu0.c.b16.cont [6/8] 0, 128
    %1020 = vxpose.xlu0.c.b16.cont [7/8] 0, 128
    %1021 = vxpose.xlu0.c.b16.end [8/8] 0, 128
    %v1022 = vpop.trf.xlu0
    %v1023 = vpop.trf.xlu0
    %v1024 = vpop.trf.xlu0
    %v1025 = vpop.trf.xlu0
    %v1026 = vpop.trf.xlu0
    %v1027 = vpop.trf.xlu0
    %v1028 = vpop.trf.xlu0
    %v1029 = vpop.trf.xlu0
    %v1031 = vsel %vm263, %v1006, 0
    %v1034 = vsel %vm263, %v1007, 0
    %v1037 = vsel %vm263, %v1008, 0
    %v1040 = vsel %vm263, %v1009, 0
    %v1043 = vsel %vm263, %v1010, 0
    %v1046 = vsel %vm263, %v1011, 0
    %v1049 = vsel %vm263, %v1012, 0
    %v1052 = vsel %vm263, %v1013, 0
    %v1055 = vsel %vm263, %v1022, 0
    %v1058 = vsel %vm263, %v1023, 0
    %v1061 = vsel %vm263, %v1024, 0
    %v1064 = vsel %vm263, %v1025, 0
    %v1067 = vsel %vm263, %v1026, 0
    %v1070 = vsel %vm263, %v1027, 0
    %v1073 = vsel %vm263, %v1028, 0
    %v1076 = vsel %vm263, %v1029, 0
    %v1079 = vsel %vm312, %v990, 0
    %1081 = vmatprep.subr.bf16.mxu0 0
    %1082 = vmatpush1.bf16.msra.mxu0 %v1079
    %1083 = vmatprep.subr.bf16.mxu0 0
    %1084 = vmatpush1.bf16.msra.mxu0 0
    %1085 = vmatprep.subr.bf16.mxu0 0
    %1086 = vmatpush1.bf16.msra.mxu0 0
    %1087 = vmatprep.subr.bf16.mxu0 0
    %1088 = vmatpush1.bf16.msra.mxu0 0
    %1089 = vmatprep.subr.bf16.mxu0 0
    %1090 = vmatpush1.bf16.msra.mxu0 0
    %1091 = vmatprep.subr.bf16.mxu0 0
    %1092 = vmatpush1.bf16.msra.mxu0 0
    %1093 = vmatprep.subr.bf16.mxu0 0
    %1094 = vmatpush1.bf16.msra.mxu0 0
    %1095 = vmatprep.subr.bf16.mxu0 0
    %1096 = vmatpush1.bf16.msra.mxu0 0
    %1097 = vmatprep.subr.bf16.mxu0 0
    %1098 = vmatpush1.bf16.msra.mxu0 0
    %1099 = vmatprep.subr.bf16.mxu0 0
    %1100 = vmatpush1.bf16.msra.mxu0 0
    %1101 = vmatprep.subr.bf16.mxu0 0
    %1102 = vmatpush1.bf16.msra.mxu0 0
    %1103 = vmatprep.subr.bf16.mxu0 0
    %1104 = vmatpush1.bf16.msra.mxu0 0
    %1105 = vmatprep.subr.bf16.mxu0 0
    %1106 = vmatpush1.bf16.msra.mxu0 0
    %1107 = vmatprep.subr.bf16.mxu0 0
    %1108 = vmatpush1.bf16.msra.mxu0 0
    %1109 = vmatprep.subr.bf16.mxu0 0
    %1110 = vmatpush1.bf16.msra.mxu0 0
    %1111 = vmatprep.subr.bf16.mxu0 0
    %1112 = vmatpush1.bf16.msra.mxu0 0
    %1113 = vmatprep.mubr.bf16.mxu0 0
    %1114 = vmatmul.mubr.bf16.gmra.mrb[0].mxu0 %v1031
    %v1115 = vpop.f32.mrb[0].mxu0
    %v1116 = vadd.f32 %v996, %v1115
    %v1117 = vpop.f32.mrb[0].mxu0
    %v1118 = vpop.f32.mrb[0].mxu0
    %v1119 = vadd.f32 %v996, %v1118
    %v1120 = vpop.f32.mrb[0].mxu0
    %1121 = vmatprep.mubr.bf16.mxu0 0
    %1122 = vmatmul.mubr.bf16.gmra.mrb[0].mxu0 %v1034
    %v1123 = vpop.f32.mrb[0].mxu0
    %v1124 = vadd.f32 %v996, %v1123
    %v1125 = vpop.f32.mrb[0].mxu0
    %v1126 = vpop.f32.mrb[0].mxu0
    %v1127 = vadd.f32 %v996, %v1126
    %v1128 = vpop.f32.mrb[0].mxu0
    %1129 = vmatprep.mubr.bf16.mxu0 0
    %1130 = vmatmul.mubr.bf16.gmra.mrb[0].mxu0 %v1037
    %v1131 = vpop.f32.mrb[0].mxu0
    %v1132 = vadd.f32 %v996, %v1131
    %v1133 = vpop.f32.mrb[0].mxu0
    %v1134 = vpop.f32.mrb[0].mxu0
    %v1135 = vadd.f32 %v996, %v1134
    %v1136 = vpop.f32.mrb[0].mxu0
    %1137 = vmatprep.mubr.bf16.mxu0 0
    %1138 = vmatmul.mubr.bf16.gmra.mrb[0].mxu0 %v1040
    %v1139 = vpop.f32.mrb[0].mxu0
    %v1140 = vadd.f32 %v996, %v1139
    %v1141 = vpop.f32.mrb[0].mxu0
    %v1142 = vpop.f32.mrb[0].mxu0
    %v1143 = vadd.f32 %v996, %v1142
    %v1144 = vpop.f32.mrb[0].mxu0
    %1145 = vmatprep.mubr.bf16.mxu0 0
    %1146 = vmatmul.mubr.bf16.gmra.mrb[0].mxu0 %v1043
    %v1147 = vpop.f32.mrb[0].mxu0
    %v1148 = vadd.f32 %v996, %v1147
    %v1149 = vpop.f32.mrb[0].mxu0
    %v1150 = vpop.f32.mrb[0].mxu0
    %v1151 = vadd.f32 %v996, %v1150
    %v1152 = vpop.f32.mrb[0].mxu0
    %1153 = vmatprep.mubr.bf16.mxu0 0
    %1154 = vmatmul.mubr.bf16.gmra.mrb[0].mxu0 %v1046
    %v1155 = vpop.f32.mrb[0].mxu0
    %v1156 = vadd.f32 %v996, %v1155
    %v1157 = vpop.f32.mrb[0].mxu0
    %v1158 = vpop.f32.mrb[0].mxu0
    %v1159 = vadd.f32 %v996, %v1158
    %v1160 = vpop.f32.mrb[0].mxu0
    %1161 = vmatprep.mubr.bf16.mxu0 0
    %1162 = vmatmul.mubr.bf16.gmra.mrb[0].mxu0 %v1049
    %v1163 = vpop.f32.mrb[0].mxu0
    %v1164 = vadd.f32 %v996, %v1163
    %v1165 = vpop.f32.mrb[0].mxu0
    %v1166 = vpop.f32.mrb[0].mxu0
    %v1167 = vadd.f32 %v996, %v1166
    %v1168 = vpop.f32.mrb[0].mxu0
    %1169 = vmatprep.mubr.bf16.mxu0 0
    %1170 = vmatmul.mubr.bf16.gmra.mrb[0].mxu0 %v1052
    %v1171 = vpop.f32.mrb[0].mxu0
    %v1172 = vadd.f32 %v996, %v1171
    %v1173 = vpop.f32.mrb[0].mxu0
    %v1174 = vpop.f32.mrb[0].mxu0
    %v1175 = vadd.f32 %v996, %v1174
    %v1176 = vpop.f32.mrb[0].mxu0
    %1177 = vmatprep.mubr.bf16.mxu0 0
    %1178 = vmatmul.mubr.bf16.gmra.mrb[0].mxu0 %v1055
    %v1179 = vpop.f32.mrb[0].mxu0
    %v1180 = vadd.f32 %v996, %v1179
    %v1181 = vpop.f32.mrb[0].mxu0
    %v1182 = vpop.f32.mrb[0].mxu0
    %v1183 = vadd.f32 %v996, %v1182
    %v1184 = vpop.f32.mrb[0].mxu0
    %1185 = vmatprep.mubr.bf16.mxu0 0
    %1186 = vmatmul.mubr.bf16.gmra.mrb[0].mxu0 %v1058
    %v1187 = vpop.f32.mrb[0].mxu0
    %v1188 = vadd.f32 %v996, %v1187
    %v1189 = vpop.f32.mrb[0].mxu0
    %v1190 = vpop.f32.mrb[0].mxu0
    %v1191 = vadd.f32 %v996, %v1190
    %v1192 = vpop.f32.mrb[0].mxu0
    %1193 = vmatprep.mubr.bf16.mxu0 0
    %1194 = vmatmul.mubr.bf16.gmra.mrb[0].mxu0 %v1061
    %v1195 = vpop.f32.mrb[0].mxu0
    %v1196 = vadd.f32 %v996, %v1195
    %v1197 = vpop.f32.mrb[0].mxu0
    %v1198 = vpop.f32.mrb[0].mxu0
    %v1199 = vadd.f32 %v996, %v1198
    %v1200 = vpop.f32.mrb[0].mxu0
    %1201 = vmatprep.mubr.bf16.mxu0 0
    %1202 = vmatmul.mubr.bf16.gmra.mrb[0].mxu0 %v1064
    %v1203 = vpop.f32.mrb[0].mxu0
    %v1204 = vadd.f32 %v996, %v1203
    %v1205 = vpop.f32.mrb[0].mxu0
    %v1206 = vpop.f32.mrb[0].mxu0
    %v1207 = vadd.f32 %v996, %v1206
    %v1208 = vpop.f32.mrb[0].mxu0
    %1209 = vmatprep.mubr.bf16.mxu0 0
    %1210 = vmatmul.mubr.bf16.gmra.mrb[0].mxu0 %v1067
    %v1211 = vpop.f32.mrb[0].mxu0
    %v1212 = vadd.f32 %v996, %v1211
    %v1213 = vpop.f32.mrb[0].mxu0
    %v1214 = vpop.f32.mrb[0].mxu0
    %v1215 = vadd.f32 %v996, %v1214
    %v1216 = vpop.f32.mrb[0].mxu0
    %1217 = vmatprep.mubr.bf16.mxu0 0
    %1218 = vmatmul.mubr.bf16.gmra.mrb[0].mxu0 %v1070
    %v1219 = vpop.f32.mrb[0].mxu0
    %v1220 = vadd.f32 %v996, %v1219
    %v1221 = vpop.f32.mrb[0].mxu0
    %v1222 = vpop.f32.mrb[0].mxu0
    %v1223 = vadd.f32 %v996, %v1222
    %v1224 = vpop.f32.mrb[0].mxu0
    %1225 = vmatprep.mubr.bf16.mxu0 0
    %1226 = vmatmul.mubr.bf16.gmra.mrb[0].mxu0 %v1073
    %v1227 = vpop.f32.mrb[0].mxu0
    %v1228 = vadd.f32 %v996, %v1227
    %v1229 = vpop.f32.mrb[0].mxu0
    %v1230 = vpop.f32.mrb[0].mxu0
    %v1231 = vadd.f32 %v996, %v1230
    %v1232 = vpop.f32.mrb[0].mxu0
    %1233 = vmatprep.mubr.bf16.mxu0 0
    %1234 = vmatmul.mubr.bf16.gmra.mrb[0].mxu0 %v1076
    %v1235 = vpop.f32.mrb[0].mxu0
    %v1236 = vadd.f32 %v996, %v1235
    %v1237 = vpop.f32.mrb[0].mxu0
    %v1238 = vpop.f32.mrb[0].mxu0
    %v1239 = vadd.f32 %v996, %v1238
    %v1240 = vpop.f32.mrb[0].mxu0
    %1241 = vdwg.mxu0
    %v1242 = vmax.f32 %v1116, 0.0
    %v1243 = vmax.f32 %v1119, 0.0
    %v1244 = vmax.f32 %v1124, 0.0
    %v1245 = vmax.f32 %v1127, 0.0
    %v1246 = vmax.f32 %v1132, 0.0
    %v1247 = vmax.f32 %v1135, 0.0
    %v1248 = vmax.f32 %v1140, 0.0
    %v1249 = vmax.f32 %v1143, 0.0
    %v1250 = vmax.f32 %v1148, 0.0
    %v1251 = vmax.f32 %v1151, 0.0
    %v1252 = vmax.f32 %v1156, 0.0
    %v1253 = vmax.f32 %v1159, 0.0
    %v1254 = vmax.f32 %v1164, 0.0
    %v1255 = vmax.f32 %v1167, 0.0
    %v1256 = vmax.f32 %v1172, 0.0
    %v1257 = vmax.f32 %v1175, 0.0
    %v1258 = vmax.f32 %v1180, 0.0
    %v1259 = vmax.f32 %v1183, 0.0
    %v1260 = vmax.f32 %v1188, 0.0
    %v1261 = vmax.f32 %v1191, 0.0
    %v1262 = vmax.f32 %v1196, 0.0
    %v1263 = vmax.f32 %v1199, 0.0
    %v1264 = vmax.f32 %v1204, 0.0
    %v1265 = vmax.f32 %v1207, 0.0
    %v1266 = vmax.f32 %v1212, 0.0
    %v1267 = vmax.f32 %v1215, 0.0
    %v1268 = vmax.f32 %v1220, 0.0
    %v1269 = vmax.f32 %v1223, 0.0
    %v1270 = vmax.f32 %v1228, 0.0
    %v1271 = vmax.f32 %v1231, 0.0
    %v1272 = vmax.f32 %v1236, 0.0
    %v1273 = vmax.f32 %v1239, 0.0
    %v1274 = vpack.c.bf16 %v1243, %v1242
    %v1275 = vpack.c.bf16 %v1245, %v1244
    %v1276 = vpack.c.bf16 %v1247, %v1246
    %v1277 = vpack.c.bf16 %v1249, %v1248
    %v1278 = vpack.c.bf16 %v1251, %v1250
    %v1279 = vpack.c.bf16 %v1253, %v1252
    %v1280 = vpack.c.bf16 %v1255, %v1254
    %v1281 = vpack.c.bf16 %v1257, %v1256
    %v1282 = vpack.c.bf16 %v1259, %v1258
    %v1283 = vpack.c.bf16 %v1261, %v1260
    %v1284 = vpack.c.bf16 %v1263, %v1262
    %v1285 = vpack.c.bf16 %v1265, %v1264
    %v1286 = vpack.c.bf16 %v1267, %v1266
    %v1287 = vpack.c.bf16 %v1269, %v1268
    %v1288 = vpack.c.bf16 %v1271, %v1270
    %v1289 = vpack.c.bf16 %v1273, %v1272
    %v1290 = vld [vmem:[%s5] sm:$0xf]
    %v1291 = vld [vmem:[%s5 + $0x4] sm:$0xf]
    %v1292 = vld [vmem:[%s5 + $0x8] sm:$0xf]
    %v1293 = vld [vmem:[%s5 + $0xc] sm:$0xf]
    %v1294 = vlaneseq
    %v1295 = vshrl.u32 %v1294, 7
    %v1296 = vsub.s32 1, %v1295
    %v1297 = vrot.slane %v198, %v1296
    %v1302 = vunpack.c.l.b16 %v1290
    %v1303 = vunpack.c.l.b16 %v1291
    %v1304 = vunpack.c.l.b16 %v1292
    %v1305 = vunpack.c.l.b16 %v1293
    %v1306 = vpack.c.b16 %v1303, %v1302
    %v1307 = vpack.c.b16 %v1305, %v1304
    %v1311 = vsel %vm159, %v1274, 0
    %v1314 = vsel %vm159, %v1275, 0
    %v1317 = vsel %vm159, %v1276, 0
    %v1320 = vsel %vm159, %v1277, 0
    %v1323 = vsel %vm159, %v1278, 0
    %v1326 = vsel %vm159, %v1279, 0
    %v1329 = vsel %vm159, %v1280, 0
    %v1332 = vsel %vm159, %v1281, 0
    %v1335 = vsel %vm159, %v1282, 0
    %v1338 = vsel %vm159, %v1283, 0
    %v1341 = vsel %vm159, %v1284, 0
    %v1344 = vsel %vm159, %v1285, 0
    %v1347 = vsel %vm159, %v1286, 0
    %v1350 = vsel %vm159, %v1287, 0
    %v1353 = vsel %vm159, %v1288, 0
    %v1356 = vsel %vm159, %v1289, 0
    %1358 = vmatprep.subr.bf16.mxu0 0
    %1359 = vmatpush1.bf16.msra.mxu0 %v1306
    %1360 = vmatprep.subr.bf16.mxu0 0
    %1361 = vmatpush1.bf16.msra.mxu0 %v1307
    %1362 = vmatprep.subr.bf16.mxu0 0
    %1363 = vmatpush1.bf16.msra.mxu0 0
    %1364 = vmatprep.subr.bf16.mxu0 0
    %1365 = vmatpush1.bf16.msra.mxu0 0
    %1366 = vmatprep.subr.bf16.mxu0 0
    %1367 = vmatpush1.bf16.msra.mxu0 0
    %1368 = vmatprep.subr.bf16.mxu0 0
    %1369 = vmatpush1.bf16.msra.mxu0 0
    %1370 = vmatprep.subr.bf16.mxu0 0
    %1371 = vmatpush1.bf16.msra.mxu0 0
    %1372 = vmatprep.subr.bf16.mxu0 0
    %1373 = vmatpush1.bf16.msra.mxu0 0
    %1374 = vmatprep.subr.bf16.mxu0 0
    %1375 = vmatpush1.bf16.msra.mxu0 0
    %1376 = vmatprep.subr.bf16.mxu0 0
    %1377 = vmatpush1.bf16.msra.mxu0 0
    %1378 = vmatprep.subr.bf16.mxu0 0
    %1379 = vmatpush1.bf16.msra.mxu0 0
    %1380 = vmatprep.subr.bf16.mxu0 0
    %1381 = vmatpush1.bf16.msra.mxu0 0
    %1382 = vmatprep.subr.bf16.mxu0 0
    %1383 = vmatpush1.bf16.msra.mxu0 0
    %1384 = vmatprep.subr.bf16.mxu0 0
    %1385 = vmatpush1.bf16.msra.mxu0 0
    %1386 = vmatprep.subr.bf16.mxu0 0
    %1387 = vmatpush1.bf16.msra.mxu0 0
    %1388 = vmatprep.subr.bf16.mxu0 0
    %1389 = vmatpush1.bf16.msra.mxu0 0
    %1390 = vmatprep.mubr.bf16.mxu0 0
    %1391 = vmatmul.mubr.bf16.gmra.mrb[0].mxu0 %v1311
    %v1392 = vpop.f32.mrb[0].mxu0
    %v1393 = vadd.f32 %v1297, %v1392
    %v1394 = vpop.f32.mrb[0].mxu0
    %v1395 = vpop.f32.mrb[0].mxu0
    %v1396 = vadd.f32 %v1297, %v1395
    %v1397 = vpop.f32.mrb[0].mxu0
    %1398 = vmatprep.mubr.bf16.mxu0 0
    %1399 = vmatmul.mubr.bf16.gmra.mrb[0].mxu0 %v1314
    %v1400 = vpop.f32.mrb[0].mxu0
    %v1401 = vadd.f32 %v1297, %v1400
    %v1402 = vpop.f32.mrb[0].mxu0
    %v1403 = vpop.f32.mrb[0].mxu0
    %v1404 = vadd.f32 %v1297, %v1403
    %v1405 = vpop.f32.mrb[0].mxu0
    %1406 = vmatprep.mubr.bf16.mxu0 0
    %1407 = vmatmul.mubr.bf16.gmra.mrb[0].mxu0 %v1317
    %v1408 = vpop.f32.mrb[0].mxu0
    %v1409 = vadd.f32 %v1297, %v1408
    %v1410 = vpop.f32.mrb[0].mxu0
    %v1411 = vpop.f32.mrb[0].mxu0
    %v1412 = vadd.f32 %v1297, %v1411
    %v1413 = vpop.f32.mrb[0].mxu0
    %1414 = vmatprep.mubr.bf16.mxu0 0
    %1415 = vmatmul.mubr.bf16.gmra.mrb[0].mxu0 %v1320
    %v1416 = vpop.f32.mrb[0].mxu0
    %v1417 = vadd.f32 %v1297, %v1416
    %v1418 = vpop.f32.mrb[0].mxu0
    %v1419 = vpop.f32.mrb[0].mxu0
    %v1420 = vadd.f32 %v1297, %v1419
    %v1421 = vpop.f32.mrb[0].mxu0
    %1422 = vmatprep.mubr.bf16.mxu0 0
    %1423 = vmatmul.mubr.bf16.gmra.mrb[0].mxu0 %v1323
    %v1424 = vpop.f32.mrb[0].mxu0
    %v1425 = vadd.f32 %v1297, %v1424
    %v1426 = vpop.f32.mrb[0].mxu0
    %v1427 = vpop.f32.mrb[0].mxu0
    %v1428 = vadd.f32 %v1297, %v1427
    %v1429 = vpop.f32.mrb[0].mxu0
    %1430 = vmatprep.mubr.bf16.mxu0 0
    %1431 = vmatmul.mubr.bf16.gmra.mrb[0].mxu0 %v1326
    %v1432 = vpop.f32.mrb[0].mxu0
    %v1433 = vadd.f32 %v1297, %v1432
    %v1434 = vpop.f32.mrb[0].mxu0
    %v1435 = vpop.f32.mrb[0].mxu0
    %v1436 = vadd.f32 %v1297, %v1435
    %v1437 = vpop.f32.mrb[0].mxu0
    %1438 = vmatprep.mubr.bf16.mxu0 0
    %1439 = vmatmul.mubr.bf16.gmra.mrb[0].mxu0 %v1329
    %v1440 = vpop.f32.mrb[0].mxu0
    %v1441 = vadd.f32 %v1297, %v1440
    %v1442 = vpop.f32.mrb[0].mxu0
    %v1443 = vpop.f32.mrb[0].mxu0
    %v1444 = vadd.f32 %v1297, %v1443
    %v1445 = vpop.f32.mrb[0].mxu0
    %1446 = vmatprep.mubr.bf16.mxu0 0
    %1447 = vmatmul.mubr.bf16.gmra.mrb[0].mxu0 %v1332
    %v1448 = vpop.f32.mrb[0].mxu0
    %v1449 = vadd.f32 %v1297, %v1448
    %v1450 = vpop.f32.mrb[0].mxu0
    %v1451 = vpop.f32.mrb[0].mxu0
    %v1452 = vadd.f32 %v1297, %v1451
    %v1453 = vpop.f32.mrb[0].mxu0
    %1454 = vmatprep.mubr.bf16.mxu0 0
    %1455 = vmatmul.mubr.bf16.gmra.mrb[0].mxu0 %v1335
    %v1456 = vpop.f32.mrb[0].mxu0
    %v1457 = vadd.f32 %v1297, %v1456
    %v1458 = vpop.f32.mrb[0].mxu0
    %v1459 = vpop.f32.mrb[0].mxu0
    %v1460 = vadd.f32 %v1297, %v1459
    %v1461 = vpop.f32.mrb[0].mxu0
    %1462 = vmatprep.mubr.bf16.mxu0 0
    %1463 = vmatmul.mubr.bf16.gmra.mrb[0].mxu0 %v1338
    %v1464 = vpop.f32.mrb[0].mxu0
    %v1465 = vadd.f32 %v1297, %v1464
    %v1466 = vpop.f32.mrb[0].mxu0
    %v1467 = vpop.f32.mrb[0].mxu0
    %v1468 = vadd.f32 %v1297, %v1467
    %v1469 = vpop.f32.mrb[0].mxu0
    %1470 = vmatprep.mubr.bf16.mxu0 0
    %1471 = vmatmul.mubr.bf16.gmra.mrb[0].mxu0 %v1341
    %v1472 = vpop.f32.mrb[0].mxu0
    %v1473 = vadd.f32 %v1297, %v1472
    %v1474 = vpop.f32.mrb[0].mxu0
    %v1475 = vpop.f32.mrb[0].mxu0
    %v1476 = vadd.f32 %v1297, %v1475
    %v1477 = vpop.f32.mrb[0].mxu0
    %1478 = vmatprep.mubr.bf16.mxu0 0
    %1479 = vmatmul.mubr.bf16.gmra.mrb[0].mxu0 %v1344
    %v1480 = vpop.f32.mrb[0].mxu0
    %v1481 = vadd.f32 %v1297, %v1480
    %v1482 = vpop.f32.mrb[0].mxu0
    %v1483 = vpop.f32.mrb[0].mxu0
    %v1484 = vadd.f32 %v1297, %v1483
    %v1485 = vpop.f32.mrb[0].mxu0
    %1486 = vmatprep.mubr.bf16.mxu0 0
    %1487 = vmatmul.mubr.bf16.gmra.mrb[0].mxu0 %v1347
    %v1488 = vpop.f32.mrb[0].mxu0
    %v1489 = vadd.f32 %v1297, %v1488
    %v1490 = vpop.f32.mrb[0].mxu0
    %v1491 = vpop.f32.mrb[0].mxu0
    %v1492 = vadd.f32 %v1297, %v1491
    %v1493 = vpop.f32.mrb[0].mxu0
    %1494 = vmatprep.mubr.bf16.mxu0 0
    %1495 = vmatmul.mubr.bf16.gmra.mrb[0].mxu0 %v1350
    %v1496 = vpop.f32.mrb[0].mxu0
    %v1497 = vadd.f32 %v1297, %v1496
    %v1498 = vpop.f32.mrb[0].mxu0
    %v1499 = vpop.f32.mrb[0].mxu0
    %v1500 = vadd.f32 %v1297, %v1499
    %v1501 = vpop.f32.mrb[0].mxu0
    %1502 = vmatprep.mubr.bf16.mxu0 0
    %1503 = vmatmul.mubr.bf16.gmra.mrb[0].mxu0 %v1353
    %v1504 = vpop.f32.mrb[0].mxu0
    %v1505 = vadd.f32 %v1297, %v1504
    %v1506 = vpop.f32.mrb[0].mxu0
    %v1507 = vpop.f32.mrb[0].mxu0
    %v1508 = vadd.f32 %v1297, %v1507
    %v1509 = vpop.f32.mrb[0].mxu0
    %1510 = vmatprep.mubr.bf16.mxu0 0
    %1511 = vmatmul.mubr.bf16.gmra.mrb[0].mxu0 %v1356
    %v1512 = vpop.f32.mrb[0].mxu0
    %v1513 = vadd.f32 %v1297, %v1512
    %v1514 = vpop.f32.mrb[0].mxu0
    %v1515 = vpop.f32.mrb[0].mxu0
    %v1516 = vadd.f32 %v1297, %v1515
    %v1517 = vpop.f32.mrb[0].mxu0
    %1518 = vdwg.mxu0
    %v1519 = vtanh.pop %v1393
    %v1520 = vtanh.pop %v1396
    %v1521 = vtanh.pop %v1401
    %v1522 = vtanh.pop %v1404
    %v1523 = vtanh.pop %v1409
    %v1524 = vtanh.pop %v1412
    %v1525 = vtanh.pop %v1417
    %v1526 = vtanh.pop %v1420
    %v1527 = vtanh.pop %v1425
    %v1528 = vtanh.pop %v1428
    %v1529 = vtanh.pop %v1433
    %v1530 = vtanh.pop %v1436
    %v1531 = vtanh.pop %v1441
    %v1532 = vtanh.pop %v1444
    %v1533 = vtanh.pop %v1449
    %v1534 = vtanh.pop %v1452
    %v1535 = vtanh.pop %v1457
    %v1536 = vtanh.pop %v1460
    %v1537 = vtanh.pop %v1465
    %v1538 = vtanh.pop %v1468
    %v1539 = vtanh.pop %v1473
    %v1540 = vtanh.pop %v1476
    %v1541 = vtanh.pop %v1481
    %v1542 = vtanh.pop %v1484
    %v1543 = vtanh.pop %v1489
    %v1544 = vtanh.pop %v1492
    %v1545 = vtanh.pop %v1497
    %v1546 = vtanh.pop %v1500
    %v1547 = vtanh.pop %v1505
    %v1548 = vtanh.pop %v1508
    %v1549 = vtanh.pop %v1513
    %v1550 = vtanh.pop %v1516
    %v1551 = vpack.c.bf16 %v1520, %v1519
    %v1552 = vpack.c.bf16 %v1522, %v1521
    %v1553 = vpack.c.bf16 %v1524, %v1523
    %v1554 = vpack.c.bf16 %v1526, %v1525
    %v1555 = vpack.c.bf16 %v1528, %v1527
    %v1556 = vpack.c.bf16 %v1530, %v1529
    %v1557 = vpack.c.bf16 %v1532, %v1531
    %v1558 = vpack.c.bf16 %v1534, %v1533
    %v1559 = vpack.c.bf16 %v1536, %v1535
    %v1560 = vpack.c.bf16 %v1538, %v1537
    %v1561 = vpack.c.bf16 %v1540, %v1539
    %v1562 = vpack.c.bf16 %v1542, %v1541
    %v1563 = vpack.c.bf16 %v1544, %v1543
    %v1564 = vpack.c.bf16 %v1546, %v1545
    %v1565 = vpack.c.bf16 %v1548, %v1547
    %v1566 = vpack.c.bf16 %v1550, %v1549
    %v1568 = vsel %vm159, %v1551, 0
    %v1571 = vsel %vm159, %v1552, 0
    %v1574 = vsel %vm159, %v1553, 0
    %v1577 = vsel %vm159, %v1554, 0
    %v1580 = vsel %vm159, %v1555, 0
    %v1583 = vsel %vm159, %v1556, 0
    %v1586 = vsel %vm159, %v1557, 0
    %v1589 = vsel %vm159, %v1558, 0
    %v1592 = vsel %vm159, %v1559, 0
    %v1595 = vsel %vm159, %v1560, 0
    %v1598 = vsel %vm159, %v1561, 0
    %v1601 = vsel %vm159, %v1562, 0
    %v1604 = vsel %vm159, %v1563, 0
    %v1607 = vsel %vm159, %v1564, 0
    %v1610 = vsel %vm159, %v1565, 0
    %v1613 = vsel %vm159, %v1566, 0
    %1615 = vmatprep.subr.bf16.mxu0 0
    %1616 = vmatpush1.bf16.xpose.msra.mxu0 %v1568
    %1617 = vmatprep.subr.bf16.mxu0 0
    %1618 = vmatpush1.bf16.xpose.msra.mxu0 %v1571
    %1619 = vmatprep.subr.bf16.mxu0 0
    %1620 = vmatpush1.bf16.xpose.msra.mxu0 %v1574
    %1621 = vmatprep.subr.bf16.mxu0 0
    %1622 = vmatpush1.bf16.xpose.msra.mxu0 %v1577
    %1623 = vmatprep.subr.bf16.mxu0 0
    %1624 = vmatpush1.bf16.xpose.msra.mxu0 %v1580
    %1625 = vmatprep.subr.bf16.mxu0 0
    %1626 = vmatpush1.bf16.xpose.msra.mxu0 %v1583
    %1627 = vmatprep.subr.bf16.mxu0 0
    %1628 = vmatpush1.bf16.xpose.msra.mxu0 %v1586
    %1629 = vmatprep.subr.bf16.mxu0 0
    %1630 = vmatpush1.bf16.xpose.msra.mxu0 %v1589
    %1631 = vmatprep.subr.bf16.mxu0 0
    %1632 = vmatpush1.bf16.xpose.msra.mxu0 %v1592
    %1633 = vmatprep.subr.bf16.mxu0 0
    %1634 = vmatpush1.bf16.xpose.msra.mxu0 %v1595
    %1635 = vmatprep.subr.bf16.mxu0 0
    %1636 = vmatpush1.bf16.xpose.msra.mxu0 %v1598
    %1637 = vmatprep.subr.bf16.mxu0 0
    %1638 = vmatpush1.bf16.xpose.msra.mxu0 %v1601
    %1639 = vmatprep.subr.bf16.mxu0 0
    %1640 = vmatpush1.bf16.xpose.msra.mxu0 %v1604
    %1641 = vmatprep.subr.bf16.mxu0 0
    %1642 = vmatpush1.bf16.xpose.msra.mxu0 %v1607
    %1643 = vmatprep.subr.bf16.mxu0 0
    %1644 = vmatpush1.bf16.xpose.msra.mxu0 %v1610
    %1645 = vmatprep.subr.bf16.mxu0 0
    %1646 = vmatpush1.bf16.xpose.msra.mxu0 %v1613
    %1647 = vmatprep.mubr.bf16.mxu0 0
    %1648 = vmatmul.mubr.bf16.gmra.mrb[0].mxu0 %v803
    %v1649 = vpop.f32.mrb[0].mxu0
    %v1650 = vadd.f32 0.0, %v1649
    %v1651 = vpop.f32.mrb[0].mxu0
    %v1652 = vadd.f32 0.0, %v1651
    %v1653 = vpop.f32.mrb[0].mxu0
    %v1654 = vpop.f32.mrb[0].mxu0
    %1655 = vdwg.mxu0
    %v1656 = vsel %vm312, %v1650, -inf
    %v1657 = vsel %vm312, %v1652, -inf
    %v1658 = vmax.f32 %v1656, %v1657
    %1659 = vmax.xlane.f32.xlu0 %v1658
    %v1660 = vpop.xlane.xlu0 %1659
    %v1661 = vsub.f32 %v1650, %v1660
    %v1662 = vsub.f32 %v1652, %v1660
    %v1663 = vmul.f32 %v1661, 1.442695
    %v1664 = vpow.pop %v1663
    %v1665 = vmul.f32 %v1662, 1.442695
    %v1666 = vpow.pop %v1665
    %v1667 = vsel %vm312, %v1664, 0.0
    %v1668 = vsel %vm312, %v1666, 0.0
    %v1669 = vadd.f32 %v1667, %v1668
    %1670 = vadd.xlane.f32.xlu0 %v1669
    %v1671 = vpop.xlane.xlu0 %1670
    %v1672 = vrcp.pop %v1671
    %v1673 = vmul.f32 %v1664, %v1672
    %v1674 = vmul.f32 %v1666, %v1672
    %v1677 = vcombine.low %v1673, %v1674
    %v1679 = vunpack.c.l.s4 1983009808
    %v1680 = vunpack.c.0.s8 %v1679
    %v1681 = vlaneseq
    %v1682 = vshrl.u32 %v1681, 7
    %v1683 = vsub.s32 %v1680, %v1682
    %v1684 = vrot.slane %v1677, %v1683
    %s1686 = scalar_lea.vmem %s16, 4
    %1687 = vst [vmem:[%s1686] sm:$0xf] %v1684
    %v1688 = vpack.c.bf16 %v1673, %v1673
    %v1689 = vpack.c.bf16 %v1674, %v1674
    %1690 = vmatprep.subr.bf16.mxu0 0
    %1691 = vmatpush1.bf16.msra.mxu0 %v1274
    %1692 = vmatprep.subr.bf16.mxu0 0
    %1693 = vmatpush1.bf16.msra.mxu0 %v1275
    %1694 = vmatprep.subr.bf16.mxu0 0
    %1695 = vmatpush1.bf16.msra.mxu0 %v1276
    %1696 = vmatprep.subr.bf16.mxu0 0
    %1697 = vmatpush1.bf16.msra.mxu0 %v1277
    %1698 = vmatprep.subr.bf16.mxu0 0
    %1699 = vmatpush1.bf16.msra.mxu0 %v1278
    %1700 = vmatprep.subr.bf16.mxu0 0
    %1701 = vmatpush1.bf16.msra.mxu0 %v1279
    %1702 = vmatprep.subr.bf16.mxu0 0
    %1703 = vmatpush1.bf16.msra.mxu0 %v1280
    %1704 = vmatprep.subr.bf16.mxu0 0
    %1705 = vmatpush1.bf16.msra.mxu0 %v1281
    %1706 = vmatprep.subr.bf16.mxu0 0
    %1707 = vmatpush1.bf16.msra.mxu0 %v1282
    %1708 = vmatprep.subr.bf16.mxu0 0
    %1709 = vmatpush1.bf16.msra.mxu0 %v1283
    %1710 = vmatprep.subr.bf16.mxu0 0
    %1711 = vmatpush1.bf16.msra.mxu0 %v1284
    %1712 = vmatprep.subr.bf16.mxu0 0
    %1713 = vmatpush1.bf16.msra.mxu0 %v1285
    %1714 = vmatprep.subr.bf16.mxu0 0
    %1715 = vmatpush1.bf16.msra.mxu0 %v1286
    %1716 = vmatprep.subr.bf16.mxu0 0
    %1717 = vmatpush1.bf16.msra.mxu0 %v1287
    %1718 = vmatprep.subr.bf16.mxu0 0
    %1719 = vmatpush1.bf16.msra.mxu0 %v1288
    %1720 = vmatprep.subr.bf16.mxu0 0
    %1721 = vmatpush1.bf16.msra.mxu0 %v1289
    %1722 = vmatprep.mubr.bf16.mxu0 %v1689
    %1723 = vmatmul.mubr.bf16.gmra.mrb[0].mxu0 %v1688
    %v1724 = vpop.f32.mrb[0].mxu0
    %v1725 = vadd.f32 0.0, %v1724
    %v1726 = vpop.f32.mrb[0].mxu0
    %v1727 = vpop.f32.mrb[0].mxu0
    %v1728 = vpop.f32.mrb[0].mxu0
    %1729 = vdwg.mxu0
    %s1730 = scalar_lea.vmem [#allocation2], 2
    %1731 = vst.msk [vmem:[%s1730] sm:$0x3] %vm967, %v1725
    %v1732 = vld [vmem:[#allocation2] sm:$0x3]
    %v1733 = vld [vmem:[#allocation2 + $0x2] sm:$0x3]
    %v1734 = vld [vmem:[%s11] sm:$0xf]
    %v1735 = vld [vmem:[%s11 + $0x4] sm:$0xf]
    %v1736 = vld [vmem:[%s11 + $0x8] sm:$0xf]
    %v1737 = vld [vmem:[%s11 + $0xc] sm:$0xf]
    %v1738 = vld [vmem:[%s12] sm:$0x1]
    %v1740 = vlaneseq
    %v1741 = vshrl.u32 %v1740, 7
    %v1742 = vsub.s32 0, %v1741
    %v1743 = vrot.slane %v1738, %v1742
    %v1749 = vunpack.c.l.b16 %v1734
    %v1750 = vunpack.c.l.b16 %v1735
    %v1751 = vunpack.c.l.b16 %v1736
    %v1752 = vunpack.c.l.b16 %v1737
    %v1753 = vpack.c.b16 %v1750, %v1749
    %v1754 = vpack.c.b16 %v1752, %v1751
    %1757 = vmatprep.subr.bf16.mxu0 0
    %1758 = vmatpush1.bf16.msra.mxu0 %v1753
    %1759 = vmatprep.subr.bf16.mxu0 0
    %1760 = vmatpush1.bf16.msra.mxu0 %v1754
    %1761 = vmatprep.subr.bf16.mxu0 0
    %1762 = vmatpush1.bf16.msra.mxu0 0
    %1763 = vmatprep.subr.bf16.mxu0 0
    %1764 = vmatpush1.bf16.msra.mxu0 0
    %1765 = vmatprep.subr.bf16.mxu0 0
    %1766 = vmatpush1.bf16.msra.mxu0 0
    %1767 = vmatprep.subr.bf16.mxu0 0
    %1768 = vmatpush1.bf16.msra.mxu0 0
    %1769 = vmatprep.subr.bf16.mxu0 0
    %1770 = vmatpush1.bf16.msra.mxu0 0
    %1771 = vmatprep.subr.bf16.mxu0 0
    %1772 = vmatpush1.bf16.msra.mxu0 0
    %1773 = vmatprep.subr.bf16.mxu0 0
    %1774 = vmatpush1.bf16.msra.mxu0 0
    %1775 = vmatprep.subr.bf16.mxu0 0
    %1776 = vmatpush1.bf16.msra.mxu0 0
    %1777 = vmatprep.subr.bf16.mxu0 0
    %1778 = vmatpush1.bf16.msra.mxu0 0
    %1779 = vmatprep.subr.bf16.mxu0 0
    %1780 = vmatpush1.bf16.msra.mxu0 0
    %1781 = vmatprep.subr.bf16.mxu0 0
    %1782 = vmatpush1.bf16.msra.mxu0 0
    %1783 = vmatprep.subr.bf16.mxu0 0
    %1784 = vmatpush1.bf16.msra.mxu0 0
    %1785 = vmatprep.subr.bf16.mxu0 0
    %1786 = vmatpush1.bf16.msra.mxu0 0
    %1787 = vmatprep.subr.bf16.mxu0 0
    %1788 = vmatpush1.bf16.msra.mxu0 0
    %1789 = vmatprep.mubr.bf16.mxu0 0
    %1790 = vmatmul.mubr.bf16.gmra.mrb[0].mxu0 %v161
    %v1791 = vpop.f32.mrb[0].mxu0
    %v1792 = vadd.f32 %v1743, %v1791
    %v1793 = vpop.f32.mrb[0].mxu0
    %v1794 = vpop.f32.mrb[0].mxu0
    %v1795 = vpop.f32.mrb[0].mxu0
    %1796 = vdwg.mxu0
    %v1797 = vpack.c.bf16 %v1732, %v1732
    %v1798 = vpack.c.bf16 %v1733, %v1733
    %v1799 = vld [vmem:[%s10] sm:$0xf]
    %v1800 = vld [vmem:[%s10 + $0x4] sm:$0xf]
    %v1801 = vld [vmem:[%s10 + $0x8] sm:$0xf]
    %v1802 = vld [vmem:[%s10 + $0xc] sm:$0xf]
    %v1805 = vunpack.c.l.b16 %v1797
    %v1806 = vunpack.c.l.b16 %v1798
    %v1807 = vrot.slane %v1806, 7
    %v1808 = vsel %vm89, %v1807, %v1805
    %v1809 = vpack.c.b16 %v1808, %v1808
    %v1814 = vunpack.c.l.b16 %v1799
    %v1815 = vunpack.c.l.b16 %v1800
    %v1816 = vunpack.c.l.b16 %v1801
    %v1817 = vunpack.c.l.b16 %v1802
    %v1818 = vpack.c.b16 %v1815, %v1814
    %v1819 = vpack.c.b16 %v1817, %v1816
    %v1823 = vsel %vm159, %v1809, 0
    %1825 = vmatprep.subr.bf16.mxu0 0
    %1826 = vmatpush1.bf16.msra.mxu0 %v1818
    %1827 = vmatprep.subr.bf16.mxu0 0
    %1828 = vmatpush1.bf16.msra.mxu0 %v1819
    %1829 = vmatprep.subr.bf16.mxu0 0
    %1830 = vmatpush1.bf16.msra.mxu0 0
    %1831 = vmatprep.subr.bf16.mxu0 0
    %1832 = vmatpush1.bf16.msra.mxu0 0
    %1833 = vmatprep.subr.bf16.mxu0 0
    %1834 = vmatpush1.bf16.msra.mxu0 0
    %1835 = vmatprep.subr.bf16.mxu0 0
    %1836 = vmatpush1.bf16.msra.mxu0 0
    %1837 = vmatprep.subr.bf16.mxu0 0
    %1838 = vmatpush1.bf16.msra.mxu0 0
    %1839 = vmatprep.subr.bf16.mxu0 0
    %1840 = vmatpush1.bf16.msra.mxu0 0
    %1841 = vmatprep.subr.bf16.mxu0 0
    %1842 = vmatpush1.bf16.msra.mxu0 0
    %1843 = vmatprep.subr.bf16.mxu0 0
    %1844 = vmatpush1.bf16.msra.mxu0 0
    %1845 = vmatprep.subr.bf16.mxu0 0
    %1846 = vmatpush1.bf16.msra.mxu0 0
    %1847 = vmatprep.subr.bf16.mxu0 0
    %1848 = vmatpush1.bf16.msra.mxu0 0
    %1849 = vmatprep.subr.bf16.mxu0 0
    %1850 = vmatpush1.bf16.msra.mxu0 0
    %1851 = vmatprep.subr.bf16.mxu0 0
    %1852 = vmatpush1.bf16.msra.mxu0 0
    %1853 = vmatprep.subr.bf16.mxu0 0
    %1854 = vmatpush1.bf16.msra.mxu0 0
    %1855 = vmatprep.subr.bf16.mxu0 0
    %1856 = vmatpush1.bf16.msra.mxu0 0
    %1857 = vmatprep.mubr.bf16.mxu0 0
    %1858 = vmatmul.mubr.bf16.gmra.mrb[0].mxu0 %v1823
    %v1859 = vpop.f32.mrb[0].mxu0
    %v1860 = vadd.f32 0.0, %v1859
    %v1861 = vpop.f32.mrb[0].mxu0
    %v1862 = vpop.f32.mrb[0].mxu0
    %v1863 = vpop.f32.mrb[0].mxu0
    %1864 = vdwg.mxu0
    %v1865 = vadd.f32 %v1792, %v1860
    %s1866 = scalar_lea.vmem %s10, 16
    %v1867 = vld [vmem:[%s1866] sm:$0xf]
    %v1868 = vld [vmem:[%s1866 + $0x4] sm:$0xf]
    %v1869 = vld [vmem:[%s1866 + $0x8] sm:$0xf]
    %v1870 = vld [vmem:[%s1866 + $0xc] sm:$0xf]
    %v1871 = vrot.slane %v1805, 1
    %v1872 = vsel %vm89, %v1806, %v1871
    %v1873 = vpack.c.b16 %v1872, %v1872
    %v1878 = vunpack.c.l.b16 %v1867
    %v1879 = vunpack.c.l.b16 %v1868
    %v1880 = vunpack.c.l.b16 %v1869
    %v1881 = vunpack.c.l.b16 %v1870
    %v1882 = vpack.c.b16 %v1879, %v1878
    %v1883 = vpack.c.b16 %v1881, %v1880
    %v1887 = vsel %vm159, %v1873, 0
    %1889 = vmatprep.subr.bf16.mxu0 0
    %1890 = vmatpush1.bf16.msra.mxu0 %v1882
    %1891 = vmatprep.subr.bf16.mxu0 0
    %1892 = vmatpush1.bf16.msra.mxu0 %v1883
    %1893 = vmatprep.subr.bf16.mxu0 0
    %1894 = vmatpush1.bf16.msra.mxu0 0
    %1895 = vmatprep.subr.bf16.mxu0 0
    %1896 = vmatpush1.bf16.msra.mxu0 0
    %1897 = vmatprep.subr.bf16.mxu0 0
    %1898 = vmatpush1.bf16.msra.mxu0 0
    %1899 = vmatprep.subr.bf16.mxu0 0
    %1900 = vmatpush1.bf16.msra.mxu0 0
    %1901 = vmatprep.subr.bf16.mxu0 0
    %1902 = vmatpush1.bf16.msra.mxu0 0
    %1903 = vmatprep.subr.bf16.mxu0 0
    %1904 = vmatpush1.bf16.msra.mxu0 0
    %1905 = vmatprep.subr.bf16.mxu0 0
    %1906 = vmatpush1.bf16.msra.mxu0 0
    %1907 = vmatprep.subr.bf16.mxu0 0
    %1908 = vmatpush1.bf16.msra.mxu0 0
    %1909 = vmatprep.subr.bf16.mxu0 0
    %1910 = vmatpush1.bf16.msra.mxu0 0
    %1911 = vmatprep.subr.bf16.mxu0 0
    %1912 = vmatpush1.bf16.msra.mxu0 0
    %1913 = vmatprep.subr.bf16.mxu0 0
    %1914 = vmatpush1.bf16.msra.mxu0 0
    %1915 = vmatprep.subr.bf16.mxu0 0
    %1916 = vmatpush1.bf16.msra.mxu0 0
    %1917 = vmatprep.subr.bf16.mxu0 0
    %1918 = vmatpush1.bf16.msra.mxu0 0
    %1919 = vmatprep.subr.bf16.mxu0 0
    %1920 = vmatpush1.bf16.msra.mxu0 0
    %1921 = vmatprep.mubr.bf16.mxu0 0
    %1922 = vmatmul.mubr.bf16.gmra.mrb[0].mxu0 %v1887
    %v1923 = vpop.f32.mrb[0].mxu0
    %v1924 = vadd.f32 0.0, %v1923
    %v1925 = vpop.f32.mrb[0].mxu0
    %v1926 = vpop.f32.mrb[0].mxu0
    %v1927 = vpop.f32.mrb[0].mxu0
    %1928 = vdwg.mxu0
    %v1929 = vadd.f32 %v1865, %v1924
    %v1930 = vmax.f32 %v1929, 0.0
    %v1931 = vpack.c.bf16 %v1930, %v1930
    %v1932 = vld [vmem:[%s13] sm:$0xf]
    %v1933 = vld [vmem:[%s13 + $0x4] sm:$0xf]
    %v1934 = vld [vmem:[%s13 + $0x8] sm:$0xf]
    %v1935 = vld [vmem:[%s13 + $0xc] sm:$0xf]
    %v1936 = vld [vmem:[%s13 + $0x10] sm:$0xf]
    %v1937 = vld [vmem:[%s13 + $0x14] sm:$0xf]
    %v1938 = vld [vmem:[%s13 + $0x18] sm:$0xf]
    %v1939 = vld [vmem:[%s13 + $0x1c] sm:$0xf]
    %v1940 = vld [vmem:[%s14] sm:$0x1]
    %v1942 = vlaneseq
    %v1943 = vshrl.u32 %v1942, 7
    %v1944 = vsub.s32 0, %v1943
    %v1945 = vrot.slane %v1940, %v1944
    %v1955 = vunpack.c.l.b16 %v1932
    %v1956 = vunpack.c.l.b16 %v1933
    %v1957 = vunpack.c.l.b16 %v1934
    %v1958 = vunpack.c.l.b16 %v1935
    %v1959 = vunpack.c.l.b16 %v1936
    %v1960 = vunpack.c.l.b16 %v1937
    %v1961 = vunpack.c.l.b16 %v1938
    %v1962 = vunpack.c.l.b16 %v1939
    %v1963 = vpack.c.b16 %v1956, %v1955
    %v1964 = vpack.c.b16 %v1958, %v1957
    %v1965 = vpack.c.b16 %v1960, %v1959
    %v1966 = vpack.c.b16 %v1962, %v1961
    %vm1971 = vcmask 523264
    %v1973 = vsel %vm1971, %v1931, 0
    %1975 = vmatprep.subr.bf16.mxu0 0
    %1976 = vmatpush1.bf16.msra.mxu0 %v1963
    %1977 = vmatprep.subr.bf16.mxu0 0
    %1978 = vmatpush1.bf16.msra.mxu0 %v1964
    %1979 = vmatprep.subr.bf16.mxu0 0
    %1980 = vmatpush1.bf16.msra.mxu0 %v1965
    %1981 = vmatprep.subr.bf16.mxu0 0
    %1982 = vmatpush1.bf16.msra.mxu0 %v1966
    %1983 = vmatprep.subr.bf16.mxu0 0
    %1984 = vmatpush1.bf16.msra.mxu0 0
    %1985 = vmatprep.subr.bf16.mxu0 0
    %1986 = vmatpush1.bf16.msra.mxu0 0
    %1987 = vmatprep.subr.bf16.mxu0 0
    %1988 = vmatpush1.bf16.msra.mxu0 0
    %1989 = vmatprep.subr.bf16.mxu0 0
    %1990 = vmatpush1.bf16.msra.mxu0 0
    %1991 = vmatprep.subr.bf16.mxu0 0
    %1992 = vmatpush1.bf16.msra.mxu0 0
    %1993 = vmatprep.subr.bf16.mxu0 0
    %1994 = vmatpush1.bf16.msra.mxu0 0
    %1995 = vmatprep.subr.bf16.mxu0 0
    %1996 = vmatpush1.bf16.msra.mxu0 0
    %1997 = vmatprep.subr.bf16.mxu0 0
    %1998 = vmatpush1.bf16.msra.mxu0 0
    %1999 = vmatprep.subr.bf16.mxu0 0
    %2000 = vmatpush1.bf16.msra.mxu0 0
    %2001 = vmatprep.subr.bf16.mxu0 0
    %2002 = vmatpush1.bf16.msra.mxu0 0
    %2003 = vmatprep.subr.bf16.mxu0 0
    %2004 = vmatpush1.bf16.msra.mxu0 0
    %2005 = vmatprep.subr.bf16.mxu0 0
    %2006 = vmatpush1.bf16.msra.mxu0 0
    %2007 = vmatprep.mubr.bf16.mxu0 0
    %2008 = vmatmul.mubr.bf16.gmra.mrb[0].mxu0 %v1973
    %v2009 = vpop.f32.mrb[0].mxu0
    %v2010 = vadd.f32 %v1945, %v2009
    %v2011 = vpop.f32.mrb[0].mxu0
    %v2012 = vpop.f32.mrb[0].mxu0
    %v2013 = vpop.f32.mrb[0].mxu0
    %2014 = vdwg.mxu0
    %2015 = vst [vmem:[#allocation3] sm:$0x3] %v2010
    // Predicated region
    $region62: #{squint_forward.1} parent=1 // pred_check
      _
    $region63: #{squint_forward.1} parent=1 // pred_check_branch
      %2017 = sbr.rel (0) target = $region65
    $region64: #{squint_forward.1} parent=1 // pred_region
      %s2019 = ssub.s32 32, 32
      %2020 = vsyncadd [#allocation4], %s2019
      %s2022 = sshll.u32 [#allocation3], 4
      %s2023 = int_to_ptr.vmem [resolvable:$true] %s2022
      %2025 = dma.vmem_to_hbm [thread:$0]  %s2023, 32, %s15, [#allocation4]
    $region65: #{squint_forward.1} parent=1 // pred_fallthru
      _
    // Predicated region
    $region66: #{squint_forward.1} parent=1 // pred_check
      _
    $region67: #{squint_forward.1} parent=1 // pred_check_branch
      %2027 = sbr.rel (0) target = $region69
    $region68: #{squint_forward.1} parent=1 // pred_region
      _
    $region69: #{squint_forward.1} parent=1 // pred_fallthru
      _
    // Predicated region
    $region70: #{squint_forward.1} parent=1 // pred_check
      _
    $region71: #{squint_forward.1} parent=1 // pred_check_branch
      %2029 = sbr.rel (0) target = $region73
    $region72: #{squint_forward.1} parent=1 // pred_region
      %2030 = dma.done [#allocation4], 32
    $region73: #{squint_forward.1} parent=1 // pred_fallthru
      _
    // Predicated region
    $region74: #{squint_forward.1} parent=1 // pred_check
      _
    $region75: #{squint_forward.1} parent=1 // pred_check_branch
      %2032 = sbr.rel (0) target = $region77
    $region76: #{squint_forward.1} parent=1 // pred_region
      _
    $region77: #{squint_forward.1} parent=1 // pred_fallthru
      _
    %2033 = vsyncpa [#allocation4], 1

// kernel: squint_forward.1
$region0: #{squint_forward.1}
  #allocation0 [shape = 'u32[]', space=smem, size = 0x4, offset = 0x4, fixed_abs, tag = 'smem constant byte address 0x4 - core index']
  #allocation1 [shape = 'u32[144,128]{1,0:T(1,128)}', space=vmem, size = 0x12000, scoped, tag = 'internal scratch']
  #allocation2 [shape = 'f32[2,2,32]{2,1,0:T(2,128)}', space=vmem, size = 0x800, scoped, tag = 'scratch operand']
  %s0 = inlined_call_operand.vmem [shape: f32[2,4,256], index: 0, kind: input, shape index: {}]
  %s1 = inlined_call_operand.vmem [shape: f32[2,1,256], index: 1, kind: input, shape index: {}]
  %s2 = inlined_call_operand.vmem [shape: f32[2,8,16], index: 2, kind: input, shape index: {}]
  %s3 = inlined_call_operand.vmem [shape: bf16[4,32], index: 3, kind: input, shape index: {}]
  %s4 = inlined_call_operand.vmem [shape: f32[1,32], index: 4, kind: input, shape index: {}]
  %s5 = inlined_call_operand.vmem [shape: bf16[32,32], index: 5, kind: input, shape index: {}]
  %s6 = inlined_call_operand.vmem [shape: bf16[16,32], index: 6, kind: input, shape index: {}]
  %s7 = inlined_call_operand.vmem [shape: f32[1,32], index: 7, kind: input, shape index: {}]
  %s8 = inlined_call_operand.vmem [shape: bf16[32,32], index: 8, kind: input, shape index: {}]
  %s9 = inlined_call_operand.vmem [shape: bf16[2,32], index: 9, kind: input, shape index: {}]
  %s10 = inlined_call_operand.vmem [shape: bf16[2,32,64], index: 10, kind: input, shape index: {}]
  %s11 = inlined_call_operand.vmem [shape: bf16[32,64], index: 11, kind: input, shape index: {}]
  %s12 = inlined_call_operand.vmem [shape: f32[1,64], index: 12, kind: input, shape index: {}]
  %s13 = inlined_call_operand.vmem [shape: bf16[64,128], index: 13, kind: input, shape index: {}]
  %s14 = inlined_call_operand.vmem [shape: f32[1,128], index: 14, kind: input, shape index: {}]
  %s15 = inlined_call_operand.hbm [shape: f32[2,128], index: 15, kind: output, shape index: {0}]
  %s16 = inlined_call_operand.vmem [shape: f32[2,2,256], index: 16, kind: output, shape index: {1}]
  %17 = xla_tuple %s15, %s16
  %s18 = sld [smem:[#allocation0]]
  $region78: #{squint_forward.1} parent=0
    _
  %s20 = ssub.s32 1, %s18
  %s21 = scalar_select 0, %s20, %s18
  $region1: #{squint_forward.1} parent=0
    #allocation3 [shape = 'u8[1024]{0}', space=vmem, size = 0x400, scoped, tag = 'output window, operand 0, single buffered']
    #allocation4 [shape = 's32[1]{0}', space=sflag, size = 0x4, scoped, tag = 'scoped memory for squint_forward.1']
    %22 = vsyncpa [#allocation4], 0
    // Predicated region
    $region2: #{squint_forward.1} parent=1 // pred_check
      _
    $region3: #{squint_forward.1} parent=1 // pred_check_branch
      %24 = sbr.rel (0) target = $region5
    $region4: #{squint_forward.1} parent=1 // pred_region
      _
    $region5: #{squint_forward.1} parent=1 // pred_fallthru
      _
    // Predicated region
    $region6: #{squint_forward.1} parent=1 // pred_check
      _
    $region7: #{squint_forward.1} parent=1 // pred_check_branch
      %26 = sbr.rel (0) target = $region9
    $region8: #{squint_forward.1} parent=1 // pred_region
      _
    $region9: #{squint_forward.1} parent=1 // pred_fallthru
      _
    // Predicated region
    $region10: #{squint_forward.1} parent=1 // pred_check
      _
    $region11: #{squint_forward.1} parent=1 // pred_check_branch
      %28 = sbr.rel (0) target = $region13
    $region12: #{squint_forward.1} parent=1 // pred_region
      _
    $region13: #{squint_forward.1} parent=1 // pred_fallthru
      _
    // Predicated region
    $region14: #{squint_forward.1} parent=1 // pred_check
      _
    $region15: #{squint_forward.1} parent=1 // pred_check_branch
      %30 = sbr.rel (0) target = $region17
    $region16: #{squint_forward.1} parent=1 // pred_region
      _
    $region17: #{squint_forward.1} parent=1 // pred_fallthru
      _
    // Predicated region
    $region18: #{squint_forward.1} parent=1 // pred_check
      _
    $region19: #{squint_forward.1} parent=1 // pred_check_branch
      %32 = sbr.rel (0) target = $region21
    $region20: #{squint_forward.1} parent=1 // pred_region
      _
    $region21: #{squint_forward.1} parent=1 // pred_fallthru
      _
    // Predicated region
    $region22: #{squint_forward.1} parent=1 // pred_check
      _
    $region23: #{squint_forward.1} parent=1 // pred_check_branch
      %34 = sbr.rel (0) target = $region25
    $region24: #{squint_forward.1} parent=1 // pred_region
      _
    $region25: #{squint_forward.1} parent=1 // pred_fallthru
      _
    // Predicated region
    $region26: #{squint_forward.1} parent=1 // pred_check
      _
    $region27: #{squint_forward.1} parent=1 // pred_check_branch
      %36 = sbr.rel (0) target = $region29
    $region28: #{squint_forward.1} parent=1 // pred_region
      _
    $region29: #{squint_forward.1} parent=1 // pred_fallthru
      _
    // Predicated region
    $region30: #{squint_forward.1} parent=1 // pred_check
      _
    $region31: #{squint_forward.1} parent=1 // pred_check_branch
      %38 = sbr.rel (0) target = $region33
    $region32: #{squint_forward.1} parent=1 // pred_region
      _
    $region33: #{squint_forward.1} parent=1 // pred_fallthru
      _
    // Predicated region
    $region34: #{squint_forward.1} parent=1 // pred_check
      _
    $region35: #{squint_forward.1} parent=1 // pred_check_branch
      %40 = sbr.rel (0) target = $region37
    $region36: #{squint_forward.1} parent=1 // pred_region
      _
    $region37: #{squint_forward.1} parent=1 // pred_fallthru
      _
    // Predicated region
    $region38: #{squint_forward.1} parent=1 // pred_check
      _
    $region39: #{squint_forward.1} parent=1 // pred_check_branch
      %42 = sbr.rel (0) target = $region41
    $region40: #{squint_forward.1} parent=1 // pred_region
      _
    $region41: #{squint_forward.1} parent=1 // pred_fallthru
      _
    // Predicated region
    $region42: #{squint_forward.1} parent=1 // pred_check
      _
    $region43: #{squint_forward.1} parent=1 // pred_check_branch
      %44 = sbr.rel (0) target = $region45
    $region44: #{squint_forward.1} parent=1 // pred_region
      _
    $region45: #{squint_forward.1} parent=1 // pred_fallthru
      _
    // Predicated region
    $region46: #{squint_forward.1} parent=1 // pred_check
      _
    $region47: #{squint_forward.1} parent=1 // pred_check_branch
      %46 = sbr.rel (0) target = $region49
    $region48: #{squint_forward.1} parent=1 // pred_region
      _
    $region49: #{squint_forward.1} parent=1 // pred_fallthru
      _
    // Predicated region
    $region50: #{squint_forward.1} parent=1 // pred_check
      _
    $region51: #{squint_forward.1} parent=1 // pred_check_branch
      %48 = sbr.rel (0) target = $region53
    $region52: #{squint_forward.1} parent=1 // pred_region
      _
    $region53: #{squint_forward.1} parent=1 // pred_fallthru
      _
    // Predicated region
    $region54: #{squint_forward.1} parent=1 // pred_check
      _
    $region55: #{squint_forward.1} parent=1 // pred_check_branch
      %50 = sbr.rel (0) target = $region57
    $region56: #{squint_forward.1} parent=1 // pred_region
      _
    $region57: #{squint_forward.1} parent=1 // pred_fallthru
      _
    // Predicated region
    $region58: #{squint_forward.1} parent=1 // pred_check
      _
    $region59: #{squint_forward.1} parent=1 // pred_check_branch
      %52 = sbr.rel (0) target = $region61
    $region60: #{squint_forward.1} parent=1 // pred_region
      _
    $region61: #{squint_forward.1} parent=1 // pred_fallthru
      _
    %v54 = vld [vmem:[%s2] sm:$0xff]
    %v55 = vld [vmem:[%s2 + $0x8] sm:$0xff]
    %vm56 = vcmask 130048
    %v57 = vsel %vm56, %v54, 0.0
    %v58 = vrot.slane %v57, 4
    %v59 = vadd.f32 %v57, %v58
    %v60 = vrot.slane %v59, 2
    %v61 = vadd.f32 %v59, %v60
    %v62 = vrot.slane %v61, 1
    %v63 = vadd.f32 %v61, %v62
    %v64 = vsel %vm56, %v55, 0.0
    %v65 = vrot.slane %v64, 4
    %v66 = vadd.f32 %v64, %v65
    %v67 = vrot.slane %v66, 2
    %v68 = vadd.f32 %v66, %v67
    %v69 = vrot.slane %v68, 1
    %v70 = vadd.f32 %v68, %v69
    %v71 = vrcp.pop 8.0
    %v72 = vmul.f32 %v63, %v71
    %v73 = vmul.f32 %v70, %v71
    %v74 = vpack.c.bf16 %v72, %v72
    %v75 = vpack.c.bf16 %v73, %v73
    %v76 = vld [vmem:[%s6] sm:$0xf]
    %v77 = vld [vmem:[%s6 + $0x4] sm:$0xf]
    %v78 = vld [vmem:[%s7] sm:$0x1]
    %v80 = vlaneseq
    %v81 = vshrl.u32 %v80, 7
    %v82 = vsub.s32 0, %v81
    %v83 = vrot.slane %v78, %v82
    %v87 = vunpack.c.l.b16 %v74
    %v88 = vunpack.c.l.b16 %v75
    %vm89 = vcmask 1041409
    %v90 = vsel %vm89, %v88, %v87
    %v91 = vpack.c.b16 %v90, %v90
    %v94 = vunpack.c.l.b16 %v76
    %v95 = vunpack.c.l.b16 %v77
    %v96 = vpack.c.b16 %v95, %v94
    %v99 = vsel %vm56, %v91, 0
    %101 = vmatprep.subr.bf16.mxu0 0
    %102 = vmatpush1.bf16.msra.mxu0 %v96
    %103 = vmatprep.subr.bf16.mxu0 0
    %104 = vmatpush1.bf16.msra.mxu0 0
    %105 = vmatprep.subr.bf16.mxu0 0
    %106 = vmatpush1.bf16.msra.mxu0 0
    %107 = vmatprep.subr.bf16.mxu0 0
    %108 = vmatpush1.bf16.msra.mxu0 0
    %109 = vmatprep.subr.bf16.mxu0 0
    %110 = vmatpush1.bf16.msra.mxu0 0
    %111 = vmatprep.subr.bf16.mxu0 0
    %112 = vmatpush1.bf16.msra.mxu0 0
    %113 = vmatprep.subr.bf16.mxu0 0
    %114 = vmatpush1.bf16.msra.mxu0 0
    %115 = vmatprep.subr.bf16.mxu0 0
    %116 = vmatpush1.bf16.msra.mxu0 0
    %117 = vmatprep.subr.bf16.mxu0 0
    %118 = vmatpush1.bf16.msra.mxu0 0
    %119 = vmatprep.subr.bf16.mxu0 0
    %120 = vmatpush1.bf16.msra.mxu0 0
    %121 = vmatprep.subr.bf16.mxu0 0
    %122 = vmatpush1.bf16.msra.mxu0 0
    %123 = vmatprep.subr.bf16.mxu0 0
    %124 = vmatpush1.bf16.msra.mxu0 0
    %125 = vmatprep.subr.bf16.mxu0 0
    %126 = vmatpush1.bf16.msra.mxu0 0
    %127 = vmatprep.subr.bf16.mxu0 0
    %128 = vmatpush1.bf16.msra.mxu0 0
    %129 = vmatprep.subr.bf16.mxu0 0
    %130 = vmatpush1.bf16.msra.mxu0 0
    %131 = vmatprep.subr.bf16.mxu0 0
    %132 = vmatpush1.bf16.msra.mxu0 0
    %133 = vmatprep.mubr.bf16.mxu0 0
    %134 = vmatmul.mubr.bf16.gmra.mrb[0].mxu0 %v99
    %v135 = vpop.f32.mrb[0].mxu0
    %v136 = vadd.f32 %v83, %v135
    %v137 = vpop.f32.mrb[0].mxu0
    %v138 = vpop.f32.mrb[0].mxu0
    %v139 = vpop.f32.mrb[0].mxu0
    %140 = vdwg.mxu0
    %v141 = vtanh.pop %v136
    %v142 = vpack.c.bf16 %v141, %v141
    %v143 = vld [vmem:[%s8] sm:$0xf]
    %v144 = vld [vmem:[%s8 + $0x4] sm:$0xf]
    %v145 = vld [vmem:[%s8 + $0x8] sm:$0xf]
    %v146 = vld [vmem:[%s8 + $0xc] sm:$0xf]
    %v151 = vunpack.c.l.b16 %v143
    %v152 = vunpack.c.l.b16 %v144
    %v153 = vunpack.c.l.b16 %v145
    %v154 = vunpack.c.l.b16 %v146
    %v155 = vpack.c.b16 %v152, %v151
    %v156 = vpack.c.b16 %v154, %v153
    %vm159 = vcmask 261120
    %v161 = vsel %vm159, %v142, 0
    %163 = vmatprep.subr.bf16.mxu0 0
    %164 = vmatpush1.bf16.msra.mxu0 %v155
    %165 = vmatprep.subr.bf16.mxu0 0
    %166 = vmatpush1.bf16.msra.mxu0 %v156
    %167 = vmatprep.subr.bf16.mxu0 0
    %168 = vmatpush1.bf16.msra.mxu0 0
    %169 = vmatprep.subr.bf16.mxu0 0
    %170 = vmatpush1.bf16.msra.mxu0 0
    %171 = vmatprep.subr.bf16.mxu0 0
    %172 = vmatpush1.bf16.msra.mxu0 0
    %173 = vmatprep.subr.bf16.mxu0 0
    %174 = vmatpush1.bf16.msra.mxu0 0
    %175 = vmatprep.subr.bf16.mxu0 0
    %176 = vmatpush1.bf16.msra.mxu0 0
    %177 = vmatprep.subr.bf16.mxu0 0
    %178 = vmatpush1.bf16.msra.mxu0 0
    %179 = vmatprep.subr.bf16.mxu0 0
    %180 = vmatpush1.bf16.msra.mxu0 0
    %181 = vmatprep.subr.bf16.mxu0 0
    %182 = vmatpush1.bf16.msra.mxu0 0
    %183 = vmatprep.subr.bf16.mxu0 0
    %184 = vmatpush1.bf16.msra.mxu0 0
    %185 = vmatprep.subr.bf16.mxu0 0
    %186 = vmatpush1.bf16.msra.mxu0 0
    %187 = vmatprep.subr.bf16.mxu0 0
    %188 = vmatpush1.bf16.msra.mxu0 0
    %189 = vmatprep.subr.bf16.mxu0 0
    %190 = vmatpush1.bf16.msra.mxu0 0
    %191 = vmatprep.subr.bf16.mxu0 0
    %192 = vmatpush1.bf16.msra.mxu0 0
    %193 = vmatprep.subr.bf16.mxu0 0
    %194 = vmatpush1.bf16.msra.mxu0 0
    %195 = vmatprep.mubr.bf16.mxu0 0
    %196 = vmatmul.mubr.bf16.gmra.mrb[0].mxu0 %v161
    %v197 = vpop.f32.mrb[0].mxu0
    %v198 = vadd.f32 0.0, %v197
    %v199 = vpop.f32.mrb[0].mxu0
    %v200 = vpop.f32.mrb[0].mxu0
    %v201 = vpop.f32.mrb[0].mxu0
    %202 = vdwg.mxu0
    %v203 = vld [vmem:[%s9] sm:$0x1]
    %v204 = vld [vmem:[%s0] sm:$0xff]
    %v205 = vld [vmem:[%s1] sm:$0x3]
    %v207 = vlaneseq
    %v208 = vshrl.u32 %v207, 7
    %v209 = vsub.s32 0, %v208
    %v210 = vrot.slane %v205, %v209
    %v211 = vlaneseq
    %v212 = vshrl.u32 %v211, 7
    %v213 = vsub.s32 1, %v212
    %v214 = vrot.slane %v205, %v213
    %v215 = vcombine.low %v210, %v214
    %v217 = vmul.f32 %v204, %v215
    %v219 = vcombine.high %v217, %v217
    %v221 = vpack.c.bf16 %v217, %v217
    %v222 = vpack.c.bf16 %v219, %v219
    %v223 = vld [vmem:[%s3] sm:$0x3]
    %v224 = vld [vmem:[%s4] sm:$0x1]
    %v226 = vlaneseq
    %v227 = vshrl.u32 %v226, 7
    %v228 = vsub.s32 0, %v227
    %v229 = vrot.slane %v224, %v228
    %231 = vxpose.xlu0.c.b16.start [1/8] %v221, 128
    %232 = vxpose.xlu0.c.b16.cont [2/8] 0, 128
    %233 = vxpose.xlu0.c.b16.cont [3/8] 0, 128
    %234 = vxpose.xlu0.c.b16.cont [4/8] 0, 128
    %235 = vxpose.xlu0.c.b16.cont [5/8] 0, 128
    %236 = vxpose.xlu0.c.b16.cont [6/8] 0, 128
    %237 = vxpose.xlu0.c.b16.cont [7/8] 0, 128
    %238 = vxpose.xlu0.c.b16.end [8/8] 0, 128
    %v239 = vpop.trf.xlu0
    %v240 = vpop.trf.xlu0
    %v241 = vpop.trf.xlu0
    %v242 = vpop.trf.xlu0
    %v243 = vpop.trf.xlu0
    %v244 = vpop.trf.xlu0
    %v245 = vpop.trf.xlu0
    %v246 = vpop.trf.xlu0
    %247 = vxpose.xlu0.c.b16.start [1/8] %v222, 128
    %248 = vxpose.xlu0.c.b16.cont [2/8] 0, 128
    %249 = vxpose.xlu0.c.b16.cont [3/8] 0, 128
    %250 = vxpose.xlu0.c.b16.cont [4/8] 0, 128
    %251 = vxpose.xlu0.c.b16.cont [5/8] 0, 128
    %252 = vxpose.xlu0.c.b16.cont [6/8] 0, 128
    %253 = vxpose.xlu0.c.b16.cont [7/8] 0, 128
    %254 = vxpose.xlu0.c.b16.end [8/8] 0, 128
    %v255 = vpop.trf.xlu0
    %v256 = vpop.trf.xlu0
    %v257 = vpop.trf.xlu0
    %v258 = vpop.trf.xlu0
    %v259 = vpop.trf.xlu0
    %v260 = vpop.trf.xlu0
    %v261 = vpop.trf.xlu0
    %v262 = vpop.trf.xlu0
    %vm263 = vcmask 31744
    %v265 = vsel %vm263, %v239, 0
    %v268 = vsel %vm263, %v240, 0
    %v271 = vsel %vm263, %v241, 0
    %v274 = vsel %vm263, %v242, 0
    %v277 = vsel %vm263, %v243, 0
    %v280 = vsel %vm263, %v244, 0
    %v283 = vsel %vm263, %v245, 0
    %v286 = vsel %vm263, %v246, 0
    %v289 = vsel %vm263, %v255, 0
    %v292 = vsel %vm263, %v256, 0
    %v295 = vsel %vm263, %v257, 0
    %v298 = vsel %vm263, %v258, 0
    %v301 = vsel %vm263, %v259, 0
    %v304 = vsel %vm263, %v260, 0
    %v307 = vsel %vm263, %v261, 0
    %v310 = vsel %vm263, %v262, 0
    %vm312 = vcmask 1041408
    %v314 = vsel %vm312, %v223, 0
    %316 = vmatprep.subr.bf16.mxu0 0
    %317 = vmatpush1.bf16.msra.mxu0 %v314
    %318 = vmatprep.subr.bf16.mxu0 0
    %319 = vmatpush1.bf16.msra.mxu0 0
    %320 = vmatprep.subr.bf16.mxu0 0
    %321 = vmatpush1.bf16.msra.mxu0 0
    %322 = vmatprep.subr.bf16.mxu0 0
    %323 = vmatpush1.bf16.msra.mxu0 0
    %324 = vmatprep.subr.bf16.mxu0 0
    %325 = vmatpush1.bf16.msra.mxu0 0
    %326 = vmatprep.subr.bf16.mxu0 0
    %327 = vmatpush1.bf16.msra.mxu0 0
    %328 = vmatprep.subr.bf16.mxu0 0
    %329 = vmatpush1.bf16.msra.mxu0 0
    %330 = vmatprep.subr.bf16.mxu0 0
    %331 = vmatpush1.bf16.msra.mxu0 0
    %332 = vmatprep.subr.bf16.mxu0 0
    %333 = vmatpush1.bf16.msra.mxu0 0
    %334 = vmatprep.subr.bf16.mxu0 0
    %335 = vmatpush1.bf16.msra.mxu0 0
    %336 = vmatprep.subr.bf16.mxu0 0
    %337 = vmatpush1.bf16.msra.mxu0 0
    %338 = vmatprep.subr.bf16.mxu0 0
    %339 = vmatpush1.bf16.msra.mxu0 0
    %340 = vmatprep.subr.bf16.mxu0 0
    %341 = vmatpush1.bf16.msra.mxu0 0
    %342 = vmatprep.subr.bf16.mxu0 0
    %343 = vmatpush1.bf16.msra.mxu0 0
    %344 = vmatprep.subr.bf16.mxu0 0
    %345 = vmatpush1.bf16.msra.mxu0 0
    %346 = vmatprep.subr.bf16.mxu0 0
    %347 = vmatpush1.bf16.msra.mxu0 0
    %348 = vmatprep.mubr.bf16.mxu0 0
    %349 = vmatmul.mubr.bf16.gmra.mrb[0].mxu0 %v265
    %v350 = vpop.f32.mrb[0].mxu0
    %v351 = vadd.f32 %v229, %v350
    %v352 = vpop.f32.mrb[0].mxu0
    %v353 = vpop.f32.mrb[0].mxu0
    %v354 = vadd.f32 %v229, %v353
    %v355 = vpop.f32.mrb[0].mxu0
    %356 = vmatprep.mubr.bf16.mxu0 0
    %357 = vmatmul.mubr.bf16.gmra.mrb[0].mxu0 %v268
    %v358 = vpop.f32.mrb[0].mxu0
    %v359 = vadd.f32 %v229, %v358
    %v360 = vpop.f32.mrb[0].mxu0
    %v361 = vpop.f32.mrb[0].mxu0
    %v362 = vadd.f32 %v229, %v361
    %v363 = vpop.f32.mrb[0].mxu0
    %364 = vmatprep.mubr.bf16.mxu0 0
    %365 = vmatmul.mubr.bf16.gmra.mrb[0].mxu0 %v271
    %v366 = vpop.f32.mrb[0].mxu0
    %v367 = vadd.f32 %v229, %v366
    %v368 = vpop.f32.mrb[0].mxu0
    %v369 = vpop.f32.mrb[0].mxu0
    %v370 = vadd.f32 %v229, %v369
    %v371 = vpop.f32.mrb[0].mxu0
    %372 = vmatprep.mubr.bf16.mxu0 0
    %373 = vmatmul.mubr.bf16.gmra.mrb[0].mxu0 %v274
    %v374 = vpop.f32.mrb[0].mxu0
    %v375 = vadd.f32 %v229, %v374
    %v376 = vpop.f32.mrb[0].mxu0
    %v377 = vpop.f32.mrb[0].mxu0
    %v378 = vadd.f32 %v229, %v377
    %v379 = vpop.f32.mrb[0].mxu0
    %380 = vmatprep.mubr.bf16.mxu0 0
    %381 = vmatmul.mubr.bf16.gmra.mrb[0].mxu0 %v277
    %v382 = vpop.f32.mrb[0].mxu0
    %v383 = vadd.f32 %v229, %v382
    %v384 = vpop.f32.mrb[0].mxu0
    %v385 = vpop.f32.mrb[0].mxu0
    %v386 = vadd.f32 %v229, %v385
    %v387 = vpop.f32.mrb[0].mxu0
    %388 = vmatprep.mubr.bf16.mxu0 0
    %389 = vmatmul.mubr.bf16.gmra.mrb[0].mxu0 %v280
    %v390 = vpop.f32.mrb[0].mxu0
    %v391 = vadd.f32 %v229, %v390
    %v392 = vpop.f32.mrb[0].mxu0
    %v393 = vpop.f32.mrb[0].mxu0
    %v394 = vadd.f32 %v229, %v393
    %v395 = vpop.f32.mrb[0].mxu0
    %396 = vmatprep.mubr.bf16.mxu0 0
    %397 = vmatmul.mubr.bf16.gmra.mrb[0].mxu0 %v283
    %v398 = vpop.f32.mrb[0].mxu0
    %v399 = vadd.f32 %v229, %v398
    %v400 = vpop.f32.mrb[0].mxu0
    %v401 = vpop.f32.mrb[0].mxu0
    %v402 = vadd.f32 %v229, %v401
    %v403 = vpop.f32.mrb[0].mxu0
    %404 = vmatprep.mubr.bf16.mxu0 0
    %405 = vmatmul.mubr.bf16.gmra.mrb[0].mxu0 %v286
    %v406 = vpop.f32.mrb[0].mxu0
    %v407 = vadd.f32 %v229, %v406
    %v408 = vpop.f32.mrb[0].mxu0
    %v409 = vpop.f32.mrb[0].mxu0
    %v410 = vadd.f32 %v229, %v409
    %v411 = vpop.f32.mrb[0].mxu0
    %412 = vmatprep.mubr.bf16.mxu0 0
    %413 = vmatmul.mubr.bf16.gmra.mrb[0].mxu0 %v289
    %v414 = vpop.f32.mrb[0].mxu0
    %v415 = vadd.f32 %v229, %v414
    %v416 = vpop.f32.mrb[0].mxu0
    %v417 = vpop.f32.mrb[0].mxu0
    %v418 = vadd.f32 %v229, %v417
    %v419 = vpop.f32.mrb[0].mxu0
    %420 = vmatprep.mubr.bf16.mxu0 0
    %421 = vmatmul.mubr.bf16.gmra.mrb[0].mxu0 %v292
    %v422 = vpop.f32.mrb[0].mxu0
    %v423 = vadd.f32 %v229, %v422
    %v424 = vpop.f32.mrb[0].mxu0
    %v425 = vpop.f32.mrb[0].mxu0
    %v426 = vadd.f32 %v229, %v425
    %v427 = vpop.f32.mrb[0].mxu0
    %428 = vmatprep.mubr.bf16.mxu0 0
    %429 = vmatmul.mubr.bf16.gmra.mrb[0].mxu0 %v295
    %v430 = vpop.f32.mrb[0].mxu0
    %v431 = vadd.f32 %v229, %v430
    %v432 = vpop.f32.mrb[0].mxu0
    %v433 = vpop.f32.mrb[0].mxu0
    %v434 = vadd.f32 %v229, %v433
    %v435 = vpop.f32.mrb[0].mxu0
    %436 = vmatprep.mubr.bf16.mxu0 0
    %437 = vmatmul.mubr.bf16.gmra.mrb[0].mxu0 %v298
    %v438 = vpop.f32.mrb[0].mxu0
    %v439 = vadd.f32 %v229, %v438
    %v440 = vpop.f32.mrb[0].mxu0
    %v441 = vpop.f32.mrb[0].mxu0
    %v442 = vadd.f32 %v229, %v441
    %v443 = vpop.f32.mrb[0].mxu0
    %444 = vmatprep.mubr.bf16.mxu0 0
    %445 = vmatmul.mubr.bf16.gmra.mrb[0].mxu0 %v301
    %v446 = vpop.f32.mrb[0].mxu0
    %v447 = vadd.f32 %v229, %v446
    %v448 = vpop.f32.mrb[0].mxu0
    %v449 = vpop.f32.mrb[0].mxu0
    %v450 = vadd.f32 %v229, %v449
    %v451 = vpop.f32.mrb[0].mxu0
    %452 = vmatprep.mubr.bf16.mxu0 0
    %453 = vmatmul.mubr.bf16.gmra.mrb[0].mxu0 %v304
    %v454 = vpop.f32.mrb[0].mxu0
    %v455 = vadd.f32 %v229, %v454
    %v456 = vpop.f32.mrb[0].mxu0
    %v457 = vpop.f32.mrb[0].mxu0
    %v458 = vadd.f32 %v229, %v457
    %v459 = vpop.f32.mrb[0].mxu0
    %460 = vmatprep.mubr.bf16.mxu0 0
    %461 = vmatmul.mubr.bf16.gmra.mrb[0].mxu0 %v307
    %v462 = vpop.f32.mrb[0].mxu0
    %v463 = vadd.f32 %v229, %v462
    %v464 = vpop.f32.mrb[0].mxu0
    %v465 = vpop.f32.mrb[0].mxu0
    %v466 = vadd.f32 %v229, %v465
    %v467 = vpop.f32.mrb[0].mxu0
    %468 = vmatprep.mubr.bf16.mxu0 0
    %469 = vmatmul.mubr.bf16.gmra.mrb[0].mxu0 %v310
    %v470 = vpop.f32.mrb[0].mxu0
    %v471 = vadd.f32 %v229, %v470
    %v472 = vpop.f32.mrb[0].mxu0
    %v473 = vpop.f32.mrb[0].mxu0
    %v474 = vadd.f32 %v229, %v473
    %v475 = vpop.f32.mrb[0].mxu0
    %476 = vdwg.mxu0
    %v477 = vmax.f32 %v351, 0.0
    %v478 = vmax.f32 %v354, 0.0
    %v479 = vmax.f32 %v359, 0.0
    %v480 = vmax.f32 %v362, 0.0
    %v481 = vmax.f32 %v367, 0.0
    %v482 = vmax.f32 %v370, 0.0
    %v483 = vmax.f32 %v375, 0.0
    %v484 = vmax.f32 %v378, 0.0
    %v485 = vmax.f32 %v383, 0.0
    %v486 = vmax.f32 %v386, 0.0
    %v487 = vmax.f32 %v391, 0.0
    %v488 = vmax.f32 %v394, 0.0
    %v489 = vmax.f32 %v399, 0.0
    %v490 = vmax.f32 %v402, 0.0
    %v491 = vmax.f32 %v407, 0.0
    %v492 = vmax.f32 %v410, 0.0
    %v493 = vmax.f32 %v415, 0.0
    %v494 = vmax.f32 %v418, 0.0
    %v495 = vmax.f32 %v423, 0.0
    %v496 = vmax.f32 %v426, 0.0
    %v497 = vmax.f32 %v431, 0.0
    %v498 = vmax.f32 %v434, 0.0
    %v499 = vmax.f32 %v439, 0.0
    %v500 = vmax.f32 %v442, 0.0
    %v501 = vmax.f32 %v447, 0.0
    %v502 = vmax.f32 %v450, 0.0
    %v503 = vmax.f32 %v455, 0.0
    %v504 = vmax.f32 %v458, 0.0
    %v505 = vmax.f32 %v463, 0.0
    %v506 = vmax.f32 %v466, 0.0
    %v507 = vmax.f32 %v471, 0.0
    %v508 = vmax.f32 %v474, 0.0
    %v509 = vpack.c.bf16 %v478, %v477
    %v510 = vpack.c.bf16 %v480, %v479
    %v511 = vpack.c.bf16 %v482, %v481
    %v512 = vpack.c.bf16 %v484, %v483
    %v513 = vpack.c.bf16 %v486, %v485
    %v514 = vpack.c.bf16 %v488, %v487
    %v515 = vpack.c.bf16 %v490, %v489
    %v516 = vpack.c.bf16 %v492, %v491
    %v517 = vpack.c.bf16 %v494, %v493
    %v518 = vpack.c.bf16 %v496, %v495
    %v519 = vpack.c.bf16 %v498, %v497
    %v520 = vpack.c.bf16 %v500, %v499
    %v521 = vpack.c.bf16 %v502, %v501
    %v522 = vpack.c.bf16 %v504, %v503
    %v523 = vpack.c.bf16 %v506, %v505
    %v524 = vpack.c.bf16 %v508, %v507
    %v525 = vld [vmem:[%s5] sm:$0xf]
    %v526 = vld [vmem:[%s5 + $0x4] sm:$0xf]
    %v527 = vld [vmem:[%s5 + $0x8] sm:$0xf]
    %v528 = vld [vmem:[%s5 + $0xc] sm:$0xf]
    %v529 = vlaneseq
    %v530 = vshrl.u32 %v529, 7
    %v531 = vsub.s32 0, %v530
    %v532 = vrot.slane %v198, %v531
    %v537 = vunpack.c.l.b16 %v525
    %v538 = vunpack.c.l.b16 %v526
    %v539 = vunpack.c.l.b16 %v527
    %v540 = vunpack.c.l.b16 %v528
    %v541 = vpack.c.b16 %v538, %v537
    %v542 = vpack.c.b16 %v540, %v539
    %v546 = vsel %vm159, %v509, 0
    %v549 = vsel %vm159, %v510, 0
    %v552 = vsel %vm159, %v511, 0
    %v555 = vsel %vm159, %v512, 0
    %v558 = vsel %vm159, %v513, 0
    %v561 = vsel %vm159, %v514, 0
    %v564 = vsel %vm159, %v515, 0
    %v567 = vsel %vm159, %v516, 0
    %v570 = vsel %vm159, %v517, 0
    %v573 = vsel %vm159, %v518, 0
    %v576 = vsel %vm159, %v519, 0
    %v579 = vsel %vm159, %v520, 0
    %v582 = vsel %vm159, %v521, 0
    %v585 = vsel %vm159, %v522, 0
    %v588 = vsel %vm159, %v523, 0
    %v591 = vsel %vm159, %v524, 0
    %593 = vmatprep.subr.bf16.mxu0 0
    %594 = vmatpush1.bf16.msra.mxu0 %v541
    %595 = vmatprep.subr.bf16.mxu0 0
    %596 = vmatpush1.bf16.msra.mxu0 %v542
    %597 = vmatprep.subr.bf16.mxu0 0
    %598 = vmatpush1.bf16.msra.mxu0 0
    %599 = vmatprep.subr.bf16.mxu0 0
    %600 = vmatpush1.bf16.msra.mxu0 0
    %601 = vmatprep.subr.bf16.mxu0 0
    %602 = vmatpush1.bf16.msra.mxu0 0
    %603 = vmatprep.subr.bf16.mxu0 0
    %604 = vmatpush1.bf16.msra.mxu0 0
    %605 = vmatprep.subr.bf16.mxu0 0
    %606 = vmatpush1.bf16.msra.mxu0 0
    %607 = vmatprep.subr.bf16.mxu0 0
    %608 = vmatpush1.bf16.msra.mxu0 0
    %609 = vmatprep.subr.bf16.mxu0 0
    %610 = vmatpush1.bf16.msra.mxu0 0
    %611 = vmatprep.subr.bf16.mxu0 0
    %612 = vmatpush1.bf16.msra.mxu0 0
    %613 = vmatprep.subr.bf16.mxu0 0
    %614 = vmatpush1.bf16.msra.mxu0 0
    %615 = vmatprep.subr.bf16.mxu0 0
    %616 = vmatpush1.bf16.msra.mxu0 0
    %617 = vmatprep.subr.bf16.mxu0 0
    %618 = vmatpush1.bf16.msra.mxu0 0
    %619 = vmatprep.subr.bf16.mxu0 0
    %620 = vmatpush1.bf16.msra.mxu0 0
    %621 = vmatprep.subr.bf16.mxu0 0
    %622 = vmatpush1.bf16.msra.mxu0 0
    %623 = vmatprep.subr.bf16.mxu0 0
    %624 = vmatpush1.bf16.msra.mxu0 0
    %625 = vmatprep.mubr.bf16.mxu0 0
    %626 = vmatmul.mubr.bf16.gmra.mrb[0].mxu0 %v546
    %v627 = vpop.f32.mrb[0].mxu0
    %v628 = vadd.f32 %v532, %v627
    %v629 = vpop.f32.mrb[0].mxu0
    %v630 = vpop.f32.mrb[0].mxu0
    %v631 = vadd.f32 %v532, %v630
    %v632 = vpop.f32.mrb[0].mxu0
    %633 = vmatprep.mubr.bf16.mxu0 0
    %634 = vmatmul.mubr.bf16.gmra.mrb[0].mxu0 %v549
    %v635 = vpop.f32.mrb[0].mxu0
    %v636 = vadd.f32 %v532, %v635
    %v637 = vpop.f32.mrb[0].mxu0
    %v638 = vpop.f32.mrb[0].mxu0
    %v639 = vadd.f32 %v532, %v638
    %v640 = vpop.f32.mrb[0].mxu0
    %641 = vmatprep.mubr.bf16.mxu0 0
    %642 = vmatmul.mubr.bf16.gmra.mrb[0].mxu0 %v552
    %v643 = vpop.f32.mrb[0].mxu0
    %v644 = vadd.f32 %v532, %v643
    %v645 = vpop.f32.mrb[0].mxu0
    %v646 = vpop.f32.mrb[0].mxu0
    %v647 = vadd.f32 %v532, %v646
    %v648 = vpop.f32.mrb[0].mxu0
    %649 = vmatprep.mubr.bf16.mxu0 0
    %650 = vmatmul.mubr.bf16.gmra.mrb[0].mxu0 %v555
    %v651 = vpop.f32.mrb[0].mxu0
    %v652 = vadd.f32 %v532, %v651
    %v653 = vpop.f32.mrb[0].mxu0
    %v654 = vpop.f32.mrb[0].mxu0
    %v655 = vadd.f32 %v532, %v654
    %v656 = vpop.f32.mrb[0].mxu0
    %657 = vmatprep.mubr.bf16.mxu0 0
    %658 = vmatmul.mubr.bf16.gmra.mrb[0].mxu0 %v558
    %v659 = vpop.f32.mrb[0].mxu0
    %v660 = vadd.f32 %v532, %v659
    %v661 = vpop.f32.mrb[0].mxu0
    %v662 = vpop.f32.mrb[0].mxu0
    %v663 = vadd.f32 %v532, %v662
    %v664 = vpop.f32.mrb[0].mxu0
    %665 = vmatprep.mubr.bf16.mxu0 0
    %666 = vmatmul.mubr.bf16.gmra.mrb[0].mxu0 %v561
    %v667 = vpop.f32.mrb[0].mxu0
    %v668 = vadd.f32 %v532, %v667
    %v669 = vpop.f32.mrb[0].mxu0
    %v670 = vpop.f32.mrb[0].mxu0
    %v671 = vadd.f32 %v532, %v670
    %v672 = vpop.f32.mrb[0].mxu0
    %673 = vmatprep.mubr.bf16.mxu0 0
    %674 = vmatmul.mubr.bf16.gmra.mrb[0].mxu0 %v564
    %v675 = vpop.f32.mrb[0].mxu0
    %v676 = vadd.f32 %v532, %v675
    %v677 = vpop.f32.mrb[0].mxu0
    %v678 = vpop.f32.mrb[0].mxu0
    %v679 = vadd.f32 %v532, %v678
    %v680 = vpop.f32.mrb[0].mxu0
    %681 = vmatprep.mubr.bf16.mxu0 0
    %682 = vmatmul.mubr.bf16.gmra.mrb[0].mxu0 %v567
    %v683 = vpop.f32.mrb[0].mxu0
    %v684 = vadd.f32 %v532, %v683
    %v685 = vpop.f32.mrb[0].mxu0
    %v686 = vpop.f32.mrb[0].mxu0
    %v687 = vadd.f32 %v532, %v686
    %v688 = vpop.f32.mrb[0].mxu0
    %689 = vmatprep.mubr.bf16.mxu0 0
    %690 = vmatmul.mubr.bf16.gmra.mrb[0].mxu0 %v570
    %v691 = vpop.f32.mrb[0].mxu0
    %v692 = vadd.f32 %v532, %v691
    %v693 = vpop.f32.mrb[0].mxu0
    %v694 = vpop.f32.mrb[0].mxu0
    %v695 = vadd.f32 %v532, %v694
    %v696 = vpop.f32.mrb[0].mxu0
    %697 = vmatprep.mubr.bf16.mxu0 0
    %698 = vmatmul.mubr.bf16.gmra.mrb[0].mxu0 %v573
    %v699 = vpop.f32.mrb[0].mxu0
    %v700 = vadd.f32 %v532, %v699
    %v701 = vpop.f32.mrb[0].mxu0
    %v702 = vpop.f32.mrb[0].mxu0
    %v703 = vadd.f32 %v532, %v702
    %v704 = vpop.f32.mrb[0].mxu0
    %705 = vmatprep.mubr.bf16.mxu0 0
    %706 = vmatmul.mubr.bf16.gmra.mrb[0].mxu0 %v576
    %v707 = vpop.f32.mrb[0].mxu0
    %v708 = vadd.f32 %v532, %v707
    %v709 = vpop.f32.mrb[0].mxu0
    %v710 = vpop.f32.mrb[0].mxu0
    %v711 = vadd.f32 %v532, %v710
    %v712 = vpop.f32.mrb[0].mxu0
    %713 = vmatprep.mubr.bf16.mxu0 0
    %714 = vmatmul.mubr.bf16.gmra.mrb[0].mxu0 %v579
    %v715 = vpop.f32.mrb[0].mxu0
    %v716 = vadd.f32 %v532, %v715
    %v717 = vpop.f32.mrb[0].mxu0
    %v718 = vpop.f32.mrb[0].mxu0
    %v719 = vadd.f32 %v532, %v718
    %v720 = vpop.f32.mrb[0].mxu0
    %721 = vmatprep.mubr.bf16.mxu0 0
    %722 = vmatmul.mubr.bf16.gmra.mrb[0].mxu0 %v582
    %v723 = vpop.f32.mrb[0].mxu0
    %v724 = vadd.f32 %v532, %v723
    %v725 = vpop.f32.mrb[0].mxu0
    %v726 = vpop.f32.mrb[0].mxu0
    %v727 = vadd.f32 %v532, %v726
    %v728 = vpop.f32.mrb[0].mxu0
    %729 = vmatprep.mubr.bf16.mxu0 0
    %730 = vmatmul.mubr.bf16.gmra.mrb[0].mxu0 %v585
    %v731 = vpop.f32.mrb[0].mxu0
    %v732 = vadd.f32 %v532, %v731
    %v733 = vpop.f32.mrb[0].mxu0
    %v734 = vpop.f32.mrb[0].mxu0
    %v735 = vadd.f32 %v532, %v734
    %v736 = vpop.f32.mrb[0].mxu0
    %737 = vmatprep.mubr.bf16.mxu0 0
    %738 = vmatmul.mubr.bf16.gmra.mrb[0].mxu0 %v588
    %v739 = vpop.f32.mrb[0].mxu0
    %v740 = vadd.f32 %v532, %v739
    %v741 = vpop.f32.mrb[0].mxu0
    %v742 = vpop.f32.mrb[0].mxu0
    %v743 = vadd.f32 %v532, %v742
    %v744 = vpop.f32.mrb[0].mxu0
    %745 = vmatprep.mubr.bf16.mxu0 0
    %746 = vmatmul.mubr.bf16.gmra.mrb[0].mxu0 %v591
    %v747 = vpop.f32.mrb[0].mxu0
    %v748 = vadd.f32 %v532, %v747
    %v749 = vpop.f32.mrb[0].mxu0
    %v750 = vpop.f32.mrb[0].mxu0
    %v751 = vadd.f32 %v532, %v750
    %v752 = vpop.f32.mrb[0].mxu0
    %753 = vdwg.mxu0
    %v754 = vtanh.pop %v628
    %v755 = vtanh.pop %v631
    %v756 = vtanh.pop %v636
    %v757 = vtanh.pop %v639
    %v758 = vtanh.pop %v644
    %v759 = vtanh.pop %v647
    %v760 = vtanh.pop %v652
    %v761 = vtanh.pop %v655
    %v762 = vtanh.pop %v660
    %v763 = vtanh.pop %v663
    %v764 = vtanh.pop %v668
    %v765 = vtanh.pop %v671
    %v766 = vtanh.pop %v676
    %v767 = vtanh.pop %v679
    %v768 = vtanh.pop %v684
    %v769 = vtanh.pop %v687
    %v770 = vtanh.pop %v692
    %v771 = vtanh.pop %v695
    %v772 = vtanh.pop %v700
    %v773 = vtanh.pop %v703
    %v774 = vtanh.pop %v708
    %v775 = vtanh.pop %v711
    %v776 = vtanh.pop %v716
    %v777 = vtanh.pop %v719
    %v778 = vtanh.pop %v724
    %v779 = vtanh.pop %v727
    %v780 = vtanh.pop %v732
    %v781 = vtanh.pop %v735
    %v782 = vtanh.pop %v740
    %v783 = vtanh.pop %v743
    %v784 = vtanh.pop %v748
    %v785 = vtanh.pop %v751
    %v786 = vpack.c.bf16 %v755, %v754
    %v787 = vpack.c.bf16 %v757, %v756
    %v788 = vpack.c.bf16 %v759, %v758
    %v789 = vpack.c.bf16 %v761, %v760
    %v790 = vpack.c.bf16 %v763, %v762
    %v791 = vpack.c.bf16 %v765, %v764
    %v792 = vpack.c.bf16 %v767, %v766
    %v793 = vpack.c.bf16 %v769, %v768
    %v794 = vpack.c.bf16 %v771, %v770
    %v795 = vpack.c.bf16 %v773, %v772
    %v796 = vpack.c.bf16 %v775, %v774
    %v797 = vpack.c.bf16 %v777, %v776
    %v798 = vpack.c.bf16 %v779, %v778
    %v799 = vpack.c.bf16 %v781, %v780
    %v800 = vpack.c.bf16 %v783, %v782
    %v801 = vpack.c.bf16 %v785, %v784
    %v803 = vsel %vm159, %v203, 0
    %v806 = vsel %vm159, %v786, 0
    %v809 = vsel %vm159, %v787, 0
    %v812 = vsel %vm159, %v788, 0
    %v815 = vsel %vm159, %v789, 0
    %v818 = vsel %vm159, %v790, 0
    %v821 = vsel %vm159, %v791, 0
    %v824 = vsel %vm159, %v792, 0
    %v827 = vsel %vm159, %v793, 0
    %v830 = vsel %vm159, %v794, 0
    %v833 = vsel %vm159, %v795, 0
    %v836 = vsel %vm159, %v796, 0
    %v839 = vsel %vm159, %v797, 0
    %v842 = vsel %vm159, %v798, 0
    %v845 = vsel %vm159, %v799, 0
    %v848 = vsel %vm159, %v800, 0
    %v851 = vsel %vm159, %v801, 0
    %853 = vmatprep.subr.bf16.mxu0 0
    %854 = vmatpush1.bf16.xpose.msra.mxu0 %v806
    %855 = vmatprep.subr.bf16.mxu0 0
    %856 = vmatpush1.bf16.xpose.msra.mxu0 %v809
    %857 = vmatprep.subr.bf16.mxu0 0
    %858 = vmatpush1.bf16.xpose.msra.mxu0 %v812
    %859 = vmatprep.subr.bf16.mxu0 0
    %860 = vmatpush1.bf16.xpose.msra.mxu0 %v815
    %861 = vmatprep.subr.bf16.mxu0 0
    %862 = vmatpush1.bf16.xpose.msra.mxu0 %v818
    %863 = vmatprep.subr.bf16.mxu0 0
    %864 = vmatpush1.bf16.xpose.msra.mxu0 %v821
    %865 = vmatprep.subr.bf16.mxu0 0
    %866 = vmatpush1.bf16.xpose.msra.mxu0 %v824
    %867 = vmatprep.subr.bf16.mxu0 0
    %868 = vmatpush1.bf16.xpose.msra.mxu0 %v827
    %869 = vmatprep.subr.bf16.mxu0 0
    %870 = vmatpush1.bf16.xpose.msra.mxu0 %v830
    %871 = vmatprep.subr.bf16.mxu0 0
    %872 = vmatpush1.bf16.xpose.msra.mxu0 %v833
    %873 = vmatprep.subr.bf16.mxu0 0
    %874 = vmatpush1.bf16.xpose.msra.mxu0 %v836
    %875 = vmatprep.subr.bf16.mxu0 0
    %876 = vmatpush1.bf16.xpose.msra.mxu0 %v839
    %877 = vmatprep.subr.bf16.mxu0 0
    %878 = vmatpush1.bf16.xpose.msra.mxu0 %v842
    %879 = vmatprep.subr.bf16.mxu0 0
    %880 = vmatpush1.bf16.xpose.msra.mxu0 %v845
    %881 = vmatprep.subr.bf16.mxu0 0
    %882 = vmatpush1.bf16.xpose.msra.mxu0 %v848
    %883 = vmatprep.subr.bf16.mxu0 0
    %884 = vmatpush1.bf16.xpose.msra.mxu0 %v851
    %885 = vmatprep.mubr.bf16.mxu0 0
    %886 = vmatmul.mubr.bf16.gmra.mrb[0].mxu0 %v803
    %v887 = vpop.f32.mrb[0].mxu0
    %v888 = vadd.f32 0.0, %v887
    %v889 = vpop.f32.mrb[0].mxu0
    %v890 = vadd.f32 0.0, %v889
    %v891 = vpop.f32.mrb[0].mxu0
    %v892 = vpop.f32.mrb[0].mxu0
    %893 = vdwg.mxu0
    %v894 = vsel %vm312, %v888, -inf
    %v895 = vsel %vm312, %v890, -inf
    %v896 = vmax.f32 %v894, %v895
    %897 = vmax.xlane.f32.xlu0 %v896
    %v898 = vpop.xlane.xlu0 %897
    %v899 = vsub.f32 %v888, %v898
    %v900 = vsub.f32 %v890, %v898
    %v901 = vmul.f32 %v899, 1.442695
    %v902 = vpow.pop %v901
    %v903 = vmul.f32 %v900, 1.442695
    %v904 = vpow.pop %v903
    %v905 = vsel %vm312, %v902, 0.0
    %v906 = vsel %vm312, %v904, 0.0
    %v907 = vadd.f32 %v905, %v906
    %908 = vadd.xlane.f32.xlu0 %v907
    %v909 = vpop.xlane.xlu0 %908
    %v910 = vrcp.pop %v909
    %v911 = vmul.f32 %v902, %v910
    %v912 = vmul.f32 %v904, %v910
    %v915 = vcombine.low %v911, %v912
    %v917 = vunpack.c.l.s4 1983009808
    %v918 = vunpack.c.0.s8 %v917
    %v919 = vlaneseq
    %v920 = vshrl.u32 %v919, 7
    %v921 = vsub.s32 %v918, %v920
    %v922 = vrot.slane %v915, %v921
    %924 = vst [vmem:[%s16] sm:$0xf] %v922
    %v925 = vpack.c.bf16 %v911, %v911
    %v926 = vpack.c.bf16 %v912, %v912
    %927 = vmatprep.subr.bf16.mxu0 0
    %928 = vmatpush1.bf16.msra.mxu0 %v509
    %929 = vmatprep.subr.bf16.mxu0 0
    %930 = vmatpush1.bf16.msra.mxu0 %v510
    %931 = vmatprep.subr.bf16.mxu0 0
    %932 = vmatpush1.bf16.msra.mxu0 %v511
    %933 = vmatprep.subr.bf16.mxu0 0
    %934 = vmatpush1.bf16.msra.mxu0 %v512
    %935 = vmatprep.subr.bf16.mxu0 0
    %936 = vmatpush1.bf16.msra.mxu0 %v513
    %937 = vmatprep.subr.bf16.mxu0 0
    %938 = vmatpush1.bf16.msra.mxu0 %v514
    %939 = vmatprep.subr.bf16.mxu0 0
    %940 = vmatpush1.bf16.msra.mxu0 %v515
    %941 = vmatprep.subr.bf16.mxu0 0
    %942 = vmatpush1.bf16.msra.mxu0 %v516
    %943 = vmatprep.subr.bf16.mxu0 0
    %944 = vmatpush1.bf16.msra.mxu0 %v517
    %945 = vmatprep.subr.bf16.mxu0 0
    %946 = vmatpush1.bf16.msra.mxu0 %v518
    %947 = vmatprep.subr.bf16.mxu0 0
    %948 = vmatpush1.bf16.msra.mxu0 %v519
    %949 = vmatprep.subr.bf16.mxu0 0
    %950 = vmatpush1.bf16.msra.mxu0 %v520
    %951 = vmatprep.subr.bf16.mxu0 0
    %952 = vmatpush1.bf16.msra.mxu0 %v521
    %953 = vmatprep.subr.bf16.mxu0 0
    %954 = vmatpush1.bf16.msra.mxu0 %v522
    %955 = vmatprep.subr.bf16.mxu0 0
    %956 = vmatpush1.bf16.msra.mxu0 %v523
    %957 = vmatprep.subr.bf16.mxu0 0
    %958 = vmatpush1.bf16.msra.mxu0 %v524
    %959 = vmatprep.mubr.bf16.mxu0 %v926
    %960 = vmatmul.mubr.bf16.gmra.mrb[0].mxu0 %v925
    %v961 = vpop.f32.mrb[0].mxu0
    %v962 = vadd.f32 0.0, %v961
    %v963 = vpop.f32.mrb[0].mxu0
    %v964 = vpop.f32.mrb[0].mxu0
    %v965 = vpop.f32.mrb[0].mxu0
    %966 = vdwg.mxu0
    %vm967 = vcmask 254976
    %968 = vst.msk [vmem:[#allocation2] sm:$0x3] %vm967, %v962
    %s969 = scalar_lea.vmem %s0, 8
    %v970 = vld [vmem:[%s969] sm:$0xff]
    %s971 = scalar_lea.vmem %s1, 2
    %v972 = vld [vmem:[%s971] sm:$0x3]
    %v974 = vlaneseq
    %v975 = vshrl.u32 %v974, 7
    %v976 = vsub.s32 0, %v975
    %v977 = vrot.slane %v972, %v976
    %v978 = vlaneseq
    %v979 = vshrl.u32 %v978, 7
    %v980 = vsub.s32 1, %v979
    %v981 = vrot.slane %v972, %v980
    %v982 = vcombine.low %v977, %v981
    %v984 = vmul.f32 %v970, %v982
    %v986 = vcombine.high %v984, %v984
    %v988 = vpack.c.bf16 %v984, %v984
    %v989 = vpack.c.bf16 %v986, %v986
    %v990 = vld [vmem:[%s3] sm:$0x3]
    %v991 = vld [vmem:[%s4] sm:$0x1]
    %v993 = vlaneseq
    %v994 = vshrl.u32 %v993, 7
    %v995 = vsub.s32 0, %v994
    %v996 = vrot.slane %v991, %v995
    %998 = vxpose.xlu0.c.b16.start [1/8] %v988, 128
    %999 = vxpose.xlu0.c.b16.cont [2/8] 0, 128
    %1000 = vxpose.xlu0.c.b16.cont [3/8] 0, 128
    %1001 = vxpose.xlu0.c.b16.cont [4/8] 0, 128
    %1002 = vxpose.xlu0.c.b16.cont [5/8] 0, 128
    %1003 = vxpose.xlu0.c.b16.cont [6/8] 0, 128
    %1004 = vxpose.xlu0.c.b16.cont [7/8] 0, 128
    %1005 = vxpose.xlu0.c.b16.end [8/8] 0, 128
    %v1006 = vpop.trf.xlu0
    %v1007 = vpop.trf.xlu0
    %v1008 = vpop.trf.xlu0
    %v1009 = vpop.trf.xlu0
    %v1010 = vpop.trf.xlu0
    %v1011 = vpop.trf.xlu0
    %v1012 = vpop.trf.xlu0
    %v1013 = vpop.trf.xlu0
    %1014 = vxpose.xlu0.c.b16.start [1/8] %v989, 128
    %1015 = vxpose.xlu0.c.b16.cont [2/8] 0, 128
    %1016 = vxpose.xlu0.c.b16.cont [3/8] 0, 128
    %1017 = vxpose.xlu0.c.b16.cont [4/8] 0, 128
    %1018 = vxpose.xlu0.c.b16.cont [5/8] 0, 128
    %1019 = vxpose.xlu0.c.b16.cont [6/8] 0, 128
    %1020 = vxpose.xlu0.c.b16.cont [7/8] 0, 128
    %1021 = vxpose.xlu0.c.b16.end [8/8] 0, 128
    %v1022 = vpop.trf.xlu0
    %v1023 = vpop.trf.xlu0
    %v1024 = vpop.trf.xlu0
    %v1025 = vpop.trf.xlu0
    %v1026 = vpop.trf.xlu0
    %v1027 = vpop.trf.xlu0
    %v1028 = vpop.trf.xlu0
    %v1029 = vpop.trf.xlu0
    %v1031 = vsel %vm263, %v1006, 0
    %v1034 = vsel %vm263, %v1007, 0
    %v1037 = vsel %vm263, %v1008, 0
    %v1040 = vsel %vm263, %v1009, 0
    %v1043 = vsel %vm263, %v1010, 0
    %v1046 = vsel %vm263, %v1011, 0
    %v1049 = vsel %vm263, %v1012, 0
    %v1052 = vsel %vm263, %v1013, 0
    %v1055 = vsel %vm263, %v1022, 0
    %v1058 = vsel %vm263, %v1023, 0
    %v1061 = vsel %vm263, %v1024, 0
    %v1064 = vsel %vm263, %v1025, 0
    %v1067 = vsel %vm263, %v1026, 0
    %v1070 = vsel %vm263, %v1027, 0
    %v1073 = vsel %vm263, %v1028, 0
    %v1076 = vsel %vm263, %v1029, 0
    %v1079 = vsel %vm312, %v990, 0
    %1081 = vmatprep.subr.bf16.mxu0 0
    %1082 = vmatpush1.bf16.msra.mxu0 %v1079
    %1083 = vmatprep.subr.bf16.mxu0 0
    %1084 = vmatpush1.bf16.msra.mxu0 0
    %1085 = vmatprep.subr.bf16.mxu0 0
    %1086 = vmatpush1.bf16.msra.mxu0 0
    %1087 = vmatprep.subr.bf16.mxu0 0
    %1088 = vmatpush1.bf16.msra.mxu0 0
    %1089 = vmatprep.subr.bf16.mxu0 0
    %1090 = vmatpush1.bf16.msra.mxu0 0
    %1091 = vmatprep.subr.bf16.mxu0 0
    %1092 = vmatpush1.bf16.msra.mxu0 0
    %1093 = vmatprep.subr.bf16.mxu0 0
    %1094 = vmatpush1.bf16.msra.mxu0 0
    %1095 = vmatprep.subr.bf16.mxu0 0
    %1096 = vmatpush1.bf16.msra.mxu0 0
    %1097 = vmatprep.subr.bf16.mxu0 0
    %1098 = vmatpush1.bf16.msra.mxu0 0
    %1099 = vmatprep.subr.bf16.mxu0 0
    %1100 = vmatpush1.bf16.msra.mxu0 0
    %1101 = vmatprep.subr.bf16.mxu0 0
    %1102 = vmatpush1.bf16.msra.mxu0 0
    %1103 = vmatprep.subr.bf16.mxu0 0
    %1104 = vmatpush1.bf16.msra.mxu0 0
    %1105 = vmatprep.subr.bf16.mxu0 0
    %1106 = vmatpush1.bf16.msra.mxu0 0
    %1107 = vmatprep.subr.bf16.mxu0 0
    %1108 = vmatpush1.bf16.msra.mxu0 0
    %1109 = vmatprep.subr.bf16.mxu0 0
    %1110 = vmatpush1.bf16.msra.mxu0 0
    %1111 = vmatprep.subr.bf16.mxu0 0
    %1112 = vmatpush1.bf16.msra.mxu0 0
    %1113 = vmatprep.mubr.bf16.mxu0 0
    %1114 = vmatmul.mubr.bf16.gmra.mrb[0].mxu0 %v1031
    %v1115 = vpop.f32.mrb[0].mxu0
    %v1116 = vadd.f32 %v996, %v1115
    %v1117 = vpop.f32.mrb[0].mxu0
    %v1118 = vpop.f32.mrb[0].mxu0
    %v1119 = vadd.f32 %v996, %v1118
    %v1120 = vpop.f32.mrb[0].mxu0
    %1121 = vmatprep.mubr.bf16.mxu0 0
    %1122 = vmatmul.mubr.bf16.gmra.mrb[0].mxu0 %v1034
    %v1123 = vpop.f32.mrb[0].mxu0
    %v1124 = vadd.f32 %v996, %v1123
    %v1125 = vpop.f32.mrb[0].mxu0
    %v1126 = vpop.f32.mrb[0].mxu0
    %v1127 = vadd.f32 %v996, %v1126
    %v1128 = vpop.f32.mrb[0].mxu0
    %1129 = vmatprep.mubr.bf16.mxu0 0
    %1130 = vmatmul.mubr.bf16.gmra.mrb[0].mxu0 %v1037
    %v1131 = vpop.f32.mrb[0].mxu0
    %v1132 = vadd.f32 %v996, %v1131
    %v1133 = vpop.f32.mrb[0].mxu0
    %v1134 = vpop.f32.mrb[0].mxu0
    %v1135 = vadd.f32 %v996, %v1134
    %v1136 = vpop.f32.mrb[0].mxu0
    %1137 = vmatprep.mubr.bf16.mxu0 0
    %1138 = vmatmul.mubr.bf16.gmra.mrb[0].mxu0 %v1040
    %v1139 = vpop.f32.mrb[0].mxu0
    %v1140 = vadd.f32 %v996, %v1139
    %v1141 = vpop.f32.mrb[0].mxu0
    %v1142 = vpop.f32.mrb[0].mxu0
    %v1143 = vadd.f32 %v996, %v1142
    %v1144 = vpop.f32.mrb[0].mxu0
    %1145 = vmatprep.mubr.bf16.mxu0 0
    %1146 = vmatmul.mubr.bf16.gmra.mrb[0].mxu0 %v1043
    %v1147 = vpop.f32.mrb[0].mxu0
    %v1148 = vadd.f32 %v996, %v1147
    %v1149 = vpop.f32.mrb[0].mxu0
    %v1150 = vpop.f32.mrb[0].mxu0
    %v1151 = vadd.f32 %v996, %v1150
    %v1152 = vpop.f32.mrb[0].mxu0
    %1153 = vmatprep.mubr.bf16.mxu0 0
    %1154 = vmatmul.mubr.bf16.gmra.mrb[0].mxu0 %v1046
    %v1155 = vpop.f32.mrb[0].mxu0
    %v1156 = vadd.f32 %v996, %v1155
    %v1157 = vpop.f32.mrb[0].mxu0
    %v1158 = vpop.f32.mrb[0].mxu0
    %v1159 = vadd.f32 %v996, %v1158
    %v1160 = vpop.f32.mrb[0].mxu0
    %1161 = vmatprep.mubr.bf16.mxu0 0
    %1162 = vmatmul.mubr.bf16.gmra.mrb[0].mxu0 %v1049
    %v1163 = vpop.f32.mrb[0].mxu0
    %v1164 = vadd.f32 %v996, %v1163
    %v1165 = vpop.f32.mrb[0].mxu0
    %v1166 = vpop.f32.mrb[0].mxu0
    %v1167 = vadd.f32 %v996, %v1166
    %v1168 = vpop.f32.mrb[0].mxu0
    %1169 = vmatprep.mubr.bf16.mxu0 0
    %1170 = vmatmul.mubr.bf16.gmra.mrb[0].mxu0 %v1052
    %v1171 = vpop.f32.mrb[0].mxu0
    %v1172 = vadd.f32 %v996, %v1171
    %v1173 = vpop.f32.mrb[0].mxu0
    %v1174 = vpop.f32.mrb[0].mxu0
    %v1175 = vadd.f32 %v996, %v1174
    %v1176 = vpop.f32.mrb[0].mxu0
    %1177 = vmatprep.mubr.bf16.mxu0 0
    %1178 = vmatmul.mubr.bf16.gmra.mrb[0].mxu0 %v1055
    %v1179 = vpop.f32.mrb[0].mxu0
    %v1180 = vadd.f32 %v996, %v1179
    %v1181 = vpop.f32.mrb[0].mxu0
    %v1182 = vpop.f32.mrb[0].mxu0
    %v1183 = vadd.f32 %v996, %v1182
    %v1184 = vpop.f32.mrb[0].mxu0
    %1185 = vmatprep.mubr.bf16.mxu0 0
    %1186 = vmatmul.mubr.bf16.gmra.mrb[0].mxu0 %v1058
    %v1187 = vpop.f32.mrb[0].mxu0
    %v1188 = vadd.f32 %v996, %v1187
    %v1189 = vpop.f32.mrb[0].mxu0
    %v1190 = vpop.f32.mrb[0].mxu0
    %v1191 = vadd.f32 %v996, %v1190
    %v1192 = vpop.f32.mrb[0].mxu0
    %1193 = vmatprep.mubr.bf16.mxu0 0
    %1194 = vmatmul.mubr.bf16.gmra.mrb[0].mxu0 %v1061
    %v1195 = vpop.f32.mrb[0].mxu0
    %v1196 = vadd.f32 %v996, %v1195
    %v1197 = vpop.f32.mrb[0].mxu0
    %v1198 = vpop.f32.mrb[0].mxu0
    %v1199 = vadd.f32 %v996, %v1198
    %v1200 = vpop.f32.mrb[0].mxu0
    %1201 = vmatprep.mubr.bf16.mxu0 0
    %1202 = vmatmul.mubr.bf16.gmra.mrb[0].mxu0 %v1064
    %v1203 = vpop.f32.mrb[0].mxu0
    %v1204 = vadd.f32 %v996, %v1203
    %v1205 = vpop.f32.mrb[0].mxu0
    %v1206 = vpop.f32.mrb[0].mxu0
    %v1207 = vadd.f32 %v996, %v1206
    %v1208 = vpop.f32.mrb[0].mxu0
    %1209 = vmatprep.mubr.bf16.mxu0 0
    %1210 = vmatmul.mubr.bf16.gmra.mrb[0].mxu0 %v1067
    %v1211 = vpop.f32.mrb[0].mxu0
    %v1212 = vadd.f32 %v996, %v1211
    %v1213 = vpop.f32.mrb[0].mxu0
    %v1214 = vpop.f32.mrb[0].mxu0
    %v1215 = vadd.f32 %v996, %v1214
    %v1216 = vpop.f32.mrb[0].mxu0
    %1217 = vmatprep.mubr.bf16.mxu0 0
    %1218 = vmatmul.mubr.bf16.gmra.mrb[0].mxu0 %v1070
    %v1219 = vpop.f32.mrb[0].mxu0
    %v1220 = vadd.f32 %v996, %v1219
    %v1221 = vpop.f32.mrb[0].mxu0
    %v1222 = vpop.f32.mrb[0].mxu0
    %v1223 = vadd.f32 %v996, %v1222
    %v1224 = vpop.f32.mrb[0].mxu0
    %1225 = vmatprep.mubr.bf16.mxu0 0
    %1226 = vmatmul.mubr.bf16.gmra.mrb[0].mxu0 %v1073
    %v1227 = vpop.f32.mrb[0].mxu0
    %v1228 = vadd.f32 %v996, %v1227
    %v1229 = vpop.f32.mrb[0].mxu0
    %v1230 = vpop.f32.mrb[0].mxu0
    %v1231 = vadd.f32 %v996, %v1230
    %v1232 = vpop.f32.mrb[0].mxu0
    %1233 = vmatprep.mubr.bf16.mxu0 0
    %1234 = vmatmul.mubr.bf16.gmra.mrb[0].mxu0 %v1076
    %v1235 = vpop.f32.mrb[0].mxu0
    %v1236 = vadd.f32 %v996, %v1235
    %v1237 = vpop.f32.mrb[0].mxu0
    %v1238 = vpop.f32.mrb[0].mxu0
    %v1239 = vadd.f32 %v996, %v1238
    %v1240 = vpop.f32.mrb[0].mxu0
    %1241 = vdwg.mxu0
    %v1242 = vmax.f32 %v1116, 0.0
    %v1243 = vmax.f32 %v1119, 0.0
    %v1244 = vmax.f32 %v1124, 0.0
    %v1245 = vmax.f32 %v1127, 0.0
    %v1246 = vmax.f32 %v1132, 0.0
    %v1247 = vmax.f32 %v1135, 0.0
    %v1248 = vmax.f32 %v1140, 0.0
    %v1249 = vmax.f32 %v1143, 0.0
    %v1250 = vmax.f32 %v1148, 0.0
    %v1251 = vmax.f32 %v1151, 0.0
    %v1252 = vmax.f32 %v1156, 0.0
    %v1253 = vmax.f32 %v1159, 0.0
    %v1254 = vmax.f32 %v1164, 0.0
    %v1255 = vmax.f32 %v1167, 0.0
    %v1256 = vmax.f32 %v1172, 0.0
    %v1257 = vmax.f32 %v1175, 0.0
    %v1258 = vmax.f32 %v1180, 0.0
    %v1259 = vmax.f32 %v1183, 0.0
    %v1260 = vmax.f32 %v1188, 0.0
    %v1261 = vmax.f32 %v1191, 0.0
    %v1262 = vmax.f32 %v1196, 0.0
    %v1263 = vmax.f32 %v1199, 0.0
    %v1264 = vmax.f32 %v1204, 0.0
    %v1265 = vmax.f32 %v1207, 0.0
    %v1266 = vmax.f32 %v1212, 0.0
    %v1267 = vmax.f32 %v1215, 0.0
    %v1268 = vmax.f32 %v1220, 0.0
    %v1269 = vmax.f32 %v1223, 0.0
    %v1270 = vmax.f32 %v1228, 0.0
    %v1271 = vmax.f32 %v1231, 0.0
    %v1272 = vmax.f32 %v1236, 0.0
    %v1273 = vmax.f32 %v1239, 0.0
    %v1274 = vpack.c.bf16 %v1243, %v1242
    %v1275 = vpack.c.bf16 %v1245, %v1244
    %v1276 = vpack.c.bf16 %v1247, %v1246
    %v1277 = vpack.c.bf16 %v1249, %v1248
    %v1278 = vpack.c.bf16 %v1251, %v1250
    %v1279 = vpack.c.bf16 %v1253, %v1252
    %v1280 = vpack.c.bf16 %v1255, %v1254
    %v1281 = vpack.c.bf16 %v1257, %v1256
    %v1282 = vpack.c.bf16 %v1259, %v1258
    %v1283 = vpack.c.bf16 %v1261, %v1260
    %v1284 = vpack.c.bf16 %v1263, %v1262
    %v1285 = vpack.c.bf16 %v1265, %v1264
    %v1286 = vpack.c.bf16 %v1267, %v1266
    %v1287 = vpack.c.bf16 %v1269, %v1268
    %v1288 = vpack.c.bf16 %v1271, %v1270
    %v1289 = vpack.c.bf16 %v1273, %v1272
    %v1290 = vld [vmem:[%s5] sm:$0xf]
    %v1291 = vld [vmem:[%s5 + $0x4] sm:$0xf]
    %v1292 = vld [vmem:[%s5 + $0x8] sm:$0xf]
    %v1293 = vld [vmem:[%s5 + $0xc] sm:$0xf]
    %v1294 = vlaneseq
    %v1295 = vshrl.u32 %v1294, 7
    %v1296 = vsub.s32 1, %v1295
    %v1297 = vrot.slane %v198, %v1296
    %v1302 = vunpack.c.l.b16 %v1290
    %v1303 = vunpack.c.l.b16 %v1291
    %v1304 = vunpack.c.l.b16 %v1292
    %v1305 = vunpack.c.l.b16 %v1293
    %v1306 = vpack.c.b16 %v1303, %v1302
    %v1307 = vpack.c.b16 %v1305, %v1304
    %v1311 = vsel %vm159, %v1274, 0
    %v1314 = vsel %vm159, %v1275, 0
    %v1317 = vsel %vm159, %v1276, 0
    %v1320 = vsel %vm159, %v1277, 0
    %v1323 = vsel %vm159, %v1278, 0
    %v1326 = vsel %vm159, %v1279, 0
    %v1329 = vsel %vm159, %v1280, 0
    %v1332 = vsel %vm159, %v1281, 0
    %v1335 = vsel %vm159, %v1282, 0
    %v1338 = vsel %vm159, %v1283, 0
    %v1341 = vsel %vm159, %v1284, 0
    %v1344 = vsel %vm159, %v1285, 0
    %v1347 = vsel %vm159, %v1286, 0
    %v1350 = vsel %vm159, %v1287, 0
    %v1353 = vsel %vm159, %v1288, 0
    %v1356 = vsel %vm159, %v1289, 0
    %1358 = vmatprep.subr.bf16.mxu0 0
    %1359 = vmatpush1.bf16.msra.mxu0 %v1306
    %1360 = vmatprep.subr.bf16.mxu0 0
    %1361 = vmatpush1.bf16.msra.mxu0 %v1307
    %1362 = vmatprep.subr.bf16.mxu0 0
    %1363 = vmatpush1.bf16.msra.mxu0 0
    %1364 = vmatprep.subr.bf16.mxu0 0
    %1365 = vmatpush1.bf16.msra.mxu0 0
    %1366 = vmatprep.subr.bf16.mxu0 0
    %1367 = vmatpush1.bf16.msra.mxu0 0
    %1368 = vmatprep.subr.bf16.mxu0 0
    %1369 = vmatpush1.bf16.msra.mxu0 0
    %1370 = vmatprep.subr.bf16.mxu0 0
    %1371 = vmatpush1.bf16.msra.mxu0 0
    %1372 = vmatprep.subr.bf16.mxu0 0
    %1373 = vmatpush1.bf16.msra.mxu0 0
    %1374 = vmatprep.subr.bf16.mxu0 0
    %1375 = vmatpush1.bf16.msra.mxu0 0
    %1376 = vmatprep.subr.bf16.mxu0 0
    %1377 = vmatpush1.bf16.msra.mxu0 0
    %1378 = vmatprep.subr.bf16.mxu0 0
    %1379 = vmatpush1.bf16.msra.mxu0 0
    %1380 = vmatprep.subr.bf16.mxu0 0
    %1381 = vmatpush1.bf16.msra.mxu0 0
    %1382 = vmatprep.subr.bf16.mxu0 0
    %1383 = vmatpush1.bf16.msra.mxu0 0
    %1384 = vmatprep.subr.bf16.mxu0 0
    %1385 = vmatpush1.bf16.msra.mxu0 0
    %1386 = vmatprep.subr.bf16.mxu0 0
    %1387 = vmatpush1.bf16.msra.mxu0 0
    %1388 = vmatprep.subr.bf16.mxu0 0
    %1389 = vmatpush1.bf16.msra.mxu0 0
    %1390 = vmatprep.mubr.bf16.mxu0 0
    %1391 = vmatmul.mubr.bf16.gmra.mrb[0].mxu0 %v1311
    %v1392 = vpop.f32.mrb[0].mxu0
    %v1393 = vadd.f32 %v1297, %v1392
    %v1394 = vpop.f32.mrb[0].mxu0
    %v1395 = vpop.f32.mrb[0].mxu0
    %v1396 = vadd.f32 %v1297, %v1395
    %v1397 = vpop.f32.mrb[0].mxu0
    %1398 = vmatprep.mubr.bf16.mxu0 0
    %1399 = vmatmul.mubr.bf16.gmra.mrb[0].mxu0 %v1314
    %v1400 = vpop.f32.mrb[0].mxu0
    %v1401 = vadd.f32 %v1297, %v1400
    %v1402 = vpop.f32.mrb[0].mxu0
    %v1403 = vpop.f32.mrb[0].mxu0
    %v1404 = vadd.f32 %v1297, %v1403
    %v1405 = vpop.f32.mrb[0].mxu0
    %1406 = vmatprep.mubr.bf16.mxu0 0
    %1407 = vmatmul.mubr.bf16.gmra.mrb[0].mxu0 %v1317
    %v1408 = vpop.f32.mrb[0].mxu0
    %v1409 = vadd.f32 %v1297, %v1408
    %v1410 = vpop.f32.mrb[0].mxu0
    %v1411 = vpop.f32.mrb[0].mxu0
    %v1412 = vadd.f32 %v1297, %v1411
    %v1413 = vpop.f32.mrb[0].mxu0
    %1414 = vmatprep.mubr.bf16.mxu0 0
    %1415 = vmatmul.mubr.bf16.gmra.mrb[0].mxu0 %v1320
    %v1416 = vpop.f32.mrb[0].mxu0
    %v1417 = vadd.f32 %v1297, %v1416
    %v1418 = vpop.f32.mrb[0].mxu0
    %v1419 = vpop.f32.mrb[0].mxu0
    %v1420 = vadd.f32 %v1297, %v1419
    %v1421 = vpop.f32.mrb[0].mxu0
    %1422 = vmatprep.mubr.bf16.mxu0 0
    %1423 = vmatmul.mubr.bf16.gmra.mrb[0].mxu0 %v1323
    %v1424 = vpop.f32.mrb[0].mxu0
    %v1425 = vadd.f32 %v1297, %v1424
    %v1426 = vpop.f32.mrb[0].mxu0
    %v1427 = vpop.f32.mrb[0].mxu0
    %v1428 = vadd.f32 %v1297, %v1427
    %v1429 = vpop.f32.mrb[0].mxu0
    %1430 = vmatprep.mubr.bf16.mxu0 0
    %1431 = vmatmul.mubr.bf16.gmra.mrb[0].mxu0 %v1326
    %v1432 = vpop.f32.mrb[0].mxu0
    %v1433 = vadd.f32 %v1297, %v1432
    %v1434 = vpop.f32.mrb[0].mxu0
    %v1435 = vpop.f32.mrb[0].mxu0
    %v1436 = vadd.f32 %v1297, %v1435
    %v1437 = vpop.f32.mrb[0].mxu0
    %1438 = vmatprep.mubr.bf16.mxu0 0
    %1439 = vmatmul.mubr.bf16.gmra.mrb[0].mxu0 %v1329
    %v1440 = vpop.f32.mrb[0].mxu0
    %v1441 = vadd.f32 %v1297, %v1440
    %v1442 = vpop.f32.mrb[0].mxu0
    %v1443 = vpop.f32.mrb[0].mxu0
    %v1444 = vadd.f32 %v1297, %v1443
    %v1445 = vpop.f32.mrb[0].mxu0
    %1446 = vmatprep.mubr.bf16.mxu0 0
    %1447 = vmatmul.mubr.bf16.gmra.mrb[0].mxu0 %v1332
    %v1448 = vpop.f32.mrb[0].mxu0
    %v1449 = vadd.f32 %v1297, %v1448
    %v1450 = vpop.f32.mrb[0].mxu0
    %v1451 = vpop.f32.mrb[0].mxu0
    %v1452 = vadd.f32 %v1297, %v1451
    %v1453 = vpop.f32.mrb[0].mxu0
    %1454 = vmatprep.mubr.bf16.mxu0 0
    %1455 = vmatmul.mubr.bf16.gmra.mrb[0].mxu0 %v1335
    %v1456 = vpop.f32.mrb[0].mxu0
    %v1457 = vadd.f32 %v1297, %v1456
    %v1458 = vpop.f32.mrb[0].mxu0
    %v1459 = vpop.f32.mrb[0].mxu0
    %v1460 = vadd.f32 %v1297, %v1459
    %v1461 = vpop.f32.mrb[0].mxu0
    %1462 = vmatprep.mubr.bf16.mxu0 0
    %1463 = vmatmul.mubr.bf16.gmra.mrb[0].mxu0 %v1338
    %v1464 = vpop.f32.mrb[0].mxu0
    %v1465 = vadd.f32 %v1297, %v1464
    %v1466 = vpop.f32.mrb[0].mxu0
    %v1467 = vpop.f32.mrb[0].mxu0
    %v1468 = vadd.f32 %v1297, %v1467
    %v1469 = vpop.f32.mrb[0].mxu0
    %1470 = vmatprep.mubr.bf16.mxu0 0
    %1471 = vmatmul.mubr.bf16.gmra.mrb[0].mxu0 %v1341
    %v1472 = vpop.f32.mrb[0].mxu0
    %v1473 = vadd.f32 %v1297, %v1472
    %v1474 = vpop.f32.mrb[0].mxu0
    %v1475 = vpop.f32.mrb[0].mxu0
    %v1476 = vadd.f32 %v1297, %v1475
    %v1477 = vpop.f32.mrb[0].mxu0
    %1478 = vmatprep.mubr.bf16.mxu0 0
    %1479 = vmatmul.mubr.bf16.gmra.mrb[0].mxu0 %v1344
    %v1480 = vpop.f32.mrb[0].mxu0
    %v1481 = vadd.f32 %v1297, %v1480
    %v1482 = vpop.f32.mrb[0].mxu0
    %v1483 = vpop.f32.mrb[0].mxu0
    %v1484 = vadd.f32 %v1297, %v1483
    %v1485 = vpop.f32.mrb[0].mxu0
    %1486 = vmatprep.mubr.bf16.mxu0 0
    %1487 = vmatmul.mubr.bf16.gmra.mrb[0].mxu0 %v1347
    %v1488 = vpop.f32.mrb[0].mxu0
    %v1489 = vadd.f32 %v1297, %v1488
    %v1490 = vpop.f32.mrb[0].mxu0
    %v1491 = vpop.f32.mrb[0].mxu0
    %v1492 = vadd.f32 %v1297, %v1491
    %v1493 = vpop.f32.mrb[0].mxu0
    %1494 = vmatprep.mubr.bf16.mxu0 0
    %1495 = vmatmul.mubr.bf16.gmra.mrb[0].mxu0 %v1350
    %v1496 = vpop.f32.mrb[0].mxu0
    %v1497 = vadd.f32 %v1297, %v1496
    %v1498 = vpop.f32.mrb[0].mxu0
    %v1499 = vpop.f32.mrb[0].mxu0
    %v1500 = vadd.f32 %v1297, %v1499
    %v1501 = vpop.f32.mrb[0].mxu0
    %1502 = vmatprep.mubr.bf16.mxu0 0
    %1503 = vmatmul.mubr.bf16.gmra.mrb[0].mxu0 %v1353
    %v1504 = vpop.f32.mrb[0].mxu0
    %v1505 = vadd.f32 %v1297, %v1504
    %v1506 = vpop.f32.mrb[0].mxu0
    %v1507 = vpop.f32.mrb[0].mxu0
    %v1508 = vadd.f32 %v1297, %v1507
    %v1509 = vpop.f32.mrb[0].mxu0
    %1510 = vmatprep.mubr.bf16.mxu0 0
    %1511 = vmatmul.mubr.bf16.gmra.mrb[0].mxu0 %v1356
    %v1512 = vpop.f32.mrb[0].mxu0
    %v1513 = vadd.f32 %v1297, %v1512
    %v1514 = vpop.f32.mrb[0].mxu0
    %v1515 = vpop.f32.mrb[0].mxu0
    %v1516 = vadd.f32 %v1297, %v1515
    %v1517 = vpop.f32.mrb[0].mxu0
    %1518 = vdwg.mxu0
    %v1519 = vtanh.pop %v1393
    %v1520 = vtanh.pop %v1396
    %v1521 = vtanh.pop %v1401
    %v1522 = vtanh.pop %v1404
    %v1523 = vtanh.pop %v1409
    %v1524 = vtanh.pop %v1412
    %v1525 = vtanh.pop %v1417
    %v1526 = vtanh.pop %v1420
    %v1527 = vtanh.pop %v1425
    %v1528 = vtanh.pop %v1428
    %v1529 = vtanh.pop %v1433
    %v1530 = vtanh.pop %v1436
    %v1531 = vtanh.pop %v1441
    %v1532 = vtanh.pop %v1444
    %v1533 = vtanh.pop %v1449
    %v1534 = vtanh.pop %v1452
    %v1535 = vtanh.pop %v1457
    %v1536 = vtanh.pop %v1460
    %v1537 = vtanh.pop %v1465
    %v1538 = vtanh.pop %v1468
    %v1539 = vtanh.pop %v1473
    %v1540 = vtanh.pop %v1476
    %v1541 = vtanh.pop %v1481
    %v1542 = vtanh.pop %v1484
    %v1543 = vtanh.pop %v1489
    %v1544 = vtanh.pop %v1492
    %v1545 = vtanh.pop %v1497
    %v1546 = vtanh.pop %v1500
    %v1547 = vtanh.pop %v1505
    %v1548 = vtanh.pop %v1508
    %v1549 = vtanh.pop %v1513
    %v1550 = vtanh.pop %v1516
    %v1551 = vpack.c.bf16 %v1520, %v1519
    %v1552 = vpack.c.bf16 %v1522, %v1521
    %v1553 = vpack.c.bf16 %v1524, %v1523
    %v1554 = vpack.c.bf16 %v1526, %v1525
    %v1555 = vpack.c.bf16 %v1528, %v1527
    %v1556 = vpack.c.bf16 %v1530, %v1529
    %v1557 = vpack.c.bf16 %v1532, %v1531
    %v1558 = vpack.c.bf16 %v1534, %v1533
    %v1559 = vpack.c.bf16 %v1536, %v1535
    %v1560 = vpack.c.bf16 %v1538, %v1537
    %v1561 = vpack.c.bf16 %v1540, %v1539
    %v1562 = vpack.c.bf16 %v1542, %v1541
    %v1563 = vpack.c.bf16 %v1544, %v1543
    %v1564 = vpack.c.bf16 %v1546, %v1545
    %v1565 = vpack.c.bf16 %v1548, %v1547
    %v1566 = vpack.c.bf16 %v1550, %v1549
    %v1568 = vsel %vm159, %v1551, 0
    %v1571 = vsel %vm159, %v1552, 0
    %v1574 = vsel %vm159, %v1553, 0
    %v1577 = vsel %vm159, %v1554, 0
    %v1580 = vsel %vm159, %v1555, 0
    %v1583 = vsel %vm159, %v1556, 0
    %v1586 = vsel %vm159, %v1557, 0
    %v1589 = vsel %vm159, %v1558, 0
    %v1592 = vsel %vm159, %v1559, 0
    %v1595 = vsel %vm159, %v1560, 0
    %v1598 = vsel %vm159, %v1561, 0
    %v1601 = vsel %vm159, %v1562, 0
    %v1604 = vsel %vm159, %v1563, 0
    %v1607 = vsel %vm159, %v1564, 0
    %v1610 = vsel %vm159, %v1565, 0
    %v1613 = vsel %vm159, %v1566, 0
    %1615 = vmatprep.subr.bf16.mxu0 0
    %1616 = vmatpush1.bf16.xpose.msra.mxu0 %v1568
    %1617 = vmatprep.subr.bf16.mxu0 0
    %1618 = vmatpush1.bf16.xpose.msra.mxu0 %v1571
    %1619 = vmatprep.subr.bf16.mxu0 0
    %1620 = vmatpush1.bf16.xpose.msra.mxu0 %v1574
    %1621 = vmatprep.subr.bf16.mxu0 0
    %1622 = vmatpush1.bf16.xpose.msra.mxu0 %v1577
    %1623 = vmatprep.subr.bf16.mxu0 0
    %1624 = vmatpush1.bf16.xpose.msra.mxu0 %v1580
    %1625 = vmatprep.subr.bf16.mxu0 0
    %1626 = vmatpush1.bf16.xpose.msra.mxu0 %v1583
    %1627 = vmatprep.subr.bf16.mxu0 0
    %1628 = vmatpush1.bf16.xpose.msra.mxu0 %v1586
    %1629 = vmatprep.subr.bf16.mxu0 0
    %1630 = vmatpush1.bf16.xpose.msra.mxu0 %v1589
    %1631 = vmatprep.subr.bf16.mxu0 0
    %1632 = vmatpush1.bf16.xpose.msra.mxu0 %v1592
    %1633 = vmatprep.subr.bf16.mxu0 0
    %1634 = vmatpush1.bf16.xpose.msra.mxu0 %v1595
    %1635 = vmatprep.subr.bf16.mxu0 0
    %1636 = vmatpush1.bf16.xpose.msra.mxu0 %v1598
    %1637 = vmatprep.subr.bf16.mxu0 0
    %1638 = vmatpush1.bf16.xpose.msra.mxu0 %v1601
    %1639 = vmatprep.subr.bf16.mxu0 0
    %1640 = vmatpush1.bf16.xpose.msra.mxu0 %v1604
    %1641 = vmatprep.subr.bf16.mxu0 0
    %1642 = vmatpush1.bf16.xpose.msra.mxu0 %v1607
    %1643 = vmatprep.subr.bf16.mxu0 0
    %1644 = vmatpush1.bf16.xpose.msra.mxu0 %v1610
    %1645 = vmatprep.subr.bf16.mxu0 0
    %1646 = vmatpush1.bf16.xpose.msra.mxu0 %v1613
    %1647 = vmatprep.mubr.bf16.mxu0 0
    %1648 = vmatmul.mubr.bf16.gmra.mrb[0].mxu0 %v803
    %v1649 = vpop.f32.mrb[0].mxu0
    %v1650 = vadd.f32 0.0, %v1649
    %v1651 = vpop.f32.mrb[0].mxu0
    %v1652 = vadd.f32 0.0, %v1651
    %v1653 = vpop.f32.mrb[0].mxu0
    %v1654 = vpop.f32.mrb[0].mxu0
    %1655 = vdwg.mxu0
    %v1656 = vsel %vm312, %v1650, -inf
    %v1657 = vsel %vm312, %v1652, -inf
    %v1658 = vmax.f32 %v1656, %v1657
    %1659 = vmax.xlane.f32.xlu0 %v1658
    %v1660 = vpop.xlane.xlu0 %1659
    %v1661 = vsub.f32 %v1650, %v1660
    %v1662 = vsub.f32 %v1652, %v1660
    %v1663 = vmul.f32 %v1661, 1.442695
    %v1664 = vpow.pop %v1663
    %v1665 = vmul.f32 %v1662, 1.442695
    %v1666 = vpow.pop %v1665
    %v1667 = vsel %vm312, %v1664, 0.0
    %v1668 = vsel %vm312, %v1666, 0.0
    %v1669 = vadd.f32 %v1667, %v1668
    %1670 = vadd.xlane.f32.xlu0 %v1669
    %v1671 = vpop.xlane.xlu0 %1670
    %v1672 = vrcp.pop %v1671
    %v1673 = vmul.f32 %v1664, %v1672
    %v1674 = vmul.f32 %v1666, %v1672
    %v1677 = vcombine.low %v1673, %v1674
    %v1679 = vunpack.c.l.s4 1983009808
    %v1680 = vunpack.c.0.s8 %v1679
    %v1681 = vlaneseq
    %v1682 = vshrl.u32 %v1681, 7
    %v1683 = vsub.s32 %v1680, %v1682
    %v1684 = vrot.slane %v1677, %v1683
    %s1686 = scalar_lea.vmem %s16, 4
    %1687 = vst [vmem:[%s1686] sm:$0xf] %v1684
    %v1688 = vpack.c.bf16 %v1673, %v1673
    %v1689 = vpack.c.bf16 %v1674, %v1674
    %1690 = vmatprep.subr.bf16.mxu0 0
    %1691 = vmatpush1.bf16.msra.mxu0 %v1274
    %1692 = vmatprep.subr.bf16.mxu0 0
    %1693 = vmatpush1.bf16.msra.mxu0 %v1275
    %1694 = vmatprep.subr.bf16.mxu0 0
    %1695 = vmatpush1.bf16.msra.mxu0 %v1276
    %1696 = vmatprep.subr.bf16.mxu0 0
    %1697 = vmatpush1.bf16.msra.mxu0 %v1277
    %1698 = vmatprep.subr.bf16.mxu0 0
    %1699 = vmatpush1.bf16.msra.mxu0 %v1278
    %1700 = vmatprep.subr.bf16.mxu0 0
    %1701 = vmatpush1.bf16.msra.mxu0 %v1279
    %1702 = vmatprep.subr.bf16.mxu0 0
    %1703 = vmatpush1.bf16.msra.mxu0 %v1280
    %1704 = vmatprep.subr.bf16.mxu0 0
    %1705 = vmatpush1.bf16.msra.mxu0 %v1281
    %1706 = vmatprep.subr.bf16.mxu0 0
    %1707 = vmatpush1.bf16.msra.mxu0 %v1282
    %1708 = vmatprep.subr.bf16.mxu0 0
    %1709 = vmatpush1.bf16.msra.mxu0 %v1283
    %1710 = vmatprep.subr.bf16.mxu0 0
    %1711 = vmatpush1.bf16.msra.mxu0 %v1284
    %1712 = vmatprep.subr.bf16.mxu0 0
    %1713 = vmatpush1.bf16.msra.mxu0 %v1285
    %1714 = vmatprep.subr.bf16.mxu0 0
    %1715 = vmatpush1.bf16.msra.mxu0 %v1286
    %1716 = vmatprep.subr.bf16.mxu0 0
    %1717 = vmatpush1.bf16.msra.mxu0 %v1287
    %1718 = vmatprep.subr.bf16.mxu0 0
    %1719 = vmatpush1.bf16.msra.mxu0 %v1288
    %1720 = vmatprep.subr.bf16.mxu0 0
    %1721 = vmatpush1.bf16.msra.mxu0 %v1289
    %1722 = vmatprep.mubr.bf16.mxu0 %v1689
    %1723 = vmatmul.mubr.bf16.gmra.mrb[0].mxu0 %v1688
    %v1724 = vpop.f32.mrb[0].mxu0
    %v1725 = vadd.f32 0.0, %v1724
    %v1726 = vpop.f32.mrb[0].mxu0
    %v1727 = vpop.f32.mrb[0].mxu0
    %v1728 = vpop.f32.mrb[0].mxu0
    %1729 = vdwg.mxu0
    %s1730 = scalar_lea.vmem [#allocation2], 2
    %1731 = vst.msk [vmem:[%s1730] sm:$0x3] %vm967, %v1725
    %v1732 = vld [vmem:[#allocation2] sm:$0x3]
    %v1733 = vld [vmem:[#allocation2 + $0x2] sm:$0x3]
    %v1734 = vld [vmem:[%s11] sm:$0xf]
    %v1735 = vld [vmem:[%s11 + $0x4] sm:$0xf]
    %v1736 = vld [vmem:[%s11 + $0x8] sm:$0xf]
    %v1737 = vld [vmem:[%s11 + $0xc] sm:$0xf]
    %v1738 = vld [vmem:[%s12] sm:$0x1]
    %v1740 = vlaneseq
    %v1741 = vshrl.u32 %v1740, 7
    %v1742 = vsub.s32 0, %v1741
    %v1743 = vrot.slane %v1738, %v1742
    %v1749 = vunpack.c.l.b16 %v1734
    %v1750 = vunpack.c.l.b16 %v1735
    %v1751 = vunpack.c.l.b16 %v1736
    %v1752 = vunpack.c.l.b16 %v1737
    %v1753 = vpack.c.b16 %v1750, %v1749
    %v1754 = vpack.c.b16 %v1752, %v1751
    %1757 = vmatprep.subr.bf16.mxu0 0
    %1758 = vmatpush1.bf16.msra.mxu0 %v1753
    %1759 = vmatprep.subr.bf16.mxu0 0
    %1760 = vmatpush1.bf16.msra.mxu0 %v1754
    %1761 = vmatprep.subr.bf16.mxu0 0
    %1762 = vmatpush1.bf16.msra.mxu0 0
    %1763 = vmatprep.subr.bf16.mxu0 0
    %1764 = vmatpush1.bf16.msra.mxu0 0
    %1765 = vmatprep.subr.bf16.mxu0 0
    %1766 = vmatpush1.bf16.msra.mxu0 0
    %1767 = vmatprep.subr.bf16.mxu0 0
    %1768 = vmatpush1.bf16.msra.mxu0 0
    %1769 = vmatprep.subr.bf16.mxu0 0
    %1770 = vmatpush1.bf16.msra.mxu0 0
    %1771 = vmatprep.subr.bf16.mxu0 0
    %1772 = vmatpush1.bf16.msra.mxu0 0
    %1773 = vmatprep.subr.bf16.mxu0 0
    %1774 = vmatpush1.bf16.msra.mxu0 0
    %1775 = vmatprep.subr.bf16.mxu0 0
    %1776 = vmatpush1.bf16.msra.mxu0 0
    %1777 = vmatprep.subr.bf16.mxu0 0
    %1778 = vmatpush1.bf16.msra.mxu0 0
    %1779 = vmatprep.subr.bf16.mxu0 0
    %1780 = vmatpush1.bf16.msra.mxu0 0
    %1781 = vmatprep.subr.bf16.mxu0 0
    %1782 = vmatpush1.bf16.msra.mxu0 0
    %1783 = vmatprep.subr.bf16.mxu0 0
    %1784 = vmatpush1.bf16.msra.mxu0 0
    %1785 = vmatprep.subr.bf16.mxu0 0
    %1786 = vmatpush1.bf16.msra.mxu0 0
    %1787 = vmatprep.subr.bf16.mxu0 0
    %1788 = vmatpush1.bf16.msra.mxu0 0
    %1789 = vmatprep.mubr.bf16.mxu0 0
    %1790 = vmatmul.mubr.bf16.gmra.mrb[0].mxu0 %v161
    %v1791 = vpop.f32.mrb[0].mxu0
    %v1792 = vadd.f32 %v1743, %v1791
    %v1793 = vpop.f32.mrb[0].mxu0
    %v1794 = vpop.f32.mrb[0].mxu0
    %v1795 = vpop.f32.mrb[0].mxu0
    %1796 = vdwg.mxu0
    %v1797 = vpack.c.bf16 %v1732, %v1732
    %v1798 = vpack.c.bf16 %v1733, %v1733
    %v1799 = vld [vmem:[%s10] sm:$0xf]
    %v1800 = vld [vmem:[%s10 + $0x4] sm:$0xf]
    %v1801 = vld [vmem:[%s10 + $0x8] sm:$0xf]
    %v1802 = vld [vmem:[%s10 + $0xc] sm:$0xf]
    %v1805 = vunpack.c.l.b16 %v1797
    %v1806 = vunpack.c.l.b16 %v1798
    %v1807 = vrot.slane %v1806, 7
    %v1808 = vsel %vm89, %v1807, %v1805
    %v1809 = vpack.c.b16 %v1808, %v1808
    %v1814 = vunpack.c.l.b16 %v1799
    %v1815 = vunpack.c.l.b16 %v1800
    %v1816 = vunpack.c.l.b16 %v1801
    %v1817 = vunpack.c.l.b16 %v1802
    %v1818 = vpack.c.b16 %v1815, %v1814
    %v1819 = vpack.c.b16 %v1817, %v1816
    %v1823 = vsel %vm159, %v1809, 0
    %1825 = vmatprep.subr.bf16.mxu0 0
    %1826 = vmatpush1.bf16.msra.mxu0 %v1818
    %1827 = vmatprep.subr.bf16.mxu0 0
    %1828 = vmatpush1.bf16.msra.mxu0 %v1819
    %1829 = vmatprep.subr.bf16.mxu0 0
    %1830 = vmatpush1.bf16.msra.mxu0 0
    %1831 = vmatprep.subr.bf16.mxu0 0
    %1832 = vmatpush1.bf16.msra.mxu0 0
    %1833 = vmatprep.subr.bf16.mxu0 0
    %1834 = vmatpush1.bf16.msra.mxu0 0
    %1835 = vmatprep.subr.bf16.mxu0 0
    %1836 = vmatpush1.bf16.msra.mxu0 0
    %1837 = vmatprep.subr.bf16.mxu0 0
    %1838 = vmatpush1.bf16.msra.mxu0 0
    %1839 = vmatprep.subr.bf16.mxu0 0
    %1840 = vmatpush1.bf16.msra.mxu0 0
    %1841 = vmatprep.subr.bf16.mxu0 0
    %1842 = vmatpush1.bf16.msra.mxu0 0
    %1843 = vmatprep.subr.bf16.mxu0 0
    %1844 = vmatpush1.bf16.msra.mxu0 0
    %1845 = vmatprep.subr.bf16.mxu0 0
    %1846 = vmatpush1.bf16.msra.mxu0 0
    %1847 = vmatprep.subr.bf16.mxu0 0
    %1848 = vmatpush1.bf16.msra.mxu0 0
    %1849 = vmatprep.subr.bf16.mxu0 0
    %1850 = vmatpush1.bf16.msra.mxu0 0
    %1851 = vmatprep.subr.bf16.mxu0 0
    %1852 = vmatpush1.bf16.msra.mxu0 0
    %1853 = vmatprep.subr.bf16.mxu0 0
    %1854 = vmatpush1.bf16.msra.mxu0 0
    %1855 = vmatprep.subr.bf16.mxu0 0
    %1856 = vmatpush1.bf16.msra.mxu0 0
    %1857 = vmatprep.mubr.bf16.mxu0 0
    %1858 = vmatmul.mubr.bf16.gmra.mrb[0].mxu0 %v1823
    %v1859 = vpop.f32.mrb[0].mxu0
    %v1860 = vadd.f32 0.0, %v1859
    %v1861 = vpop.f32.mrb[0].mxu0
    %v1862 = vpop.f32.mrb[0].mxu0
    %v1863 = vpop.f32.mrb[0].mxu0
    %1864 = vdwg.mxu0
    %v1865 = vadd.f32 %v1792, %v1860
    %s1866 = scalar_lea.vmem %s10, 16
    %v1867 = vld [vmem:[%s1866] sm:$0xf]
    %v1868 = vld [vmem:[%s1866 + $0x4] sm:$0xf]
    %v1869 = vld [vmem:[%s1866 + $0x8] sm:$0xf]
    %v1870 = vld [vmem:[%s1866 + $0xc] sm:$0xf]
    %v1871 = vrot.slane %v1805, 1
    %v1872 = vsel %vm89, %v1806, %v1871
    %v1873 = vpack.c.b16 %v1872, %v1872
    %v1878 = vunpack.c.l.b16 %v1867
    %v1879 = vunpack.c.l.b16 %v1868
    %v1880 = vunpack.c.l.b16 %v1869
    %v1881 = vunpack.c.l.b16 %v1870
    %v1882 = vpack.c.b16 %v1879, %v1878
    %v1883 = vpack.c.b16 %v1881, %v1880
    %v1887 = vsel %vm159, %v1873, 0
    %1889 = vmatprep.subr.bf16.mxu0 0
    %1890 = vmatpush1.bf16.msra.mxu0 %v1882
    %1891 = vmatprep.subr.bf16.mxu0 0
    %1892 = vmatpush1.bf16.msra.mxu0 %v1883
    %1893 = vmatprep.subr.bf16.mxu0 0
    %1894 = vmatpush1.bf16.msra.mxu0 0
    %1895 = vmatprep.subr.bf16.mxu0 0
    %1896 = vmatpush1.bf16.msra.mxu0 0
    %1897 = vmatprep.subr.bf16.mxu0 0
    %1898 = vmatpush1.bf16.msra.mxu0 0
    %1899 = vmatprep.subr.bf16.mxu0 0
    %1900 = vmatpush1.bf16.msra.mxu0 0
    %1901 = vmatprep.subr.bf16.mxu0 0
    %1902 = vmatpush1.bf16.msra.mxu0 0
    %1903 = vmatprep.subr.bf16.mxu0 0
    %1904 = vmatpush1.bf16.msra.mxu0 0
    %1905 = vmatprep.subr.bf16.mxu0 0
    %1906 = vmatpush1.bf16.msra.mxu0 0
    %1907 = vmatprep.subr.bf16.mxu0 0
    %1908 = vmatpush1.bf16.msra.mxu0 0
    %1909 = vmatprep.subr.bf16.mxu0 0
    %1910 = vmatpush1.bf16.msra.mxu0 0
    %1911 = vmatprep.subr.bf16.mxu0 0
    %1912 = vmatpush1.bf16.msra.mxu0 0
    %1913 = vmatprep.subr.bf16.mxu0 0
    %1914 = vmatpush1.bf16.msra.mxu0 0
    %1915 = vmatprep.subr.bf16.mxu0 0
    %1916 = vmatpush1.bf16.msra.mxu0 0
    %1917 = vmatprep.subr.bf16.mxu0 0
    %1918 = vmatpush1.bf16.msra.mxu0 0
    %1919 = vmatprep.subr.bf16.mxu0 0
    %1920 = vmatpush1.bf16.msra.mxu0 0
    %1921 = vmatprep.mubr.bf16.mxu0 0
    %1922 = vmatmul.mubr.bf16.gmra.mrb[0].mxu0 %v1887
    %v1923 = vpop.f32.mrb[0].mxu0
    %v1924 = vadd.f32 0.0, %v1923
    %v1925 = vpop.f32.mrb[0].mxu0
    %v1926 = vpop.f32.mrb[0].mxu0
    %v1927 = vpop.f32.mrb[0].mxu0
    %1928 = vdwg.mxu0
    %v1929 = vadd.f32 %v1865, %v1924
    %v1930 = vmax.f32 %v1929, 0.0
    %v1931 = vpack.c.bf16 %v1930, %v1930
    %v1932 = vld [vmem:[%s13] sm:$0xf]
    %v1933 = vld [vmem:[%s13 + $0x4] sm:$0xf]
    %v1934 = vld [vmem:[%s13 + $0x8] sm:$0xf]
    %v1935 = vld [vmem:[%s13 + $0xc] sm:$0xf]
    %v1936 = vld [vmem:[%s13 + $0x10] sm:$0xf]
    %v1937 = vld [vmem:[%s13 + $0x14] sm:$0xf]
    %v1938 = vld [vmem:[%s13 + $0x18] sm:$0xf]
    %v1939 = vld [vmem:[%s13 + $0x1c] sm:$0xf]
    %v1940 = vld [vmem:[%s14] sm:$0x1]
    %v1942 = vlaneseq
    %v1943 = vshrl.u32 %v1942, 7
    %v1944 = vsub.s32 0, %v1943
    %v1945 = vrot.slane %v1940, %v1944
    %v1955 = vunpack.c.l.b16 %v1932
    %v1956 = vunpack.c.l.b16 %v1933
    %v1957 = vunpack.c.l.b16 %v1934
    %v1958 = vunpack.c.l.b16 %v1935
    %v1959 = vunpack.c.l.b16 %v1936
    %v1960 = vunpack.c.l.b16 %v1937
    %v1961 = vunpack.c.l.b16 %v1938
    %v1962 = vunpack.c.l.b16 %v1939
    %v1963 = vpack.c.b16 %v1956, %v1955
    %v1964 = vpack.c.b16 %v1958, %v1957
    %v1965 = vpack.c.b16 %v1960, %v1959
    %v1966 = vpack.c.b16 %v1962, %v1961
    %vm1971 = vcmask 523264
    %v1973 = vsel %vm1971, %v1931, 0
    %1975 = vmatprep.subr.bf16.mxu0 0
    %1976 = vmatpush1.bf16.msra.mxu0 %v1963
    %1977 = vmatprep.subr.bf16.mxu0 0
    %1978 = vmatpush1.bf16.msra.mxu0 %v1964
    %1979 = vmatprep.subr.bf16.mxu0 0
    %1980 = vmatpush1.bf16.msra.mxu0 %v1965
    %1981 = vmatprep.subr.bf16.mxu0 0
    %1982 = vmatpush1.bf16.msra.mxu0 %v1966
    %1983 = vmatprep.subr.bf16.mxu0 0
    %1984 = vmatpush1.bf16.msra.mxu0 0
    %1985 = vmatprep.subr.bf16.mxu0 0
    %1986 = vmatpush1.bf16.msra.mxu0 0
    %1987 = vmatprep.subr.bf16.mxu0 0
    %1988 = vmatpush1.bf16.msra.mxu0 0
    %1989 = vmatprep.subr.bf16.mxu0 0
    %1990 = vmatpush1.bf16.msra.mxu0 0
    %1991 = vmatprep.subr.bf16.mxu0 0
    %1992 = vmatpush1.bf16.msra.mxu0 0
    %1993 = vmatprep.subr.bf16.mxu0 0
    %1994 = vmatpush1.bf16.msra.mxu0 0
    %1995 = vmatprep.subr.bf16.mxu0 0
    %1996 = vmatpush1.bf16.msra.mxu0 0
    %1997 = vmatprep.subr.bf16.mxu0 0
    %1998 = vmatpush1.bf16.msra.mxu0 0
    %1999 = vmatprep.subr.bf16.mxu0 0
    %2000 = vmatpush1.bf16.msra.mxu0 0
    %2001 = vmatprep.subr.bf16.mxu0 0
    %2002 = vmatpush1.bf16.msra.mxu0 0
    %2003 = vmatprep.subr.bf16.mxu0 0
    %2004 = vmatpush1.bf16.msra.mxu0 0
    %2005 = vmatprep.subr.bf16.mxu0 0
    %2006 = vmatpush1.bf16.msra.mxu0 0
    %2007 = vmatprep.mubr.bf16.mxu0 0
    %2008 = vmatmul.mubr.bf16.gmra.mrb[0].mxu0 %v1973
    %v2009 = vpop.f32.mrb[0].mxu0
    %v2010 = vadd.f32 %v1945, %v2009
    %v2011 = vpop.f32.mrb[0].mxu0
    %v2012 = vpop.f32.mrb[0].mxu0
    %v2013 = vpop.f32.mrb[0].mxu0
    %2014 = vdwg.mxu0
    %2015 = vst [vmem:[#allocation3] sm:$0x3] %v2010
    // Predicated region
    $region62: #{squint_forward.1} parent=1 // pred_check
      _
    $region63: #{squint_forward.1} parent=1 // pred_check_branch
      %2017 = sbr.rel (0) target = $region65
    $region64: #{squint_forward.1} parent=1 // pred_region
      %s2019 = ssub.s32 32, 32
      %2020 = vsyncadd [#allocation4], %s2019
      %s2022 = sshll.u32 [#allocation3], 4
      %s2023 = int_to_ptr.vmem [resolvable:$true] %s2022
      %2025 = dma.vmem_to_hbm [thread:$0]  %s2023, 32, %s15, [#allocation4]
    $region65: #{squint_forward.1} parent=1 // pred_fallthru
      _
    // Predicated region
    $region66: #{squint_forward.1} parent=1 // pred_check
      _
    $region67: #{squint_forward.1} parent=1 // pred_check_branch
      %2027 = sbr.rel (0) target = $region69
    $region68: #{squint_forward.1} parent=1 // pred_region
      _
    $region69: #{squint_forward.1} parent=1 // pred_fallthru
      _
    // Predicated region
    $region70: #{squint_forward.1} parent=1 // pred_check
      _
    $region71: #{squint_forward.1} parent=1 // pred_check_branch
      %2029 = sbr.rel (0) target = $region73
    $region72: #{squint_forward.1} parent=1 // pred_region
      %2030 = dma.done [#allocation4], 32
    $region73: #{squint_forward.1} parent=1 // pred_fallthru
      _
    // Predicated region
    $region74: #{squint_forward.1} parent=1 // pred_check
      _
    $region75: #{squint_forward.1} parent=1 // pred_check_branch
      %2032 = sbr.rel (0) target = $region77
    $region76: #{squint_forward.1} parent=1 // pred_region
      _
    $region77: #{squint_forward.1} parent=1 // pred_fallthru
      _
    %2033 = vsyncpa [#allocation4], 1

</llo_original>
